<compile_context>
chip_gen: v7x
topology: tpu7x:2x2x1
jax: 0.10.0
libtpu: 0.0.40
codegen_flags: <defaults>
</compile_context>

<pallas_src>
import functools

import jax
import jax.numpy as jnp
from jax import lax
from jax.experimental import pallas as pl
from jax.experimental.pallas import tpu as pltpu


# --------------------------------------------------------------------------
# Kernel 1: the serial recurrence (P outer "prefer" iterations x S time steps)
# --------------------------------------------------------------------------
def hln_recurrent_kernel(x_ref, gd_ref, wx_ref, bx_ref, up_ref, bup_ref,
                         uqd_ref, whh_ref, bhhn_ref, wqd_ref, wout_ref,
                         bout_ref,
                         ideal_ref, gates_ref,
                         gi_sc, xwp_sc, xu_sc, qc_sc, acc_sc,
                         *, num_prefers, seq_len, batch, hidden_size,
                         embed_size, inner_unroll):
    P, S, Bp, H, E = num_prefers, seq_len, batch, hidden_size, embed_size
    f32 = jnp.float32

    # ---- preamble: every x-only term, hoisted out of both loops -----------
    # One lane-dense (S*Bp, E) @ (E, E+3H) matmul, reused P*S times.
    xw = jnp.dot(x_ref[...], wx_ref[...], preferred_element_type=f32) + bx_ref[...]
    xwp_sc[...] = xw[:, :E].reshape(S, Bp, E).astype(xwp_sc.dtype)      # x@Wp+bp
    gi_sc[...] = xw[:, E:].reshape(S, Bp, 3 * H).astype(gi_sc.dtype)    # x@W_ih+b (r/z b_hh folded)
    xu_sc[...] = (x_ref[...].astype(f32) * uqd_ref[...]).reshape(
        S, Bp, E).astype(xu_sc.dtype)                                    # x*(uq0-uq1)
    acc_sc[...] = jnp.zeros_like(acc_sc)                                 # sum of prefers

    wh = whh_ref[...]                                        # (H, 3H) resident
    wqd_b = jnp.broadcast_to(wqd_ref[...], (Bp, H))          # hoisted broadcasts
    bhhn_b = jnp.broadcast_to(bhhn_ref[...], (Bp, H))
    # Identity mask used for tiny lane<->sublane moves (transpose-free,
    # VPU multiply + XLU reduce only).  Fine for Bp up to a few hundred.
    eye = (lax.broadcasted_iota(jnp.int32, (Bp, Bp), 0)
           == lax.broadcasted_iota(jnp.int32, (Bp, Bp), 1)).astype(f32)

    for i in range(P):                                       # small P: fully unrolled
        pre_prefer = acc_sc[...]                             # (Bp, H)

        # per-outer hoist: everything that does not depend on h, batched over S
        up_term = jnp.dot(pre_prefer, up_ref[...],
                          preferred_element_type=f32) + bup_ref[...]     # (Bp, E)
        pg = jax.nn.sigmoid(xwp_sc[...].astype(f32) + up_term[None, :, :])  # (S,Bp,E)
        # x-side of (q0-q1); biases + gumbel diff already folded into gd.
        qc_sc[...] = (jnp.sum(xu_sc[...].astype(f32) * pg, axis=-1)
                      + gd_ref[i])                                       # (S, Bp)

        def inner_body(j, h):
            gi = gi_sc[j].astype(f32)                        # (Bp, 3H)
            # single MXU matmul on the serial path
            gh = jnp.dot(h, wh, preferred_element_type=f32)  # (Bp, 3H)
            # leap h-term on VPU/XLU (no extra MXU output tile)
            qh = jnp.sum(h * wqd_b, axis=-1, keepdims=True)  # (Bp, 1)
            qc_row = qc_sc[pl.ds(j, 1), :]                   # (1, Bp) lane-dense read
            qc_col = jnp.sum(qc_row * eye, axis=1, keepdims=True)   # -> (Bp, 1)

            # hard gumbel gate: sign of (q0+g0)-(q1+g1); the log-softmax cancels
            gate = (qh + qc_col) >= 0.0                      # bool (Bp, 1)

            # GRUCell (PyTorch gate order r, z, n); r/z hh-bias pre-folded
            r = jax.nn.sigmoid(gi[:, :H] + gh[:, :H])
            z = jax.nn.sigmoid(gi[:, H:2 * H] + gh[:, H:2 * H])
            n = jnp.tanh(gi[:, 2 * H:] + r * (gh[:, 2 * H:] + bhhn_b))
            h_cell = (1.0 - z) * n + z * h
            h_new = jnp.where(gate, h_cell, h)               # 1 vselect

            # lane-dense row store of this step's gate
            gate_row = jnp.sum(gate.astype(f32) * eye, axis=0, keepdims=True)
            gates_ref[pl.ds(i * S + j, 1), :] = gate_row
            return h_new

        h_final = lax.fori_loop(0, S, inner_body,
                                jnp.zeros((Bp, H), f32),
                                unroll=inner_unroll)
        acc_sc[...] = acc_sc[...] + h_final

    # final projection of the aggregated preference: W(agg_prefer)
    ideal_ref[...] = (jnp.dot(acc_sc[...], wout_ref[...],
                              preferred_element_type=f32) + bout_ref[...])


# --------------------------------------------------------------------------
# Kernel 2: scoring head, (core-split, vocab-tile) grid with online max / LSE
# --------------------------------------------------------------------------
def hln_scoring_kernel(ideal_ref, embt_ref, scores_ref, lse_ref, m_sc, l_sc,
                       *, v_true, tile_v, tiles_per_core):
    c = pl.program_id(0)
    v = pl.program_id(1)

    @pl.when(v == 0)
    def _():
        m_sc[...] = jnp.full_like(m_sc, -jnp.inf)
        l_sc[...] = jnp.zeros_like(l_sc)

    s = jnp.dot(ideal_ref[...], embt_ref[...], preferred_element_type=jnp.float32)
    col0 = (c * tiles_per_core + v) * tile_v
    col = col0 + lax.broadcasted_iota(jnp.int32, (1, tile_v), 1)
    s = jnp.where(col < v_true, s, -1e30)                    # mask vocab padding
    scores_ref[...] = s

    m_prev = m_sc[...]
    m_new = jnp.maximum(m_prev, jnp.max(s, axis=1, keepdims=True))
    l_sc[...] = (l_sc[...] * jnp.exp(m_prev - m_new)
                 + jnp.sum(jnp.exp(s - m_new), axis=1, keepdims=True))
    m_sc[...] = m_new

    @pl.when(v == pl.num_programs(1) - 1)
    def _():
        lse_ref[...] = (m_sc[...] + jnp.log(l_sc[...]))[None]


# --------------------------------------------------------------------------
# Wrapper
# --------------------------------------------------------------------------
def hln_forward(item_seqs, params, gumbel_noise, *, num_prefers, hidden_size,
                vocab_tile=2048, num_core_splits=2, inner_unroll=8,
                preamble_dtype=jnp.float32):
    # preamble_dtype=jnp.bfloat16 halves the gi/xwp/xu scratch + inner-loop
    # load bandwidth and doubles MXU throughput on the preamble matmul; kept
    # f32 by default so the hard-gate check below stays bit-exact.
    emb = params["emb"]                      # (V, E) f32
    V, E = emb.shape
    H = hidden_size
    P = num_prefers
    B, S = item_seqs.shape
    Bp = ((B + 7) // 8) * 8                  # pad batch to fill sublanes

    # ---- glue: embedding gather, batch pad, time-major flatten ------------
    # TODO(synk): embedding gather + final (scores - lse) subtraction stay as
    # XLA glue around the two pallas_calls.
    x = emb[item_seqs]                                   # (B, S, E)
    x_t = jnp.transpose(x, (1, 0, 2))                    # (S, B, E)
    x_t = jnp.pad(x_t, ((0, 0), (0, Bp - B), (0, 0)))
    x_flat = x_t.reshape(S * Bp, E).astype(preamble_dtype)

    # fold (bwq0-bwq1)+(buq0-buq1) and the gumbel difference into one term,
    # laid out lane-dense as (P, S, Bp)
    bias_diff = ((params["bwq"][0, 0] - params["bwq"][0, 1])
                 + (params["buq"][0, 0] - params["buq"][0, 1]))
    gd = gumbel_noise[..., 0] - gumbel_noise[..., 1] + bias_diff   # (P, S, B)
    gd = jnp.pad(gd, ((0, 0), (0, 0), (0, Bp - B)))                # (P, S, Bp)

    # ---- fused / folded weights -------------------------------------------
    bih_fold = params["bih"] + jnp.concatenate(
        [params["bhh"][:, :2 * H], jnp.zeros((1, H), jnp.float32)], axis=1)
    wx = jnp.concatenate([params["wp_t"], params["wih_t"]],
                         axis=1).astype(preamble_dtype)            # (E, E+3H)
    bx = jnp.concatenate([params["bp"], bih_fold], axis=1)         # (1, E+3H)
    uqd = (params["uq_t"][:, 0] - params["uq_t"][:, 1]).reshape(1, E)
    wqd = (params["wq_t"][:, 0] - params["wq_t"][:, 1]).reshape(1, H)
    bhh_n = params["bhh"][:, 2 * H:]                               # (1, H)

    vmem = pl.BlockSpec(memory_space=pltpu.MemorySpace.VMEM)
    rec_inputs = (x_flat, gd, wx, bx, params["up_t"], params["bup"], uqd,
                  params["whh_t"], bhh_n, wqd, params["wout_t"], params["bout"])
    kernel1 = functools.partial(
        hln_recurrent_kernel, num_prefers=P, seq_len=S, batch=Bp,
        hidden_size=H, embed_size=E, inner_unroll=min(inner_unroll, S))
    # TODO(synk): on v7x (64 MiB VMEM / 2 TCs) stream x from HBM with
    # emit_pipeline in the preamble and split the batch across cores; a small
    # batch block breaks the lane-dense (..., Bp)-last layouts, so it is left
    # single-core / fully-resident here.
    ideal, gates = pl.pallas_call(
        kernel1,
        out_shape=(jax.ShapeDtypeStruct((Bp, E), jnp.float32),
                   jax.ShapeDtypeStruct((P * S, Bp), jnp.float32)),
        in_specs=[vmem] * len(rec_inputs),
        out_specs=(vmem, vmem),
        scratch_shapes=[pltpu.VMEM((S, Bp, 3 * H), preamble_dtype),  # gi
                        pltpu.VMEM((S, Bp, E), preamble_dtype),      # x@Wp
                        pltpu.VMEM((S, Bp, E), preamble_dtype),      # x*(uq0-uq1)
                        pltpu.VMEM((S, Bp), jnp.float32),            # qc (lane-dense)
                        pltpu.VMEM((Bp, H), jnp.float32)],           # prefer acc
        compiler_params=pltpu.CompilerParams(
            vmem_limit_bytes=64 * 1024 * 1024),
    )(*rec_inputs)

    # ---- scoring head: (core, vocab-tile) grid, bf16 table, online LSE ----
    TV = min(vocab_tile, ((V + 127) // 128) * 128)
    NV = (V + TV - 1) // TV                              # tiles covering the vocab
    NC = num_core_splits if NV >= num_core_splits else 1
    NVpc = (NV + NC - 1) // NC
    Vp = NC * NVpc * TV
    embt = jnp.pad(params["emb_t"].astype(jnp.bfloat16), ((0, 0), (0, Vp - V)))
    ideal_bf = ideal.astype(jnp.bfloat16)                # cast once, outside the grid

    kernel2 = functools.partial(hln_scoring_kernel, v_true=V, tile_v=TV,
                                tiles_per_core=NVpc)
    scores, lse = pl.pallas_call(
        kernel2,
        out_shape=(jax.ShapeDtypeStruct((Bp, Vp), jnp.float32),
                   jax.ShapeDtypeStruct((NC, Bp, 1), jnp.float32)),
        grid=(NC, NVpc),
        in_specs=[pl.BlockSpec((Bp, E), lambda c, v: (0, 0)),
                  pl.BlockSpec((E, TV), lambda c, v: (0, c * NVpc + v))],
        out_specs=(pl.BlockSpec((Bp, TV), lambda c, v: (0, c * NVpc + v)),
                   pl.BlockSpec((1, Bp, 1), lambda c, v: (c, 0, 0))),
        scratch_shapes=[pltpu.VMEM((Bp, 1), jnp.float32),
                        pltpu.VMEM((Bp, 1), jnp.float32)],
        compiler_params=pltpu.CompilerParams(
            dimension_semantics=("parallel", "arbitrary"),
            vmem_limit_bytes=64 * 1024 * 1024),
        cost_estimate=pl.CostEstimate(
            flops=2 * Bp * E * Vp, transcendentals=Bp * Vp,
            bytes_accessed=E * Vp * 2 + Bp * Vp * 4 + Bp * E * 2),
    )(ideal_bf, embt)

    lse_full = jax.nn.logsumexp(lse, axis=0)             # combine per-core partials
    logp = (scores[:, :V] - lse_full)[:B]
    gates_out = jnp.transpose(gates.reshape(P, S, Bp), (2, 0, 1))[:B]  # (B, P, S)
    return logp, gates_out


# --------------------------------------------------------------------------
# Pure-JAX mirror of the PyTorch forward (same noise) for validation.
# --------------------------------------------------------------------------
def hln_reference(item_seqs, params, gumbel_noise, *, num_prefers, hidden_size):
    emb = params["emb"]
    x = emb[item_seqs]
    B, S, E = x.shape
    H = hidden_size
    prefers = [jnp.zeros((B, H), jnp.float32)]
    gates = []
    for i in range(num_prefers):
        pre_prefer = sum(prefers)
        h = jnp.zeros((B, H), jnp.float32)
        bg = []
        for j in range(S):
            xj = x[:, j, :]
            pg = jax.nn.sigmoid(xj @ params["wp_t"] + params["bp"]
                                + pre_prefer @ params["up_t"] + params["bup"])
            q = (h @ params["wq_t"] + params["bwq"]
                 + (xj * pg) @ params["uq_t"] + params["buq"])
            leap = jax.nn.log_softmax(q, axis=1)
            y = leap + gumbel_noise[i, j]
            gate = (y[:, 0:1] >= y[:, 1:2]).astype(jnp.float32)
            gi = xj @ params["wih_t"] + params["bih"]
            gh = h @ params["whh_t"] + params["bhh"]
            r = jax.nn.sigmoid(gi[:, :H] + gh[:, :H])
            z = jax.nn.sigmoid(gi[:, H:2 * H] + gh[:, H:2 * H])
            n = jnp.tanh(gi[:, 2 * H:] + r * gh[:, 2 * H:])
            hc = (1.0 - z) * n + z * h
            h = hc * gate + h * (1.0 - gate)
            bg.append(gate)
        prefers.append(h)
        gates.append(jnp.concatenate(bg, axis=1))
    agg = sum(prefers)
    ideal = agg @ params["wout_t"] + params["bout"]
    scores = ideal @ params["emb_t"]
    return jax.nn.log_softmax(scores, axis=1), jnp.stack(gates, axis=1)


def init_params(key, total_items, embed_size, hidden_size):
    V, E, H = total_items, embed_size, hidden_size
    keys = jax.random.split(key, 16)

    def kaiming(k, out_dim, in_dim):
        return jax.random.normal(k, (out_dim, in_dim), jnp.float32) * jnp.sqrt(2.0 / in_dim)

    def unif(k, shape, bound):
        return jax.random.uniform(k, shape, jnp.float32, -bound, bound)

    emb = kaiming(keys[0], V, E)
    wp = kaiming(keys[1], E, E); bp = unif(keys[2], (E,), 1.0 / jnp.sqrt(E))
    up = kaiming(keys[3], E, H); bup = unif(keys[4], (E,), 1.0 / jnp.sqrt(H))
    wq = kaiming(keys[5], 2, H); bwq = unif(keys[6], (2,), 1.0 / jnp.sqrt(H))
    uq = kaiming(keys[7], 2, E); buq = unif(keys[8], (2,), 1.0 / jnp.sqrt(E))
    s = 1.0 / jnp.sqrt(H)
    wih = unif(keys[9], (3 * H, E), s); bih = unif(keys[10], (3 * H,), s)
    whh = unif(keys[11], (3 * H, H), s); bhh = unif(keys[12], (3 * H,), s)
    wout = kaiming(keys[13], E, H); bout = unif(keys[14], (E,), 1.0 / jnp.sqrt(H))

    return dict(
        emb=emb, emb_t=emb.T,
        wp_t=wp.T, bp=bp[None, :],
        up_t=up.T, bup=bup[None, :],
        wq_t=wq.T, bwq=bwq[None, :],
        uq_t=uq.T, buq=buq[None, :],
        wih_t=wih.T, bih=bih[None, :],
        whh_t=whh.T, bhh=bhh[None, :],
        wout_t=wout.T, bout=bout[None, :],
    )


if __name__ == "__main__":
    B, S, E, H = 2, 8, 32, 32           # batch, seq, embed_size, hidden_size
    P, V = 2, 64                        # num_prefers, total_items

    key = jax.random.PRNGKey(0)
    kp, ks, kg = jax.random.split(key, 3)
    params = init_params(kp, V, E, H)
    item_seqs = jax.random.randint(ks, (B, S), 0, V, dtype=jnp.int32)
    # TODO(synk): Gumbel noise for gumbel_softmax is sampled host-side
    # (deterministic key) and fed to the kernel instead of the in-kernel PRNG.
    gumbel_noise = jax.random.gumbel(kg, (P, S, B, 2), dtype=jnp.float32)

    logp, gates = hln_forward(item_seqs, params, gumbel_noise,
                              num_prefers=P, hidden_size=H)
    jax.block_until_ready((logp, gates))

    logp_exp, gates_exp = hln_reference(item_seqs, params, gumbel_noise,
                                        num_prefers=P, hidden_size=H)
    assert logp.shape == (B, V) and gates.shape == (B, P, S)
    assert bool(jnp.all(gates == gates_exp))
    # scoring head runs in bf16 -> slightly looser tolerance than pure f32
    assert bool(jnp.allclose(logp, logp_exp, atol=5e-2, rtol=5e-2))
    print("KERNEL_OK")
</pallas_src>

<mosaic_0001>
module attributes {stable_mosaic.version = 11 : i64} {
  func.func @hln_recurrent_kernel(%arg0: memref<64x32xf32, #tpu.memory_space<vmem>>, %arg1: memref<2x8x8xf32, #tpu.memory_space<vmem>>, %arg2: memref<32x128xf32, #tpu.memory_space<vmem>>, %arg3: memref<1x128xf32, #tpu.memory_space<vmem>>, %arg4: memref<32x32xf32, #tpu.memory_space<vmem>>, %arg5: memref<1x32xf32, #tpu.memory_space<vmem>>, %arg6: memref<1x32xf32, #tpu.memory_space<vmem>>, %arg7: memref<32x96xf32, #tpu.memory_space<vmem>>, %arg8: memref<1x32xf32, #tpu.memory_space<vmem>>, %arg9: memref<1x32xf32, #tpu.memory_space<vmem>>, %arg10: memref<32x32xf32, #tpu.memory_space<vmem>>, %arg11: memref<1x32xf32, #tpu.memory_space<vmem>>, %arg12: memref<8x32xf32, #tpu.memory_space<vmem>>, %arg13: memref<16x8xf32, #tpu.memory_space<vmem>>, %arg14: memref<8x8x96xf32, #tpu.memory_space<vmem>>, %arg15: memref<8x8x32xf32, #tpu.memory_space<vmem>>, %arg16: memref<8x8x32xf32, #tpu.memory_space<vmem>>, %arg17: memref<8x8xf32, #tpu.memory_space<vmem>>, %arg18: memref<8x32xf32, #tpu.memory_space<vmem>>) attributes {dimension_semantics = [], scalar_prefetch = 0 : i64, scratch_operands = 5 : i64, tpu.core_type = #tpu.core_type<tc>} {
    %c0 = arith.constant 0 : index
    %c0_0 = arith.constant 0 : index
    %0 = vector.load %arg0[%c0, %c0_0] : memref<64x32xf32, #tpu.memory_space<vmem>>, vector<64x32xf32>
    %c0_1 = arith.constant 0 : index
    %c0_2 = arith.constant 0 : index
    %1 = vector.load %arg2[%c0_1, %c0_2] : memref<32x128xf32, #tpu.memory_space<vmem>>, vector<32x128xf32>
    %cst = arith.constant dense<0.000000e+00> : vector<64x128xf32>
    %2 = tpu.matmul %0, %1, %cst {dimension_numbers = #tpu.dot_dimension_numbers<[1], [0], [0], [1], [0, 0, 1, 1], [], []>} : vector<64x32xf32>, vector<32x128xf32>, vector<64x128xf32> -> vector<64x128xf32>
    %c0_3 = arith.constant 0 : index
    %c0_4 = arith.constant 0 : index
    %3 = vector.load %arg3[%c0_3, %c0_4] : memref<1x128xf32, #tpu.memory_space<vmem>>, vector<1x128xf32>
    %4 = vector.broadcast %3 : vector<1x128xf32> to vector<64x128xf32>
    %5 = arith.addf %2, %4 : vector<64x128xf32>
    %6 = vector.extract_strided_slice %5 {offsets = [0, 0], sizes = [64, 32], strides = [1, 1]} : vector<64x128xf32> to vector<64x32xf32>
    %7 = vector.shape_cast %6 : vector<64x32xf32> to vector<8x8x32xf32>
    %c0_5 = arith.constant 0 : index
    %c0_6 = arith.constant 0 : index
    %c0_7 = arith.constant 0 : index
    %8 = vector.load %arg15[%c0_5, %c0_6, %c0_7] : memref<8x8x32xf32, #tpu.memory_space<vmem>>, vector<8x8x32xf32>
    tpu.vector_store %arg15[%c0_5, %c0_6, %c0_7], %7 {strides = array<i32>} : memref<8x8x32xf32, #tpu.memory_space<vmem>>, vector<8x8x32xf32>,
    %9 = vector.extract_strided_slice %5 {offsets = [0, 32], sizes = [64, 96], strides = [1, 1]} : vector<64x128xf32> to vector<64x96xf32>
    %10 = vector.shape_cast %9 : vector<64x96xf32> to vector<8x8x96xf32>
    %c0_8 = arith.constant 0 : index
    %c0_9 = arith.constant 0 : index
    %c0_10 = arith.constant 0 : index
    %11 = vector.load %arg14[%c0_8, %c0_9, %c0_10] : memref<8x8x96xf32, #tpu.memory_space<vmem>>, vector<8x8x96xf32>
    tpu.vector_store %arg14[%c0_8, %c0_9, %c0_10], %10 {strides = array<i32>} : memref<8x8x96xf32, #tpu.memory_space<vmem>>, vector<8x8x96xf32>,
    %c0_11 = arith.constant 0 : index
    %c0_12 = arith.constant 0 : index
    %12 = vector.load %arg0[%c0_11, %c0_12] : memref<64x32xf32, #tpu.memory_space<vmem>>, vector<64x32xf32>
    %c0_13 = arith.constant 0 : index
    %c0_14 = arith.constant 0 : index
    %13 = vector.load %arg6[%c0_13, %c0_14] : memref<1x32xf32, #tpu.memory_space<vmem>>, vector<1x32xf32>
    %14 = vector.broadcast %13 : vector<1x32xf32> to vector<64x32xf32>
    %15 = arith.mulf %12, %14 : vector<64x32xf32>
    %16 = vector.shape_cast %15 : vector<64x32xf32> to vector<8x8x32xf32>
    %c0_15 = arith.constant 0 : index
    %c0_16 = arith.constant 0 : index
    %c0_17 = arith.constant 0 : index
    %17 = vector.load %arg16[%c0_15, %c0_16, %c0_17] : memref<8x8x32xf32, #tpu.memory_space<vmem>>, vector<8x8x32xf32>
    tpu.vector_store %arg16[%c0_15, %c0_16, %c0_17], %16 {strides = array<i32>} : memref<8x8x32xf32, #tpu.memory_space<vmem>>, vector<8x8x32xf32>,
    %cst_18 = arith.constant 0.000000e+00 : f32
    %18 = vector.broadcast %cst_18 : f32 to vector<8x32xf32>
    %c0_19 = arith.constant 0 : index
    %c0_20 = arith.constant 0 : index
    %19 = vector.load %arg18[%c0_19, %c0_20] : memref<8x32xf32, #tpu.memory_space<vmem>>, vector<8x32xf32>
    tpu.vector_store %arg18[%c0_19, %c0_20], %18 {strides = array<i32>} : memref<8x32xf32, #tpu.memory_space<vmem>>, vector<8x32xf32>,
    %c0_21 = arith.constant 0 : index
    %c0_22 = arith.constant 0 : index
    %20 = vector.load %arg7[%c0_21, %c0_22] : memref<32x96xf32, #tpu.memory_space<vmem>>, vector<32x96xf32>
    %c0_23 = arith.constant 0 : index
    %c0_24 = arith.constant 0 : index
    %21 = vector.load %arg9[%c0_23, %c0_24] : memref<1x32xf32, #tpu.memory_space<vmem>>, vector<1x32xf32>
    %22 = vector.shape_cast %21 : vector<1x32xf32> to vector<1x32xf32>
    %23 = vector.broadcast %22 : vector<1x32xf32> to vector<8x32xf32>
    %c0_25 = arith.constant 0 : index
    %c0_26 = arith.constant 0 : index
    %24 = vector.load %arg8[%c0_25, %c0_26] : memref<1x32xf32, #tpu.memory_space<vmem>>, vector<1x32xf32>
    %25 = vector.shape_cast %24 : vector<1x32xf32> to vector<1x32xf32>
    %26 = vector.broadcast %25 : vector<1x32xf32> to vector<8x32xf32>
    %27 = tpu.iota {dimensions = array<i32: 0>} : vector<8x8xi32>
    %28 = tpu.iota {dimensions = array<i32: 1>} : vector<8x8xi32>
    %29 = arith.cmpi eq, %27, %28 : vector<8x8xi32>
    %30 = arith.extui %29 : vector<8x8xi1> to vector<8x8xi32>
    %31 = arith.sitofp %30 : vector<8x8xi32> to vector<8x8xf32>
    %c0_27 = arith.constant 0 : index
    %c0_28 = arith.constant 0 : index
    %32 = vector.load %arg18[%c0_27, %c0_28] : memref<8x32xf32, #tpu.memory_space<vmem>>, vector<8x32xf32>
    %c0_29 = arith.constant 0 : index
    %c0_30 = arith.constant 0 : index
    %33 = vector.load %arg4[%c0_29, %c0_30] : memref<32x32xf32, #tpu.memory_space<vmem>>, vector<32x32xf32>
    %cst_31 = arith.constant dense<0.000000e+00> : vector<8x32xf32>
    %34 = tpu.matmul %32, %33, %cst_31 {dimension_numbers = #tpu.dot_dimension_numbers<[1], [0], [0], [1], [0, 0, 1, 1], [], []>} : vector<8x32xf32>, vector<32x32xf32>, vector<8x32xf32> -> vector<8x32xf32>
    %c0_32 = arith.constant 0 : index
    %c0_33 = arith.constant 0 : index
    %35 = vector.load %arg5[%c0_32, %c0_33] : memref<1x32xf32, #tpu.memory_space<vmem>>, vector<1x32xf32>
    %36 = vector.broadcast %35 : vector<1x32xf32> to vector<8x32xf32>
    %37 = arith.addf %34, %36 : vector<8x32xf32>
    %c0_34 = arith.constant 0 : index
    %c0_35 = arith.constant 0 : index
    %c0_36 = arith.constant 0 : index
    %38 = vector.load %arg15[%c0_34, %c0_35, %c0_36] : memref<8x8x32xf32, #tpu.memory_space<vmem>>, vector<8x8x32xf32>
    %39 = vector.shape_cast %37 : vector<8x32xf32> to vector<1x8x32xf32>
    %40 = vector.broadcast %39 : vector<1x8x32xf32> to vector<8x8x32xf32>
    %41 = arith.addf %38, %40 : vector<8x8x32xf32>
    %42 = arith.negf %41 : vector<8x8x32xf32>
    %43 = math.exp %42 : vector<8x8x32xf32>
    %cst_37 = arith.constant 1.000000e+00 : f32
    %44 = vector.broadcast %cst_37 : f32 to vector<8x8x32xf32>
    %45 = arith.addf %44, %43 : vector<8x8x32xf32>
    %46 = arith.divf %44, %45 : vector<8x8x32xf32>
    %c0_38 = arith.constant 0 : index
    %c0_39 = arith.constant 0 : index
    %c0_40 = arith.constant 0 : index
    %47 = vector.load %arg16[%c0_38, %c0_39, %c0_40] : memref<8x8x32xf32, #tpu.memory_space<vmem>>, vector<8x8x32xf32>
    %48 = arith.mulf %47, %46 : vector<8x8x32xf32>
    %cst_41 = arith.constant dense<0.000000e+00> : vector<8x8xf32>
    %49 = vector.multi_reduction <add>, %48, %cst_41 [2] : vector<8x8x32xf32> to vector<8x8xf32>
    %c0_42 = arith.constant 0 : index
    %c0_43 = arith.constant 0 : index
    %c0_44 = arith.constant 0 : index
    %50 = vector.load %arg1[%c0_42, %c0_43, %c0_44] : memref<2x8x8xf32, #tpu.memory_space<vmem>>, vector<1x8x8xf32>
    %51 = vector.shape_cast %50 : vector<1x8x8xf32> to vector<8x8xf32>
    %52 = arith.addf %49, %51 : vector<8x8xf32>
    %c0_45 = arith.constant 0 : index
    %c0_46 = arith.constant 0 : index
    %53 = vector.load %arg17[%c0_45, %c0_46] : memref<8x8xf32, #tpu.memory_space<vmem>>, vector<8x8xf32>
    tpu.vector_store %arg17[%c0_45, %c0_46], %52 {strides = array<i32>} : memref<8x8xf32, #tpu.memory_space<vmem>>, vector<8x8xf32>,
    %cst_47 = arith.constant 0.000000e+00 : f32
    %54 = vector.broadcast %cst_47 : f32 to vector<8x32xf32>
    %c0_i32 = arith.constant 0 : i32
    %55 = arith.index_cast %c0_i32 : i32 to index
    %c0_48 = arith.constant 0 : index
    %c0_49 = arith.constant 0 : index
    %56 = vector.load %arg14[%55, %c0_48, %c0_49] : memref<8x8x96xf32, #tpu.memory_space<vmem>>, vector<1x8x96xf32>
    %57 = vector.shape_cast %56 : vector<1x8x96xf32> to vector<8x96xf32>
    %cst_50 = arith.constant dense<0.000000e+00> : vector<8x96xf32>
    %58 = tpu.matmul %54, %20, %cst_50 {dimension_numbers = #tpu.dot_dimension_numbers<[1], [0], [0], [1], [0, 0, 1, 1], [], []>} : vector<8x32xf32>, vector<32x96xf32>, vector<8x96xf32> -> vector<8x96xf32>
    %59 = arith.mulf %54, %23 : vector<8x32xf32>
    %cst_51 = arith.constant dense<0.000000e+00> : vector<8xf32>
    %60 = vector.multi_reduction <add>, %59, %cst_51 [1] : vector<8x32xf32> to vector<8xf32>
    %61 = vector.shape_cast %60 : vector<8xf32> to vector<8x1xf32>
    %62 = arith.index_cast %c0_i32 : i32 to index
    %c0_52 = arith.constant 0 : index
    %63 = vector.load %arg17[%62, %c0_52] : memref<8x8xf32, #tpu.memory_space<vmem>>, vector<1x8xf32>
    %64 = vector.broadcast %63 : vector<1x8xf32> to vector<8x8xf32>
    %65 = arith.mulf %64, %31 : vector<8x8xf32>
    %cst_53 = arith.constant dense<0.000000e+00> : vector<8xf32>
    %66 = vector.multi_reduction <add>, %65, %cst_53 [1] : vector<8x8xf32> to vector<8xf32>
    %67 = vector.shape_cast %66 : vector<8xf32> to vector<8x1xf32>
    %68 = arith.addf %61, %67 : vector<8x1xf32>
    %cst_54 = arith.constant 0.000000e+00 : f32
    %69 = vector.broadcast %cst_54 : f32 to vector<8x1xf32>
    %70 = arith.cmpf oge, %68, %69 : vector<8x1xf32>
    %71 = vector.extract_strided_slice %57 {offsets = [0, 0], sizes = [8, 32], strides = [1, 1]} : vector<8x96xf32> to vector<8x32xf32>
    %72 = vector.extract_strided_slice %58 {offsets = [0, 0], sizes = [8, 32], strides = [1, 1]} : vector<8x96xf32> to vector<8x32xf32>
    %73 = arith.addf %71, %72 : vector<8x32xf32>
    %74 = arith.negf %73 : vector<8x32xf32>
    %75 = math.exp %74 : vector<8x32xf32>
    %cst_55 = arith.constant 1.000000e+00 : f32
    %76 = vector.broadcast %cst_55 : f32 to vector<8x32xf32>
    %77 = arith.addf %76, %75 : vector<8x32xf32>
    %78 = arith.divf %76, %77 : vector<8x32xf32>
    %79 = vector.extract_strided_slice %57 {offsets = [0, 32], sizes = [8, 32], strides = [1, 1]} : vector<8x96xf32> to vector<8x32xf32>
    %80 = vector.extract_strided_slice %58 {offsets = [0, 32], sizes = [8, 32], strides = [1, 1]} : vector<8x96xf32> to vector<8x32xf32>
    %81 = arith.addf %79, %80 : vector<8x32xf32>
    %82 = arith.negf %81 : vector<8x32xf32>
    %83 = math.exp %82 : vector<8x32xf32>
    %cst_56 = arith.constant 1.000000e+00 : f32
    %84 = vector.broadcast %cst_56 : f32 to vector<8x32xf32>
    %85 = arith.addf %84, %83 : vector<8x32xf32>
    %86 = arith.divf %84, %85 : vector<8x32xf32>
    %87 = vector.extract_strided_slice %57 {offsets = [0, 64], sizes = [8, 32], strides = [1, 1]} : vector<8x96xf32> to vector<8x32xf32>
    %88 = vector.extract_strided_slice %58 {offsets = [0, 64], sizes = [8, 32], strides = [1, 1]} : vector<8x96xf32> to vector<8x32xf32>
    %89 = arith.addf %88, %26 : vector<8x32xf32>
    %90 = arith.mulf %78, %89 : vector<8x32xf32>
    %91 = arith.addf %87, %90 : vector<8x32xf32>
    %92 = math.tanh %91 : vector<8x32xf32>
    %cst_57 = arith.constant 1.000000e+00 : f32
    %93 = vector.broadcast %cst_57 : f32 to vector<8x32xf32>
    %94 = arith.subf %93, %86 : vector<8x32xf32>
    %95 = arith.mulf %94, %92 : vector<8x32xf32>
    %96 = arith.mulf %86, %54 : vector<8x32xf32>
    %97 = arith.addf %95, %96 : vector<8x32xf32>
    %98 = vector.shape_cast %70 : vector<8x1xi1> to vector<8x1xi1>
    %99 = vector.broadcast %98 : vector<8x1xi1> to vector<8x32xi1>
    %100 = arith.select %99, %97, %54 : vector<8x32xi1>, vector<8x32xf32>
    %101 = arith.extui %70 : vector<8x1xi1> to vector<8x1xi32>
    %102 = arith.sitofp %101 : vector<8x1xi32> to vector<8x1xf32>
    %103 = vector.broadcast %102 : vector<8x1xf32> to vector<8x8xf32>
    %104 = arith.mulf %103, %31 : vector<8x8xf32>
    %cst_58 = arith.constant dense<0.000000e+00> : vector<8xf32>
    %105 = vector.multi_reduction <add>, %104, %cst_58 [0] : vector<8x8xf32> to vector<8xf32>
    %106 = vector.shape_cast %105 : vector<8xf32> to vector<1x8xf32>
    %c0_i32_59 = arith.constant 0 : i32
    %107 = arith.addi %c0_i32_59, %c0_i32 : i32
    %108 = arith.index_cast %107 : i32 to index
    %c0_60 = arith.constant 0 : index
    %109 = vector.load %arg13[%108, %c0_60] : memref<16x8xf32, #tpu.memory_space<vmem>>, vector<1x8xf32>
    tpu.vector_store %arg13[%108, %c0_60], %106 {strides = array<i32>} : memref<16x8xf32, #tpu.memory_space<vmem>>, vector<1x8xf32>,
    %c1_i32 = arith.constant 1 : i32
    %110 = arith.index_cast %c1_i32 : i32 to index
    %c0_61 = arith.constant 0 : index
    %c0_62 = arith.constant 0 : index
    %111 = vector.load %arg14[%110, %c0_61, %c0_62] : memref<8x8x96xf32, #tpu.memory_space<vmem>>, vector<1x8x96xf32>
    %112 = vector.shape_cast %111 : vector<1x8x96xf32> to vector<8x96xf32>
    %cst_63 = arith.constant dense<0.000000e+00> : vector<8x96xf32>
    %113 = tpu.matmul %100, %20, %cst_63 {dimension_numbers = #tpu.dot_dimension_numbers<[1], [0], [0], [1], [0, 0, 1, 1], [], []>} : vector<8x32xf32>, vector<32x96xf32>, vector<8x96xf32> -> vector<8x96xf32>
    %114 = arith.mulf %100, %23 : vector<8x32xf32>
    %cst_64 = arith.constant dense<0.000000e+00> : vector<8xf32>
    %115 = vector.multi_reduction <add>, %114, %cst_64 [1] : vector<8x32xf32> to vector<8xf32>
    %116 = vector.shape_cast %115 : vector<8xf32> to vector<8x1xf32>
    %117 = arith.index_cast %c1_i32 : i32 to index
    %c0_65 = arith.constant 0 : index
    %118 = vector.load %arg17[%117, %c0_65] : memref<8x8xf32, #tpu.memory_space<vmem>>, vector<1x8xf32>
    %119 = vector.broadcast %118 : vector<1x8xf32> to vector<8x8xf32>
    %120 = arith.mulf %119, %31 : vector<8x8xf32>
    %cst_66 = arith.constant dense<0.000000e+00> : vector<8xf32>
    %121 = vector.multi_reduction <add>, %120, %cst_66 [1] : vector<8x8xf32> to vector<8xf32>
    %122 = vector.shape_cast %121 : vector<8xf32> to vector<8x1xf32>
    %123 = arith.addf %116, %122 : vector<8x1xf32>
    %cst_67 = arith.constant 0.000000e+00 : f32
    %124 = vector.broadcast %cst_67 : f32 to vector<8x1xf32>
    %125 = arith.cmpf oge, %123, %124 : vector<8x1xf32>
    %126 = vector.extract_strided_slice %112 {offsets = [0, 0], sizes = [8, 32], strides = [1, 1]} : vector<8x96xf32> to vector<8x32xf32>
    %127 = vector.extract_strided_slice %113 {offsets = [0, 0], sizes = [8, 32], strides = [1, 1]} : vector<8x96xf32> to vector<8x32xf32>
    %128 = arith.addf %126, %127 : vector<8x32xf32>
    %129 = arith.negf %128 : vector<8x32xf32>
    %130 = math.exp %129 : vector<8x32xf32>
    %cst_68 = arith.constant 1.000000e+00 : f32
    %131 = vector.broadcast %cst_68 : f32 to vector<8x32xf32>
    %132 = arith.addf %131, %130 : vector<8x32xf32>
    %133 = arith.divf %131, %132 : vector<8x32xf32>
    %134 = vector.extract_strided_slice %112 {offsets = [0, 32], sizes = [8, 32], strides = [1, 1]} : vector<8x96xf32> to vector<8x32xf32>
    %135 = vector.extract_strided_slice %113 {offsets = [0, 32], sizes = [8, 32], strides = [1, 1]} : vector<8x96xf32> to vector<8x32xf32>
    %136 = arith.addf %134, %135 : vector<8x32xf32>
    %137 = arith.negf %136 : vector<8x32xf32>
    %138 = math.exp %137 : vector<8x32xf32>
    %cst_69 = arith.constant 1.000000e+00 : f32
    %139 = vector.broadcast %cst_69 : f32 to vector<8x32xf32>
    %140 = arith.addf %139, %138 : vector<8x32xf32>
    %141 = arith.divf %139, %140 : vector<8x32xf32>
    %142 = vector.extract_strided_slice %112 {offsets = [0, 64], sizes = [8, 32], strides = [1, 1]} : vector<8x96xf32> to vector<8x32xf32>
    %143 = vector.extract_strided_slice %113 {offsets = [0, 64], sizes = [8, 32], strides = [1, 1]} : vector<8x96xf32> to vector<8x32xf32>
    %144 = arith.addf %143, %26 : vector<8x32xf32>
    %145 = arith.mulf %133, %144 : vector<8x32xf32>
    %146 = arith.addf %142, %145 : vector<8x32xf32>
    %147 = math.tanh %146 : vector<8x32xf32>
    %cst_70 = arith.constant 1.000000e+00 : f32
    %148 = vector.broadcast %cst_70 : f32 to vector<8x32xf32>
    %149 = arith.subf %148, %141 : vector<8x32xf32>
    %150 = arith.mulf %149, %147 : vector<8x32xf32>
    %151 = arith.mulf %141, %100 : vector<8x32xf32>
    %152 = arith.addf %150, %151 : vector<8x32xf32>
    %153 = vector.shape_cast %125 : vector<8x1xi1> to vector<8x1xi1>
    %154 = vector.broadcast %153 : vector<8x1xi1> to vector<8x32xi1>
    %155 = arith.select %154, %152, %100 : vector<8x32xi1>, vector<8x32xf32>
    %156 = arith.extui %125 : vector<8x1xi1> to vector<8x1xi32>
    %157 = arith.sitofp %156 : vector<8x1xi32> to vector<8x1xf32>
    %158 = vector.broadcast %157 : vector<8x1xf32> to vector<8x8xf32>
    %159 = arith.mulf %158, %31 : vector<8x8xf32>
    %cst_71 = arith.constant dense<0.000000e+00> : vector<8xf32>
    %160 = vector.multi_reduction <add>, %159, %cst_71 [0] : vector<8x8xf32> to vector<8xf32>
    %161 = vector.shape_cast %160 : vector<8xf32> to vector<1x8xf32>
    %c0_i32_72 = arith.constant 0 : i32
    %162 = arith.addi %c0_i32_72, %c1_i32 : i32
    %163 = arith.index_cast %162 : i32 to index
    %c0_73 = arith.constant 0 : index
    %164 = vector.load %arg13[%163, %c0_73] : memref<16x8xf32, #tpu.memory_space<vmem>>, vector<1x8xf32>
    tpu.vector_store %arg13[%163, %c0_73], %161 {strides = array<i32>} : memref<16x8xf32, #tpu.memory_space<vmem>>, vector<1x8xf32>,
    %c2_i32 = arith.constant 2 : i32
    %165 = arith.index_cast %c2_i32 : i32 to index
    %c0_74 = arith.constant 0 : index
    %c0_75 = arith.constant 0 : index
    %166 = vector.load %arg14[%165, %c0_74, %c0_75] : memref<8x8x96xf32, #tpu.memory_space<vmem>>, vector<1x8x96xf32>
    %167 = vector.shape_cast %166 : vector<1x8x96xf32> to vector<8x96xf32>
    %cst_76 = arith.constant dense<0.000000e+00> : vector<8x96xf32>
    %168 = tpu.matmul %155, %20, %cst_76 {dimension_numbers = #tpu.dot_dimension_numbers<[1], [0], [0], [1], [0, 0, 1, 1], [], []>} : vector<8x32xf32>, vector<32x96xf32>, vector<8x96xf32> -> vector<8x96xf32>
    %169 = arith.mulf %155, %23 : vector<8x32xf32>
    %cst_77 = arith.constant dense<0.000000e+00> : vector<8xf32>
    %170 = vector.multi_reduction <add>, %169, %cst_77 [1] : vector<8x32xf32> to vector<8xf32>
    %171 = vector.shape_cast %170 : vector<8xf32> to vector<8x1xf32>
    %172 = arith.index_cast %c2_i32 : i32 to index
    %c0_78 = arith.constant 0 : index
    %173 = vector.load %arg17[%172, %c0_78] : memref<8x8xf32, #tpu.memory_space<vmem>>, vector<1x8xf32>
    %174 = vector.broadcast %173 : vector<1x8xf32> to vector<8x8xf32>
    %175 = arith.mulf %174, %31 : vector<8x8xf32>
    %cst_79 = arith.constant dense<0.000000e+00> : vector<8xf32>
    %176 = vector.multi_reduction <add>, %175, %cst_79 [1] : vector<8x8xf32> to vector<8xf32>
    %177 = vector.shape_cast %176 : vector<8xf32> to vector<8x1xf32>
    %178 = arith.addf %171, %177 : vector<8x1xf32>
    %cst_80 = arith.constant 0.000000e+00 : f32
    %179 = vector.broadcast %cst_80 : f32 to vector<8x1xf32>
    %180 = arith.cmpf oge, %178, %179 : vector<8x1xf32>
    %181 = vector.extract_strided_slice %167 {offsets = [0, 0], sizes = [8, 32], strides = [1, 1]} : vector<8x96xf32> to vector<8x32xf32>
    %182 = vector.extract_strided_slice %168 {offsets = [0, 0], sizes = [8, 32], strides = [1, 1]} : vector<8x96xf32> to vector<8x32xf32>
    %183 = arith.addf %181, %182 : vector<8x32xf32>
    %184 = arith.negf %183 : vector<8x32xf32>
    %185 = math.exp %184 : vector<8x32xf32>
    %cst_81 = arith.constant 1.000000e+00 : f32
    %186 = vector.broadcast %cst_81 : f32 to vector<8x32xf32>
    %187 = arith.addf %186, %185 : vector<8x32xf32>
    %188 = arith.divf %186, %187 : vector<8x32xf32>
    %189 = vector.extract_strided_slice %167 {offsets = [0, 32], sizes = [8, 32], strides = [1, 1]} : vector<8x96xf32> to vector<8x32xf32>
    %190 = vector.extract_strided_slice %168 {offsets = [0, 32], sizes = [8, 32], strides = [1, 1]} : vector<8x96xf32> to vector<8x32xf32>
    %191 = arith.addf %189, %190 : vector<8x32xf32>
    %192 = arith.negf %191 : vector<8x32xf32>
    %193 = math.exp %192 : vector<8x32xf32>
    %cst_82 = arith.constant 1.000000e+00 : f32
    %194 = vector.broadcast %cst_82 : f32 to vector<8x32xf32>
    %195 = arith.addf %194, %193 : vector<8x32xf32>
    %196 = arith.divf %194, %195 : vector<8x32xf32>
    %197 = vector.extract_strided_slice %167 {offsets = [0, 64], sizes = [8, 32], strides = [1, 1]} : vector<8x96xf32> to vector<8x32xf32>
    %198 = vector.extract_strided_slice %168 {offsets = [0, 64], sizes = [8, 32], strides = [1, 1]} : vector<8x96xf32> to vector<8x32xf32>
    %199 = arith.addf %198, %26 : vector<8x32xf32>
    %200 = arith.mulf %188, %199 : vector<8x32xf32>
    %201 = arith.addf %197, %200 : vector<8x32xf32>
    %202 = math.tanh %201 : vector<8x32xf32>
    %cst_83 = arith.constant 1.000000e+00 : f32
    %203 = vector.broadcast %cst_83 : f32 to vector<8x32xf32>
    %204 = arith.subf %203, %196 : vector<8x32xf32>
    %205 = arith.mulf %204, %202 : vector<8x32xf32>
    %206 = arith.mulf %196, %155 : vector<8x32xf32>
    %207 = arith.addf %205, %206 : vector<8x32xf32>
    %208 = vector.shape_cast %180 : vector<8x1xi1> to vector<8x1xi1>
    %209 = vector.broadcast %208 : vector<8x1xi1> to vector<8x32xi1>
    %210 = arith.select %209, %207, %155 : vector<8x32xi1>, vector<8x32xf32>
    %211 = arith.extui %180 : vector<8x1xi1> to vector<8x1xi32>
    %212 = arith.sitofp %211 : vector<8x1xi32> to vector<8x1xf32>
    %213 = vector.broadcast %212 : vector<8x1xf32> to vector<8x8xf32>
    %214 = arith.mulf %213, %31 : vector<8x8xf32>
    %cst_84 = arith.constant dense<0.000000e+00> : vector<8xf32>
    %215 = vector.multi_reduction <add>, %214, %cst_84 [0] : vector<8x8xf32> to vector<8xf32>
    %216 = vector.shape_cast %215 : vector<8xf32> to vector<1x8xf32>
    %c0_i32_85 = arith.constant 0 : i32
    %217 = arith.addi %c0_i32_85, %c2_i32 : i32
    %218 = arith.index_cast %217 : i32 to index
    %c0_86 = arith.constant 0 : index
    %219 = vector.load %arg13[%218, %c0_86] : memref<16x8xf32, #tpu.memory_space<vmem>>, vector<1x8xf32>
    tpu.vector_store %arg13[%218, %c0_86], %216 {strides = array<i32>} : memref<16x8xf32, #tpu.memory_space<vmem>>, vector<1x8xf32>,
    %c3_i32 = arith.constant 3 : i32
    %220 = arith.index_cast %c3_i32 : i32 to index
    %c0_87 = arith.constant 0 : index
    %c0_88 = arith.constant 0 : index
    %221 = vector.load %arg14[%220, %c0_87, %c0_88] : memref<8x8x96xf32, #tpu.memory_space<vmem>>, vector<1x8x96xf32>
    %222 = vector.shape_cast %221 : vector<1x8x96xf32> to vector<8x96xf32>
    %cst_89 = arith.constant dense<0.000000e+00> : vector<8x96xf32>
    %223 = tpu.matmul %210, %20, %cst_89 {dimension_numbers = #tpu.dot_dimension_numbers<[1], [0], [0], [1], [0, 0, 1, 1], [], []>} : vector<8x32xf32>, vector<32x96xf32>, vector<8x96xf32> -> vector<8x96xf32>
    %224 = arith.mulf %210, %23 : vector<8x32xf32>
    %cst_90 = arith.constant dense<0.000000e+00> : vector<8xf32>
    %225 = vector.multi_reduction <add>, %224, %cst_90 [1] : vector<8x32xf32> to vector<8xf32>
    %226 = vector.shape_cast %225 : vector<8xf32> to vector<8x1xf32>
    %227 = arith.index_cast %c3_i32 : i32 to index
    %c0_91 = arith.constant 0 : index
    %228 = vector.load %arg17[%227, %c0_91] : memref<8x8xf32, #tpu.memory_space<vmem>>, vector<1x8xf32>
    %229 = vector.broadcast %228 : vector<1x8xf32> to vector<8x8xf32>
    %230 = arith.mulf %229, %31 : vector<8x8xf32>
    %cst_92 = arith.constant dense<0.000000e+00> : vector<8xf32>
    %231 = vector.multi_reduction <add>, %230, %cst_92 [1] : vector<8x8xf32> to vector<8xf32>
    %232 = vector.shape_cast %231 : vector<8xf32> to vector<8x1xf32>
    %233 = arith.addf %226, %232 : vector<8x1xf32>
    %cst_93 = arith.constant 0.000000e+00 : f32
    %234 = vector.broadcast %cst_93 : f32 to vector<8x1xf32>
    %235 = arith.cmpf oge, %233, %234 : vector<8x1xf32>
    %236 = vector.extract_strided_slice %222 {offsets = [0, 0], sizes = [8, 32], strides = [1, 1]} : vector<8x96xf32> to vector<8x32xf32>
    %237 = vector.extract_strided_slice %223 {offsets = [0, 0], sizes = [8, 32], strides = [1, 1]} : vector<8x96xf32> to vector<8x32xf32>
    %238 = arith.addf %236, %237 : vector<8x32xf32>
    %239 = arith.negf %238 : vector<8x32xf32>
    %240 = math.exp %239 : vector<8x32xf32>
    %cst_94 = arith.constant 1.000000e+00 : f32
    %241 = vector.broadcast %cst_94 : f32 to vector<8x32xf32>
    %242 = arith.addf %241, %240 : vector<8x32xf32>
    %243 = arith.divf %241, %242 : vector<8x32xf32>
    %244 = vector.extract_strided_slice %222 {offsets = [0, 32], sizes = [8, 32], strides = [1, 1]} : vector<8x96xf32> to vector<8x32xf32>
    %245 = vector.extract_strided_slice %223 {offsets = [0, 32], sizes = [8, 32], strides = [1, 1]} : vector<8x96xf32> to vector<8x32xf32>
    %246 = arith.addf %244, %245 : vector<8x32xf32>
    %247 = arith.negf %246 : vector<8x32xf32>
    %248 = math.exp %247 : vector<8x32xf32>
    %cst_95 = arith.constant 1.000000e+00 : f32
    %249 = vector.broadcast %cst_95 : f32 to vector<8x32xf32>
    %250 = arith.addf %249, %248 : vector<8x32xf32>
    %251 = arith.divf %249, %250 : vector<8x32xf32>
    %252 = vector.extract_strided_slice %222 {offsets = [0, 64], sizes = [8, 32], strides = [1, 1]} : vector<8x96xf32> to vector<8x32xf32>
    %253 = vector.extract_strided_slice %223 {offsets = [0, 64], sizes = [8, 32], strides = [1, 1]} : vector<8x96xf32> to vector<8x32xf32>
    %254 = arith.addf %253, %26 : vector<8x32xf32>
    %255 = arith.mulf %243, %254 : vector<8x32xf32>
    %256 = arith.addf %252, %255 : vector<8x32xf32>
    %257 = math.tanh %256 : vector<8x32xf32>
    %cst_96 = arith.constant 1.000000e+00 : f32
    %258 = vector.broadcast %cst_96 : f32 to vector<8x32xf32>
    %259 = arith.subf %258, %251 : vector<8x32xf32>
    %260 = arith.mulf %259, %257 : vector<8x32xf32>
    %261 = arith.mulf %251, %210 : vector<8x32xf32>
    %262 = arith.addf %260, %261 : vector<8x32xf32>
    %263 = vector.shape_cast %235 : vector<8x1xi1> to vector<8x1xi1>
    %264 = vector.broadcast %263 : vector<8x1xi1> to vector<8x32xi1>
    %265 = arith.select %264, %262, %210 : vector<8x32xi1>, vector<8x32xf32>
    %266 = arith.extui %235 : vector<8x1xi1> to vector<8x1xi32>
    %267 = arith.sitofp %266 : vector<8x1xi32> to vector<8x1xf32>
    %268 = vector.broadcast %267 : vector<8x1xf32> to vector<8x8xf32>
    %269 = arith.mulf %268, %31 : vector<8x8xf32>
    %cst_97 = arith.constant dense<0.000000e+00> : vector<8xf32>
    %270 = vector.multi_reduction <add>, %269, %cst_97 [0] : vector<8x8xf32> to vector<8xf32>
    %271 = vector.shape_cast %270 : vector<8xf32> to vector<1x8xf32>
    %c0_i32_98 = arith.constant 0 : i32
    %272 = arith.addi %c0_i32_98, %c3_i32 : i32
    %273 = arith.index_cast %272 : i32 to index
    %c0_99 = arith.constant 0 : index
    %274 = vector.load %arg13[%273, %c0_99] : memref<16x8xf32, #tpu.memory_space<vmem>>, vector<1x8xf32>
    tpu.vector_store %arg13[%273, %c0_99], %271 {strides = array<i32>} : memref<16x8xf32, #tpu.memory_space<vmem>>, vector<1x8xf32>,
    %c4_i32 = arith.constant 4 : i32
    %275 = arith.index_cast %c4_i32 : i32 to index
    %c0_100 = arith.constant 0 : index
    %c0_101 = arith.constant 0 : index
    %276 = vector.load %arg14[%275, %c0_100, %c0_101] : memref<8x8x96xf32, #tpu.memory_space<vmem>>, vector<1x8x96xf32>
    %277 = vector.shape_cast %276 : vector<1x8x96xf32> to vector<8x96xf32>
    %cst_102 = arith.constant dense<0.000000e+00> : vector<8x96xf32>
    %278 = tpu.matmul %265, %20, %cst_102 {dimension_numbers = #tpu.dot_dimension_numbers<[1], [0], [0], [1], [0, 0, 1, 1], [], []>} : vector<8x32xf32>, vector<32x96xf32>, vector<8x96xf32> -> vector<8x96xf32>
    %279 = arith.mulf %265, %23 : vector<8x32xf32>
    %cst_103 = arith.constant dense<0.000000e+00> : vector<8xf32>
    %280 = vector.multi_reduction <add>, %279, %cst_103 [1] : vector<8x32xf32> to vector<8xf32>
    %281 = vector.shape_cast %280 : vector<8xf32> to vector<8x1xf32>
    %282 = arith.index_cast %c4_i32 : i32 to index
    %c0_104 = arith.constant 0 : index
    %283 = vector.load %arg17[%282, %c0_104] : memref<8x8xf32, #tpu.memory_space<vmem>>, vector<1x8xf32>
    %284 = vector.broadcast %283 : vector<1x8xf32> to vector<8x8xf32>
    %285 = arith.mulf %284, %31 : vector<8x8xf32>
    %cst_105 = arith.constant dense<0.000000e+00> : vector<8xf32>
    %286 = vector.multi_reduction <add>, %285, %cst_105 [1] : vector<8x8xf32> to vector<8xf32>
    %287 = vector.shape_cast %286 : vector<8xf32> to vector<8x1xf32>
    %288 = arith.addf %281, %287 : vector<8x1xf32>
    %cst_106 = arith.constant 0.000000e+00 : f32
    %289 = vector.broadcast %cst_106 : f32 to vector<8x1xf32>
    %290 = arith.cmpf oge, %288, %289 : vector<8x1xf32>
    %291 = vector.extract_strided_slice %277 {offsets = [0, 0], sizes = [8, 32], strides = [1, 1]} : vector<8x96xf32> to vector<8x32xf32>
    %292 = vector.extract_strided_slice %278 {offsets = [0, 0], sizes = [8, 32], strides = [1, 1]} : vector<8x96xf32> to vector<8x32xf32>
    %293 = arith.addf %291, %292 : vector<8x32xf32>
    %294 = arith.negf %293 : vector<8x32xf32>
    %295 = math.exp %294 : vector<8x32xf32>
    %cst_107 = arith.constant 1.000000e+00 : f32
    %296 = vector.broadcast %cst_107 : f32 to vector<8x32xf32>
    %297 = arith.addf %296, %295 : vector<8x32xf32>
    %298 = arith.divf %296, %297 : vector<8x32xf32>
    %299 = vector.extract_strided_slice %277 {offsets = [0, 32], sizes = [8, 32], strides = [1, 1]} : vector<8x96xf32> to vector<8x32xf32>
    %300 = vector.extract_strided_slice %278 {offsets = [0, 32], sizes = [8, 32], strides = [1, 1]} : vector<8x96xf32> to vector<8x32xf32>
    %301 = arith.addf %299, %300 : vector<8x32xf32>
    %302 = arith.negf %301 : vector<8x32xf32>
    %303 = math.exp %302 : vector<8x32xf32>
    %cst_108 = arith.constant 1.000000e+00 : f32
    %304 = vector.broadcast %cst_108 : f32 to vector<8x32xf32>
    %305 = arith.addf %304, %303 : vector<8x32xf32>
    %306 = arith.divf %304, %305 : vector<8x32xf32>
    %307 = vector.extract_strided_slice %277 {offsets = [0, 64], sizes = [8, 32], strides = [1, 1]} : vector<8x96xf32> to vector<8x32xf32>
    %308 = vector.extract_strided_slice %278 {offsets = [0, 64], sizes = [8, 32], strides = [1, 1]} : vector<8x96xf32> to vector<8x32xf32>
    %309 = arith.addf %308, %26 : vector<8x32xf32>
    %310 = arith.mulf %298, %309 : vector<8x32xf32>
    %311 = arith.addf %307, %310 : vector<8x32xf32>
    %312 = math.tanh %311 : vector<8x32xf32>
    %cst_109 = arith.constant 1.000000e+00 : f32
    %313 = vector.broadcast %cst_109 : f32 to vector<8x32xf32>
    %314 = arith.subf %313, %306 : vector<8x32xf32>
    %315 = arith.mulf %314, %312 : vector<8x32xf32>
    %316 = arith.mulf %306, %265 : vector<8x32xf32>
    %317 = arith.addf %315, %316 : vector<8x32xf32>
    %318 = vector.shape_cast %290 : vector<8x1xi1> to vector<8x1xi1>
    %319 = vector.broadcast %318 : vector<8x1xi1> to vector<8x32xi1>
    %320 = arith.select %319, %317, %265 : vector<8x32xi1>, vector<8x32xf32>
    %321 = arith.extui %290 : vector<8x1xi1> to vector<8x1xi32>
    %322 = arith.sitofp %321 : vector<8x1xi32> to vector<8x1xf32>
    %323 = vector.broadcast %322 : vector<8x1xf32> to vector<8x8xf32>
    %324 = arith.mulf %323, %31 : vector<8x8xf32>
    %cst_110 = arith.constant dense<0.000000e+00> : vector<8xf32>
    %325 = vector.multi_reduction <add>, %324, %cst_110 [0] : vector<8x8xf32> to vector<8xf32>
    %326 = vector.shape_cast %325 : vector<8xf32> to vector<1x8xf32>
    %c0_i32_111 = arith.constant 0 : i32
    %327 = arith.addi %c0_i32_111, %c4_i32 : i32
    %328 = arith.index_cast %327 : i32 to index
    %c0_112 = arith.constant 0 : index
    %329 = vector.load %arg13[%328, %c0_112] : memref<16x8xf32, #tpu.memory_space<vmem>>, vector<1x8xf32>
    tpu.vector_store %arg13[%328, %c0_112], %326 {strides = array<i32>} : memref<16x8xf32, #tpu.memory_space<vmem>>, vector<1x8xf32>,
    %c5_i32 = arith.constant 5 : i32
    %330 = arith.index_cast %c5_i32 : i32 to index
    %c0_113 = arith.constant 0 : index
    %c0_114 = arith.constant 0 : index
    %331 = vector.load %arg14[%330, %c0_113, %c0_114] : memref<8x8x96xf32, #tpu.memory_space<vmem>>, vector<1x8x96xf32>
    %332 = vector.shape_cast %331 : vector<1x8x96xf32> to vector<8x96xf32>
    %cst_115 = arith.constant dense<0.000000e+00> : vector<8x96xf32>
    %333 = tpu.matmul %320, %20, %cst_115 {dimension_numbers = #tpu.dot_dimension_numbers<[1], [0], [0], [1], [0, 0, 1, 1], [], []>} : vector<8x32xf32>, vector<32x96xf32>, vector<8x96xf32> -> vector<8x96xf32>
    %334 = arith.mulf %320, %23 : vector<8x32xf32>
    %cst_116 = arith.constant dense<0.000000e+00> : vector<8xf32>
    %335 = vector.multi_reduction <add>, %334, %cst_116 [1] : vector<8x32xf32> to vector<8xf32>
    %336 = vector.shape_cast %335 : vector<8xf32> to vector<8x1xf32>
    %337 = arith.index_cast %c5_i32 : i32 to index
    %c0_117 = arith.constant 0 : index
    %338 = vector.load %arg17[%337, %c0_117] : memref<8x8xf32, #tpu.memory_space<vmem>>, vector<1x8xf32>
    %339 = vector.broadcast %338 : vector<1x8xf32> to vector<8x8xf32>
    %340 = arith.mulf %339, %31 : vector<8x8xf32>
    %cst_118 = arith.constant dense<0.000000e+00> : vector<8xf32>
    %341 = vector.multi_reduction <add>, %340, %cst_118 [1] : vector<8x8xf32> to vector<8xf32>
    %342 = vector.shape_cast %341 : vector<8xf32> to vector<8x1xf32>
    %343 = arith.addf %336, %342 : vector<8x1xf32>
    %cst_119 = arith.constant 0.000000e+00 : f32
    %344 = vector.broadcast %cst_119 : f32 to vector<8x1xf32>
    %345 = arith.cmpf oge, %343, %344 : vector<8x1xf32>
    %346 = vector.extract_strided_slice %332 {offsets = [0, 0], sizes = [8, 32], strides = [1, 1]} : vector<8x96xf32> to vector<8x32xf32>
    %347 = vector.extract_strided_slice %333 {offsets = [0, 0], sizes = [8, 32], strides = [1, 1]} : vector<8x96xf32> to vector<8x32xf32>
    %348 = arith.addf %346, %347 : vector<8x32xf32>
    %349 = arith.negf %348 : vector<8x32xf32>
    %350 = math.exp %349 : vector<8x32xf32>
    %cst_120 = arith.constant 1.000000e+00 : f32
    %351 = vector.broadcast %cst_120 : f32 to vector<8x32xf32>
    %352 = arith.addf %351, %350 : vector<8x32xf32>
    %353 = arith.divf %351, %352 : vector<8x32xf32>
    %354 = vector.extract_strided_slice %332 {offsets = [0, 32], sizes = [8, 32], strides = [1, 1]} : vector<8x96xf32> to vector<8x32xf32>
    %355 = vector.extract_strided_slice %333 {offsets = [0, 32], sizes = [8, 32], strides = [1, 1]} : vector<8x96xf32> to vector<8x32xf32>
    %356 = arith.addf %354, %355 : vector<8x32xf32>
    %357 = arith.negf %356 : vector<8x32xf32>
    %358 = math.exp %357 : vector<8x32xf32>
    %cst_121 = arith.constant 1.000000e+00 : f32
    %359 = vector.broadcast %cst_121 : f32 to vector<8x32xf32>
    %360 = arith.addf %359, %358 : vector<8x32xf32>
    %361 = arith.divf %359, %360 : vector<8x32xf32>
    %362 = vector.extract_strided_slice %332 {offsets = [0, 64], sizes = [8, 32], strides = [1, 1]} : vector<8x96xf32> to vector<8x32xf32>
    %363 = vector.extract_strided_slice %333 {offsets = [0, 64], sizes = [8, 32], strides = [1, 1]} : vector<8x96xf32> to vector<8x32xf32>
    %364 = arith.addf %363, %26 : vector<8x32xf32>
    %365 = arith.mulf %353, %364 : vector<8x32xf32>
    %366 = arith.addf %362, %365 : vector<8x32xf32>
    %367 = math.tanh %366 : vector<8x32xf32>
    %cst_122 = arith.constant 1.000000e+00 : f32
    %368 = vector.broadcast %cst_122 : f32 to vector<8x32xf32>
    %369 = arith.subf %368, %361 : vector<8x32xf32>
    %370 = arith.mulf %369, %367 : vector<8x32xf32>
    %371 = arith.mulf %361, %320 : vector<8x32xf32>
    %372 = arith.addf %370, %371 : vector<8x32xf32>
    %373 = vector.shape_cast %345 : vector<8x1xi1> to vector<8x1xi1>
    %374 = vector.broadcast %373 : vector<8x1xi1> to vector<8x32xi1>
    %375 = arith.select %374, %372, %320 : vector<8x32xi1>, vector<8x32xf32>
    %376 = arith.extui %345 : vector<8x1xi1> to vector<8x1xi32>
    %377 = arith.sitofp %376 : vector<8x1xi32> to vector<8x1xf32>
    %378 = vector.broadcast %377 : vector<8x1xf32> to vector<8x8xf32>
    %379 = arith.mulf %378, %31 : vector<8x8xf32>
    %cst_123 = arith.constant dense<0.000000e+00> : vector<8xf32>
    %380 = vector.multi_reduction <add>, %379, %cst_123 [0] : vector<8x8xf32> to vector<8xf32>
    %381 = vector.shape_cast %380 : vector<8xf32> to vector<1x8xf32>
    %c0_i32_124 = arith.constant 0 : i32
    %382 = arith.addi %c0_i32_124, %c5_i32 : i32
    %383 = arith.index_cast %382 : i32 to index
    %c0_125 = arith.constant 0 : index
    %384 = vector.load %arg13[%383, %c0_125] : memref<16x8xf32, #tpu.memory_space<vmem>>, vector<1x8xf32>
    tpu.vector_store %arg13[%383, %c0_125], %381 {strides = array<i32>} : memref<16x8xf32, #tpu.memory_space<vmem>>, vector<1x8xf32>,
    %c6_i32 = arith.constant 6 : i32
    %385 = arith.index_cast %c6_i32 : i32 to index
    %c0_126 = arith.constant 0 : index
    %c0_127 = arith.constant 0 : index
    %386 = vector.load %arg14[%385, %c0_126, %c0_127] : memref<8x8x96xf32, #tpu.memory_space<vmem>>, vector<1x8x96xf32>
    %387 = vector.shape_cast %386 : vector<1x8x96xf32> to vector<8x96xf32>
    %cst_128 = arith.constant dense<0.000000e+00> : vector<8x96xf32>
    %388 = tpu.matmul %375, %20, %cst_128 {dimension_numbers = #tpu.dot_dimension_numbers<[1], [0], [0], [1], [0, 0, 1, 1], [], []>} : vector<8x32xf32>, vector<32x96xf32>, vector<8x96xf32> -> vector<8x96xf32>
    %389 = arith.mulf %375, %23 : vector<8x32xf32>
    %cst_129 = arith.constant dense<0.000000e+00> : vector<8xf32>
    %390 = vector.multi_reduction <add>, %389, %cst_129 [1] : vector<8x32xf32> to vector<8xf32>
    %391 = vector.shape_cast %390 : vector<8xf32> to vector<8x1xf32>
    %392 = arith.index_cast %c6_i32 : i32 to index
    %c0_130 = arith.constant 0 : index
    %393 = vector.load %arg17[%392, %c0_130] : memref<8x8xf32, #tpu.memory_space<vmem>>, vector<1x8xf32>
    %394 = vector.broadcast %393 : vector<1x8xf32> to vector<8x8xf32>
    %395 = arith.mulf %394, %31 : vector<8x8xf32>
    %cst_131 = arith.constant dense<0.000000e+00> : vector<8xf32>
    %396 = vector.multi_reduction <add>, %395, %cst_131 [1] : vector<8x8xf32> to vector<8xf32>
    %397 = vector.shape_cast %396 : vector<8xf32> to vector<8x1xf32>
    %398 = arith.addf %391, %397 : vector<8x1xf32>
    %cst_132 = arith.constant 0.000000e+00 : f32
    %399 = vector.broadcast %cst_132 : f32 to vector<8x1xf32>
    %400 = arith.cmpf oge, %398, %399 : vector<8x1xf32>
    %401 = vector.extract_strided_slice %387 {offsets = [0, 0], sizes = [8, 32], strides = [1, 1]} : vector<8x96xf32> to vector<8x32xf32>
    %402 = vector.extract_strided_slice %388 {offsets = [0, 0], sizes = [8, 32], strides = [1, 1]} : vector<8x96xf32> to vector<8x32xf32>
    %403 = arith.addf %401, %402 : vector<8x32xf32>
    %404 = arith.negf %403 : vector<8x32xf32>
    %405 = math.exp %404 : vector<8x32xf32>
    %cst_133 = arith.constant 1.000000e+00 : f32
    %406 = vector.broadcast %cst_133 : f32 to vector<8x32xf32>
    %407 = arith.addf %406, %405 : vector<8x32xf32>
    %408 = arith.divf %406, %407 : vector<8x32xf32>
    %409 = vector.extract_strided_slice %387 {offsets = [0, 32], sizes = [8, 32], strides = [1, 1]} : vector<8x96xf32> to vector<8x32xf32>
    %410 = vector.extract_strided_slice %388 {offsets = [0, 32], sizes = [8, 32], strides = [1, 1]} : vector<8x96xf32> to vector<8x32xf32>
    %411 = arith.addf %409, %410 : vector<8x32xf32>
    %412 = arith.negf %411 : vector<8x32xf32>
    %413 = math.exp %412 : vector<8x32xf32>
    %cst_134 = arith.constant 1.000000e+00 : f32
    %414 = vector.broadcast %cst_134 : f32 to vector<8x32xf32>
    %415 = arith.addf %414, %413 : vector<8x32xf32>
    %416 = arith.divf %414, %415 : vector<8x32xf32>
    %417 = vector.extract_strided_slice %387 {offsets = [0, 64], sizes = [8, 32], strides = [1, 1]} : vector<8x96xf32> to vector<8x32xf32>
    %418 = vector.extract_strided_slice %388 {offsets = [0, 64], sizes = [8, 32], strides = [1, 1]} : vector<8x96xf32> to vector<8x32xf32>
    %419 = arith.addf %418, %26 : vector<8x32xf32>
    %420 = arith.mulf %408, %419 : vector<8x32xf32>
    %421 = arith.addf %417, %420 : vector<8x32xf32>
    %422 = math.tanh %421 : vector<8x32xf32>
    %cst_135 = arith.constant 1.000000e+00 : f32
    %423 = vector.broadcast %cst_135 : f32 to vector<8x32xf32>
    %424 = arith.subf %423, %416 : vector<8x32xf32>
    %425 = arith.mulf %424, %422 : vector<8x32xf32>
    %426 = arith.mulf %416, %375 : vector<8x32xf32>
    %427 = arith.addf %425, %426 : vector<8x32xf32>
    %428 = vector.shape_cast %400 : vector<8x1xi1> to vector<8x1xi1>
    %429 = vector.broadcast %428 : vector<8x1xi1> to vector<8x32xi1>
    %430 = arith.select %429, %427, %375 : vector<8x32xi1>, vector<8x32xf32>
    %431 = arith.extui %400 : vector<8x1xi1> to vector<8x1xi32>
    %432 = arith.sitofp %431 : vector<8x1xi32> to vector<8x1xf32>
    %433 = vector.broadcast %432 : vector<8x1xf32> to vector<8x8xf32>
    %434 = arith.mulf %433, %31 : vector<8x8xf32>
    %cst_136 = arith.constant dense<0.000000e+00> : vector<8xf32>
    %435 = vector.multi_reduction <add>, %434, %cst_136 [0] : vector<8x8xf32> to vector<8xf32>
    %436 = vector.shape_cast %435 : vector<8xf32> to vector<1x8xf32>
    %c0_i32_137 = arith.constant 0 : i32
    %437 = arith.addi %c0_i32_137, %c6_i32 : i32
    %438 = arith.index_cast %437 : i32 to index
    %c0_138 = arith.constant 0 : index
    %439 = vector.load %arg13[%438, %c0_138] : memref<16x8xf32, #tpu.memory_space<vmem>>, vector<1x8xf32>
    tpu.vector_store %arg13[%438, %c0_138], %436 {strides = array<i32>} : memref<16x8xf32, #tpu.memory_space<vmem>>, vector<1x8xf32>,
    %c7_i32 = arith.constant 7 : i32
    %440 = arith.index_cast %c7_i32 : i32 to index
    %c0_139 = arith.constant 0 : index
    %c0_140 = arith.constant 0 : index
    %441 = vector.load %arg14[%440, %c0_139, %c0_140] : memref<8x8x96xf32, #tpu.memory_space<vmem>>, vector<1x8x96xf32>
    %442 = vector.shape_cast %441 : vector<1x8x96xf32> to vector<8x96xf32>
    %cst_141 = arith.constant dense<0.000000e+00> : vector<8x96xf32>
    %443 = tpu.matmul %430, %20, %cst_141 {dimension_numbers = #tpu.dot_dimension_numbers<[1], [0], [0], [1], [0, 0, 1, 1], [], []>} : vector<8x32xf32>, vector<32x96xf32>, vector<8x96xf32> -> vector<8x96xf32>
    %444 = arith.mulf %430, %23 : vector<8x32xf32>
    %cst_142 = arith.constant dense<0.000000e+00> : vector<8xf32>
    %445 = vector.multi_reduction <add>, %444, %cst_142 [1] : vector<8x32xf32> to vector<8xf32>
    %446 = vector.shape_cast %445 : vector<8xf32> to vector<8x1xf32>
    %447 = arith.index_cast %c7_i32 : i32 to index
    %c0_143 = arith.constant 0 : index
    %448 = vector.load %arg17[%447, %c0_143] : memref<8x8xf32, #tpu.memory_space<vmem>>, vector<1x8xf32>
    %449 = vector.broadcast %448 : vector<1x8xf32> to vector<8x8xf32>
    %450 = arith.mulf %449, %31 : vector<8x8xf32>
    %cst_144 = arith.constant dense<0.000000e+00> : vector<8xf32>
    %451 = vector.multi_reduction <add>, %450, %cst_144 [1] : vector<8x8xf32> to vector<8xf32>
    %452 = vector.shape_cast %451 : vector<8xf32> to vector<8x1xf32>
    %453 = arith.addf %446, %452 : vector<8x1xf32>
    %cst_145 = arith.constant 0.000000e+00 : f32
    %454 = vector.broadcast %cst_145 : f32 to vector<8x1xf32>
    %455 = arith.cmpf oge, %453, %454 : vector<8x1xf32>
    %456 = vector.extract_strided_slice %442 {offsets = [0, 0], sizes = [8, 32], strides = [1, 1]} : vector<8x96xf32> to vector<8x32xf32>
    %457 = vector.extract_strided_slice %443 {offsets = [0, 0], sizes = [8, 32], strides = [1, 1]} : vector<8x96xf32> to vector<8x32xf32>
    %458 = arith.addf %456, %457 : vector<8x32xf32>
    %459 = arith.negf %458 : vector<8x32xf32>
    %460 = math.exp %459 : vector<8x32xf32>
    %cst_146 = arith.constant 1.000000e+00 : f32
    %461 = vector.broadcast %cst_146 : f32 to vector<8x32xf32>
    %462 = arith.addf %461, %460 : vector<8x32xf32>
    %463 = arith.divf %461, %462 : vector<8x32xf32>
    %464 = vector.extract_strided_slice %442 {offsets = [0, 32], sizes = [8, 32], strides = [1, 1]} : vector<8x96xf32> to vector<8x32xf32>
    %465 = vector.extract_strided_slice %443 {offsets = [0, 32], sizes = [8, 32], strides = [1, 1]} : vector<8x96xf32> to vector<8x32xf32>
    %466 = arith.addf %464, %465 : vector<8x32xf32>
    %467 = arith.negf %466 : vector<8x32xf32>
    %468 = math.exp %467 : vector<8x32xf32>
    %cst_147 = arith.constant 1.000000e+00 : f32
    %469 = vector.broadcast %cst_147 : f32 to vector<8x32xf32>
    %470 = arith.addf %469, %468 : vector<8x32xf32>
    %471 = arith.divf %469, %470 : vector<8x32xf32>
    %472 = vector.extract_strided_slice %442 {offsets = [0, 64], sizes = [8, 32], strides = [1, 1]} : vector<8x96xf32> to vector<8x32xf32>
    %473 = vector.extract_strided_slice %443 {offsets = [0, 64], sizes = [8, 32], strides = [1, 1]} : vector<8x96xf32> to vector<8x32xf32>
    %474 = arith.addf %473, %26 : vector<8x32xf32>
    %475 = arith.mulf %463, %474 : vector<8x32xf32>
    %476 = arith.addf %472, %475 : vector<8x32xf32>
    %477 = math.tanh %476 : vector<8x32xf32>
    %cst_148 = arith.constant 1.000000e+00 : f32
    %478 = vector.broadcast %cst_148 : f32 to vector<8x32xf32>
    %479 = arith.subf %478, %471 : vector<8x32xf32>
    %480 = arith.mulf %479, %477 : vector<8x32xf32>
    %481 = arith.mulf %471, %430 : vector<8x32xf32>
    %482 = arith.addf %480, %481 : vector<8x32xf32>
    %483 = vector.shape_cast %455 : vector<8x1xi1> to vector<8x1xi1>
    %484 = vector.broadcast %483 : vector<8x1xi1> to vector<8x32xi1>
    %485 = arith.select %484, %482, %430 : vector<8x32xi1>, vector<8x32xf32>
    %486 = arith.extui %455 : vector<8x1xi1> to vector<8x1xi32>
    %487 = arith.sitofp %486 : vector<8x1xi32> to vector<8x1xf32>
    %488 = vector.broadcast %487 : vector<8x1xf32> to vector<8x8xf32>
    %489 = arith.mulf %488, %31 : vector<8x8xf32>
    %cst_149 = arith.constant dense<0.000000e+00> : vector<8xf32>
    %490 = vector.multi_reduction <add>, %489, %cst_149 [0] : vector<8x8xf32> to vector<8xf32>
    %491 = vector.shape_cast %490 : vector<8xf32> to vector<1x8xf32>
    %c0_i32_150 = arith.constant 0 : i32
    %492 = arith.addi %c0_i32_150, %c7_i32 : i32
    %493 = arith.index_cast %492 : i32 to index
    %c0_151 = arith.constant 0 : index
    %494 = vector.load %arg13[%493, %c0_151] : memref<16x8xf32, #tpu.memory_space<vmem>>, vector<1x8xf32>
    tpu.vector_store %arg13[%493, %c0_151], %491 {strides = array<i32>} : memref<16x8xf32, #tpu.memory_space<vmem>>, vector<1x8xf32>,
    %c8_i32 = arith.constant 8 : i32
    %c0_152 = arith.constant 0 : index
    %c0_153 = arith.constant 0 : index
    %495 = vector.load %arg18[%c0_152, %c0_153] : memref<8x32xf32, #tpu.memory_space<vmem>>, vector<8x32xf32>
    %496 = arith.addf %495, %485 : vector<8x32xf32>
    %c0_154 = arith.constant 0 : index
    %c0_155 = arith.constant 0 : index
    %497 = vector.load %arg18[%c0_154, %c0_155] : memref<8x32xf32, #tpu.memory_space<vmem>>, vector<8x32xf32>
    tpu.vector_store %arg18[%c0_154, %c0_155], %496 {strides = array<i32>} : memref<8x32xf32, #tpu.memory_space<vmem>>, vector<8x32xf32>,
    %c0_156 = arith.constant 0 : index
    %c0_157 = arith.constant 0 : index
    %498 = vector.load %arg18[%c0_156, %c0_157] : memref<8x32xf32, #tpu.memory_space<vmem>>, vector<8x32xf32>
    %c0_158 = arith.constant 0 : index
    %c0_159 = arith.constant 0 : index
    %499 = vector.load %arg4[%c0_158, %c0_159] : memref<32x32xf32, #tpu.memory_space<vmem>>, vector<32x32xf32>
    %cst_160 = arith.constant dense<0.000000e+00> : vector<8x32xf32>
    %500 = tpu.matmul %498, %499, %cst_160 {dimension_numbers = #tpu.dot_dimension_numbers<[1], [0], [0], [1], [0, 0, 1, 1], [], []>} : vector<8x32xf32>, vector<32x32xf32>, vector<8x32xf32> -> vector<8x32xf32>
    %c0_161 = arith.constant 0 : index
    %c0_162 = arith.constant 0 : index
    %501 = vector.load %arg5[%c0_161, %c0_162] : memref<1x32xf32, #tpu.memory_space<vmem>>, vector<1x32xf32>
    %502 = vector.broadcast %501 : vector<1x32xf32> to vector<8x32xf32>
    %503 = arith.addf %500, %502 : vector<8x32xf32>
    %c0_163 = arith.constant 0 : index
    %c0_164 = arith.constant 0 : index
    %c0_165 = arith.constant 0 : index
    %504 = vector.load %arg15[%c0_163, %c0_164, %c0_165] : memref<8x8x32xf32, #tpu.memory_space<vmem>>, vector<8x8x32xf32>
    %505 = vector.shape_cast %503 : vector<8x32xf32> to vector<1x8x32xf32>
    %506 = vector.broadcast %505 : vector<1x8x32xf32> to vector<8x8x32xf32>
    %507 = arith.addf %504, %506 : vector<8x8x32xf32>
    %508 = arith.negf %507 : vector<8x8x32xf32>
    %509 = math.exp %508 : vector<8x8x32xf32>
    %cst_166 = arith.constant 1.000000e+00 : f32
    %510 = vector.broadcast %cst_166 : f32 to vector<8x8x32xf32>
    %511 = arith.addf %510, %509 : vector<8x8x32xf32>
    %512 = arith.divf %510, %511 : vector<8x8x32xf32>
    %c0_167 = arith.constant 0 : index
    %c0_168 = arith.constant 0 : index
    %c0_169 = arith.constant 0 : index
    %513 = vector.load %arg16[%c0_167, %c0_168, %c0_169] : memref<8x8x32xf32, #tpu.memory_space<vmem>>, vector<8x8x32xf32>
    %514 = arith.mulf %513, %512 : vector<8x8x32xf32>
    %cst_170 = arith.constant dense<0.000000e+00> : vector<8x8xf32>
    %515 = vector.multi_reduction <add>, %514, %cst_170 [2] : vector<8x8x32xf32> to vector<8x8xf32>
    %c1 = arith.constant 1 : index
    %c0_171 = arith.constant 0 : index
    %c0_172 = arith.constant 0 : index
    %516 = vector.load %arg1[%c1, %c0_171, %c0_172] : memref<2x8x8xf32, #tpu.memory_space<vmem>>, vector<1x8x8xf32>
    %517 = vector.shape_cast %516 : vector<1x8x8xf32> to vector<8x8xf32>
    %518 = arith.addf %515, %517 : vector<8x8xf32>
    %c0_173 = arith.constant 0 : index
    %c0_174 = arith.constant 0 : index
    %519 = vector.load %arg17[%c0_173, %c0_174] : memref<8x8xf32, #tpu.memory_space<vmem>>, vector<8x8xf32>
    tpu.vector_store %arg17[%c0_173, %c0_174], %518 {strides = array<i32>} : memref<8x8xf32, #tpu.memory_space<vmem>>, vector<8x8xf32>,
    %cst_175 = arith.constant 0.000000e+00 : f32
    %520 = vector.broadcast %cst_175 : f32 to vector<8x32xf32>
    %c0_i32_176 = arith.constant 0 : i32
    %521 = arith.index_cast %c0_i32_176 : i32 to index
    %c0_177 = arith.constant 0 : index
    %c0_178 = arith.constant 0 : index
    %522 = vector.load %arg14[%521, %c0_177, %c0_178] : memref<8x8x96xf32, #tpu.memory_space<vmem>>, vector<1x8x96xf32>
    %523 = vector.shape_cast %522 : vector<1x8x96xf32> to vector<8x96xf32>
    %cst_179 = arith.constant dense<0.000000e+00> : vector<8x96xf32>
    %524 = tpu.matmul %520, %20, %cst_179 {dimension_numbers = #tpu.dot_dimension_numbers<[1], [0], [0], [1], [0, 0, 1, 1], [], []>} : vector<8x32xf32>, vector<32x96xf32>, vector<8x96xf32> -> vector<8x96xf32>
    %525 = arith.mulf %520, %23 : vector<8x32xf32>
    %cst_180 = arith.constant dense<0.000000e+00> : vector<8xf32>
    %526 = vector.multi_reduction <add>, %525, %cst_180 [1] : vector<8x32xf32> to vector<8xf32>
    %527 = vector.shape_cast %526 : vector<8xf32> to vector<8x1xf32>
    %528 = arith.index_cast %c0_i32_176 : i32 to index
    %c0_181 = arith.constant 0 : index
    %529 = vector.load %arg17[%528, %c0_181] : memref<8x8xf32, #tpu.memory_space<vmem>>, vector<1x8xf32>
    %530 = vector.broadcast %529 : vector<1x8xf32> to vector<8x8xf32>
    %531 = arith.mulf %530, %31 : vector<8x8xf32>
    %cst_182 = arith.constant dense<0.000000e+00> : vector<8xf32>
    %532 = vector.multi_reduction <add>, %531, %cst_182 [1] : vector<8x8xf32> to vector<8xf32>
    %533 = vector.shape_cast %532 : vector<8xf32> to vector<8x1xf32>
    %534 = arith.addf %527, %533 : vector<8x1xf32>
    %cst_183 = arith.constant 0.000000e+00 : f32
    %535 = vector.broadcast %cst_183 : f32 to vector<8x1xf32>
    %536 = arith.cmpf oge, %534, %535 : vector<8x1xf32>
    %537 = vector.extract_strided_slice %523 {offsets = [0, 0], sizes = [8, 32], strides = [1, 1]} : vector<8x96xf32> to vector<8x32xf32>
    %538 = vector.extract_strided_slice %524 {offsets = [0, 0], sizes = [8, 32], strides = [1, 1]} : vector<8x96xf32> to vector<8x32xf32>
    %539 = arith.addf %537, %538 : vector<8x32xf32>
    %540 = arith.negf %539 : vector<8x32xf32>
    %541 = math.exp %540 : vector<8x32xf32>
    %cst_184 = arith.constant 1.000000e+00 : f32
    %542 = vector.broadcast %cst_184 : f32 to vector<8x32xf32>
    %543 = arith.addf %542, %541 : vector<8x32xf32>
    %544 = arith.divf %542, %543 : vector<8x32xf32>
    %545 = vector.extract_strided_slice %523 {offsets = [0, 32], sizes = [8, 32], strides = [1, 1]} : vector<8x96xf32> to vector<8x32xf32>
    %546 = vector.extract_strided_slice %524 {offsets = [0, 32], sizes = [8, 32], strides = [1, 1]} : vector<8x96xf32> to vector<8x32xf32>
    %547 = arith.addf %545, %546 : vector<8x32xf32>
    %548 = arith.negf %547 : vector<8x32xf32>
    %549 = math.exp %548 : vector<8x32xf32>
    %cst_185 = arith.constant 1.000000e+00 : f32
    %550 = vector.broadcast %cst_185 : f32 to vector<8x32xf32>
    %551 = arith.addf %550, %549 : vector<8x32xf32>
    %552 = arith.divf %550, %551 : vector<8x32xf32>
    %553 = vector.extract_strided_slice %523 {offsets = [0, 64], sizes = [8, 32], strides = [1, 1]} : vector<8x96xf32> to vector<8x32xf32>
    %554 = vector.extract_strided_slice %524 {offsets = [0, 64], sizes = [8, 32], strides = [1, 1]} : vector<8x96xf32> to vector<8x32xf32>
    %555 = arith.addf %554, %26 : vector<8x32xf32>
    %556 = arith.mulf %544, %555 : vector<8x32xf32>
    %557 = arith.addf %553, %556 : vector<8x32xf32>
    %558 = math.tanh %557 : vector<8x32xf32>
    %cst_186 = arith.constant 1.000000e+00 : f32
    %559 = vector.broadcast %cst_186 : f32 to vector<8x32xf32>
    %560 = arith.subf %559, %552 : vector<8x32xf32>
    %561 = arith.mulf %560, %558 : vector<8x32xf32>
    %562 = arith.mulf %552, %520 : vector<8x32xf32>
    %563 = arith.addf %561, %562 : vector<8x32xf32>
    %564 = vector.shape_cast %536 : vector<8x1xi1> to vector<8x1xi1>
    %565 = vector.broadcast %564 : vector<8x1xi1> to vector<8x32xi1>
    %566 = arith.select %565, %563, %520 : vector<8x32xi1>, vector<8x32xf32>
    %567 = arith.extui %536 : vector<8x1xi1> to vector<8x1xi32>
    %568 = arith.sitofp %567 : vector<8x1xi32> to vector<8x1xf32>
    %569 = vector.broadcast %568 : vector<8x1xf32> to vector<8x8xf32>
    %570 = arith.mulf %569, %31 : vector<8x8xf32>
    %cst_187 = arith.constant dense<0.000000e+00> : vector<8xf32>
    %571 = vector.multi_reduction <add>, %570, %cst_187 [0] : vector<8x8xf32> to vector<8xf32>
    %572 = vector.shape_cast %571 : vector<8xf32> to vector<1x8xf32>
    %c8_i32_188 = arith.constant 8 : i32
    %573 = arith.addi %c8_i32_188, %c0_i32_176 : i32
    %574 = arith.index_cast %573 : i32 to index
    %c0_189 = arith.constant 0 : index
    %575 = vector.load %arg13[%574, %c0_189] : memref<16x8xf32, #tpu.memory_space<vmem>>, vector<1x8xf32>
    tpu.vector_store %arg13[%574, %c0_189], %572 {strides = array<i32>} : memref<16x8xf32, #tpu.memory_space<vmem>>, vector<1x8xf32>,
    %c1_i32_190 = arith.constant 1 : i32
    %576 = arith.index_cast %c1_i32_190 : i32 to index
    %c0_191 = arith.constant 0 : index
    %c0_192 = arith.constant 0 : index
    %577 = vector.load %arg14[%576, %c0_191, %c0_192] : memref<8x8x96xf32, #tpu.memory_space<vmem>>, vector<1x8x96xf32>
    %578 = vector.shape_cast %577 : vector<1x8x96xf32> to vector<8x96xf32>
    %cst_193 = arith.constant dense<0.000000e+00> : vector<8x96xf32>
    %579 = tpu.matmul %566, %20, %cst_193 {dimension_numbers = #tpu.dot_dimension_numbers<[1], [0], [0], [1], [0, 0, 1, 1], [], []>} : vector<8x32xf32>, vector<32x96xf32>, vector<8x96xf32> -> vector<8x96xf32>
    %580 = arith.mulf %566, %23 : vector<8x32xf32>
    %cst_194 = arith.constant dense<0.000000e+00> : vector<8xf32>
    %581 = vector.multi_reduction <add>, %580, %cst_194 [1] : vector<8x32xf32> to vector<8xf32>
    %582 = vector.shape_cast %581 : vector<8xf32> to vector<8x1xf32>
    %583 = arith.index_cast %c1_i32_190 : i32 to index
    %c0_195 = arith.constant 0 : index
    %584 = vector.load %arg17[%583, %c0_195] : memref<8x8xf32, #tpu.memory_space<vmem>>, vector<1x8xf32>
    %585 = vector.broadcast %584 : vector<1x8xf32> to vector<8x8xf32>
    %586 = arith.mulf %585, %31 : vector<8x8xf32>
    %cst_196 = arith.constant dense<0.000000e+00> : vector<8xf32>
    %587 = vector.multi_reduction <add>, %586, %cst_196 [1] : vector<8x8xf32> to vector<8xf32>
    %588 = vector.shape_cast %587 : vector<8xf32> to vector<8x1xf32>
    %589 = arith.addf %582, %588 : vector<8x1xf32>
    %cst_197 = arith.constant 0.000000e+00 : f32
    %590 = vector.broadcast %cst_197 : f32 to vector<8x1xf32>
    %591 = arith.cmpf oge, %589, %590 : vector<8x1xf32>
    %592 = vector.extract_strided_slice %578 {offsets = [0, 0], sizes = [8, 32], strides = [1, 1]} : vector<8x96xf32> to vector<8x32xf32>
    %593 = vector.extract_strided_slice %579 {offsets = [0, 0], sizes = [8, 32], strides = [1, 1]} : vector<8x96xf32> to vector<8x32xf32>
    %594 = arith.addf %592, %593 : vector<8x32xf32>
    %595 = arith.negf %594 : vector<8x32xf32>
    %596 = math.exp %595 : vector<8x32xf32>
    %cst_198 = arith.constant 1.000000e+00 : f32
    %597 = vector.broadcast %cst_198 : f32 to vector<8x32xf32>
    %598 = arith.addf %597, %596 : vector<8x32xf32>
    %599 = arith.divf %597, %598 : vector<8x32xf32>
    %600 = vector.extract_strided_slice %578 {offsets = [0, 32], sizes = [8, 32], strides = [1, 1]} : vector<8x96xf32> to vector<8x32xf32>
    %601 = vector.extract_strided_slice %579 {offsets = [0, 32], sizes = [8, 32], strides = [1, 1]} : vector<8x96xf32> to vector<8x32xf32>
    %602 = arith.addf %600, %601 : vector<8x32xf32>
    %603 = arith.negf %602 : vector<8x32xf32>
    %604 = math.exp %603 : vector<8x32xf32>
    %cst_199 = arith.constant 1.000000e+00 : f32
    %605 = vector.broadcast %cst_199 : f32 to vector<8x32xf32>
    %606 = arith.addf %605, %604 : vector<8x32xf32>
    %607 = arith.divf %605, %606 : vector<8x32xf32>
    %608 = vector.extract_strided_slice %578 {offsets = [0, 64], sizes = [8, 32], strides = [1, 1]} : vector<8x96xf32> to vector<8x32xf32>
    %609 = vector.extract_strided_slice %579 {offsets = [0, 64], sizes = [8, 32], strides = [1, 1]} : vector<8x96xf32> to vector<8x32xf32>
    %610 = arith.addf %609, %26 : vector<8x32xf32>
    %611 = arith.mulf %599, %610 : vector<8x32xf32>
    %612 = arith.addf %608, %611 : vector<8x32xf32>
    %613 = math.tanh %612 : vector<8x32xf32>
    %cst_200 = arith.constant 1.000000e+00 : f32
    %614 = vector.broadcast %cst_200 : f32 to vector<8x32xf32>
    %615 = arith.subf %614, %607 : vector<8x32xf32>
    %616 = arith.mulf %615, %613 : vector<8x32xf32>
    %617 = arith.mulf %607, %566 : vector<8x32xf32>
    %618 = arith.addf %616, %617 : vector<8x32xf32>
    %619 = vector.shape_cast %591 : vector<8x1xi1> to vector<8x1xi1>
    %620 = vector.broadcast %619 : vector<8x1xi1> to vector<8x32xi1>
    %621 = arith.select %620, %618, %566 : vector<8x32xi1>, vector<8x32xf32>
    %622 = arith.extui %591 : vector<8x1xi1> to vector<8x1xi32>
    %623 = arith.sitofp %622 : vector<8x1xi32> to vector<8x1xf32>
    %624 = vector.broadcast %623 : vector<8x1xf32> to vector<8x8xf32>
    %625 = arith.mulf %624, %31 : vector<8x8xf32>
    %cst_201 = arith.constant dense<0.000000e+00> : vector<8xf32>
    %626 = vector.multi_reduction <add>, %625, %cst_201 [0] : vector<8x8xf32> to vector<8xf32>
    %627 = vector.shape_cast %626 : vector<8xf32> to vector<1x8xf32>
    %c8_i32_202 = arith.constant 8 : i32
    %628 = arith.addi %c8_i32_202, %c1_i32_190 : i32
    %629 = arith.index_cast %628 : i32 to index
    %c0_203 = arith.constant 0 : index
    %630 = vector.load %arg13[%629, %c0_203] : memref<16x8xf32, #tpu.memory_space<vmem>>, vector<1x8xf32>
    tpu.vector_store %arg13[%629, %c0_203], %627 {strides = array<i32>} : memref<16x8xf32, #tpu.memory_space<vmem>>, vector<1x8xf32>,
    %c2_i32_204 = arith.constant 2 : i32
    %631 = arith.index_cast %c2_i32_204 : i32 to index
    %c0_205 = arith.constant 0 : index
    %c0_206 = arith.constant 0 : index
    %632 = vector.load %arg14[%631, %c0_205, %c0_206] : memref<8x8x96xf32, #tpu.memory_space<vmem>>, vector<1x8x96xf32>
    %633 = vector.shape_cast %632 : vector<1x8x96xf32> to vector<8x96xf32>
    %cst_207 = arith.constant dense<0.000000e+00> : vector<8x96xf32>
    %634 = tpu.matmul %621, %20, %cst_207 {dimension_numbers = #tpu.dot_dimension_numbers<[1], [0], [0], [1], [0, 0, 1, 1], [], []>} : vector<8x32xf32>, vector<32x96xf32>, vector<8x96xf32> -> vector<8x96xf32>
    %635 = arith.mulf %621, %23 : vector<8x32xf32>
    %cst_208 = arith.constant dense<0.000000e+00> : vector<8xf32>
    %636 = vector.multi_reduction <add>, %635, %cst_208 [1] : vector<8x32xf32> to vector<8xf32>
    %637 = vector.shape_cast %636 : vector<8xf32> to vector<8x1xf32>
    %638 = arith.index_cast %c2_i32_204 : i32 to index
    %c0_209 = arith.constant 0 : index
    %639 = vector.load %arg17[%638, %c0_209] : memref<8x8xf32, #tpu.memory_space<vmem>>, vector<1x8xf32>
    %640 = vector.broadcast %639 : vector<1x8xf32> to vector<8x8xf32>
    %641 = arith.mulf %640, %31 : vector<8x8xf32>
    %cst_210 = arith.constant dense<0.000000e+00> : vector<8xf32>
    %642 = vector.multi_reduction <add>, %641, %cst_210 [1] : vector<8x8xf32> to vector<8xf32>
    %643 = vector.shape_cast %642 : vector<8xf32> to vector<8x1xf32>
    %644 = arith.addf %637, %643 : vector<8x1xf32>
    %cst_211 = arith.constant 0.000000e+00 : f32
    %645 = vector.broadcast %cst_211 : f32 to vector<8x1xf32>
    %646 = arith.cmpf oge, %644, %645 : vector<8x1xf32>
    %647 = vector.extract_strided_slice %633 {offsets = [0, 0], sizes = [8, 32], strides = [1, 1]} : vector<8x96xf32> to vector<8x32xf32>
    %648 = vector.extract_strided_slice %634 {offsets = [0, 0], sizes = [8, 32], strides = [1, 1]} : vector<8x96xf32> to vector<8x32xf32>
    %649 = arith.addf %647, %648 : vector<8x32xf32>
    %650 = arith.negf %649 : vector<8x32xf32>
    %651 = math.exp %650 : vector<8x32xf32>
    %cst_212 = arith.constant 1.000000e+00 : f32
    %652 = vector.broadcast %cst_212 : f32 to vector<8x32xf32>
    %653 = arith.addf %652, %651 : vector<8x32xf32>
    %654 = arith.divf %652, %653 : vector<8x32xf32>
    %655 = vector.extract_strided_slice %633 {offsets = [0, 32], sizes = [8, 32], strides = [1, 1]} : vector<8x96xf32> to vector<8x32xf32>
    %656 = vector.extract_strided_slice %634 {offsets = [0, 32], sizes = [8, 32], strides = [1, 1]} : vector<8x96xf32> to vector<8x32xf32>
    %657 = arith.addf %655, %656 : vector<8x32xf32>
    %658 = arith.negf %657 : vector<8x32xf32>
    %659 = math.exp %658 : vector<8x32xf32>
    %cst_213 = arith.constant 1.000000e+00 : f32
    %660 = vector.broadcast %cst_213 : f32 to vector<8x32xf32>
    %661 = arith.addf %660, %659 : vector<8x32xf32>
    %662 = arith.divf %660, %661 : vector<8x32xf32>
    %663 = vector.extract_strided_slice %633 {offsets = [0, 64], sizes = [8, 32], strides = [1, 1]} : vector<8x96xf32> to vector<8x32xf32>
    %664 = vector.extract_strided_slice %634 {offsets = [0, 64], sizes = [8, 32], strides = [1, 1]} : vector<8x96xf32> to vector<8x32xf32>
    %665 = arith.addf %664, %26 : vector<8x32xf32>
    %666 = arith.mulf %654, %665 : vector<8x32xf32>
    %667 = arith.addf %663, %666 : vector<8x32xf32>
    %668 = math.tanh %667 : vector<8x32xf32>
    %cst_214 = arith.constant 1.000000e+00 : f32
    %669 = vector.broadcast %cst_214 : f32 to vector<8x32xf32>
    %670 = arith.subf %669, %662 : vector<8x32xf32>
    %671 = arith.mulf %670, %668 : vector<8x32xf32>
    %672 = arith.mulf %662, %621 : vector<8x32xf32>
    %673 = arith.addf %671, %672 : vector<8x32xf32>
    %674 = vector.shape_cast %646 : vector<8x1xi1> to vector<8x1xi1>
    %675 = vector.broadcast %674 : vector<8x1xi1> to vector<8x32xi1>
    %676 = arith.select %675, %673, %621 : vector<8x32xi1>, vector<8x32xf32>
    %677 = arith.extui %646 : vector<8x1xi1> to vector<8x1xi32>
    %678 = arith.sitofp %677 : vector<8x1xi32> to vector<8x1xf32>
    %679 = vector.broadcast %678 : vector<8x1xf32> to vector<8x8xf32>
    %680 = arith.mulf %679, %31 : vector<8x8xf32>
    %cst_215 = arith.constant dense<0.000000e+00> : vector<8xf32>
    %681 = vector.multi_reduction <add>, %680, %cst_215 [0] : vector<8x8xf32> to vector<8xf32>
    %682 = vector.shape_cast %681 : vector<8xf32> to vector<1x8xf32>
    %c8_i32_216 = arith.constant 8 : i32
    %683 = arith.addi %c8_i32_216, %c2_i32_204 : i32
    %684 = arith.index_cast %683 : i32 to index
    %c0_217 = arith.constant 0 : index
    %685 = vector.load %arg13[%684, %c0_217] : memref<16x8xf32, #tpu.memory_space<vmem>>, vector<1x8xf32>
    tpu.vector_store %arg13[%684, %c0_217], %682 {strides = array<i32>} : memref<16x8xf32, #tpu.memory_space<vmem>>, vector<1x8xf32>,
    %c3_i32_218 = arith.constant 3 : i32
    %686 = arith.index_cast %c3_i32_218 : i32 to index
    %c0_219 = arith.constant 0 : index
    %c0_220 = arith.constant 0 : index
    %687 = vector.load %arg14[%686, %c0_219, %c0_220] : memref<8x8x96xf32, #tpu.memory_space<vmem>>, vector<1x8x96xf32>
    %688 = vector.shape_cast %687 : vector<1x8x96xf32> to vector<8x96xf32>
    %cst_221 = arith.constant dense<0.000000e+00> : vector<8x96xf32>
    %689 = tpu.matmul %676, %20, %cst_221 {dimension_numbers = #tpu.dot_dimension_numbers<[1], [0], [0], [1], [0, 0, 1, 1], [], []>} : vector<8x32xf32>, vector<32x96xf32>, vector<8x96xf32> -> vector<8x96xf32>
    %690 = arith.mulf %676, %23 : vector<8x32xf32>
    %cst_222 = arith.constant dense<0.000000e+00> : vector<8xf32>
    %691 = vector.multi_reduction <add>, %690, %cst_222 [1] : vector<8x32xf32> to vector<8xf32>
    %692 = vector.shape_cast %691 : vector<8xf32> to vector<8x1xf32>
    %693 = arith.index_cast %c3_i32_218 : i32 to index
    %c0_223 = arith.constant 0 : index
    %694 = vector.load %arg17[%693, %c0_223] : memref<8x8xf32, #tpu.memory_space<vmem>>, vector<1x8xf32>
    %695 = vector.broadcast %694 : vector<1x8xf32> to vector<8x8xf32>
    %696 = arith.mulf %695, %31 : vector<8x8xf32>
    %cst_224 = arith.constant dense<0.000000e+00> : vector<8xf32>
    %697 = vector.multi_reduction <add>, %696, %cst_224 [1] : vector<8x8xf32> to vector<8xf32>
    %698 = vector.shape_cast %697 : vector<8xf32> to vector<8x1xf32>
    %699 = arith.addf %692, %698 : vector<8x1xf32>
    %cst_225 = arith.constant 0.000000e+00 : f32
    %700 = vector.broadcast %cst_225 : f32 to vector<8x1xf32>
    %701 = arith.cmpf oge, %699, %700 : vector<8x1xf32>
    %702 = vector.extract_strided_slice %688 {offsets = [0, 0], sizes = [8, 32], strides = [1, 1]} : vector<8x96xf32> to vector<8x32xf32>
    %703 = vector.extract_strided_slice %689 {offsets = [0, 0], sizes = [8, 32], strides = [1, 1]} : vector<8x96xf32> to vector<8x32xf32>
    %704 = arith.addf %702, %703 : vector<8x32xf32>
    %705 = arith.negf %704 : vector<8x32xf32>
    %706 = math.exp %705 : vector<8x32xf32>
    %cst_226 = arith.constant 1.000000e+00 : f32
    %707 = vector.broadcast %cst_226 : f32 to vector<8x32xf32>
    %708 = arith.addf %707, %706 : vector<8x32xf32>
    %709 = arith.divf %707, %708 : vector<8x32xf32>
    %710 = vector.extract_strided_slice %688 {offsets = [0, 32], sizes = [8, 32], strides = [1, 1]} : vector<8x96xf32> to vector<8x32xf32>
    %711 = vector.extract_strided_slice %689 {offsets = [0, 32], sizes = [8, 32], strides = [1, 1]} : vector<8x96xf32> to vector<8x32xf32>
    %712 = arith.addf %710, %711 : vector<8x32xf32>
    %713 = arith.negf %712 : vector<8x32xf32>
    %714 = math.exp %713 : vector<8x32xf32>
    %cst_227 = arith.constant 1.000000e+00 : f32
    %715 = vector.broadcast %cst_227 : f32 to vector<8x32xf32>
    %716 = arith.addf %715, %714 : vector<8x32xf32>
    %717 = arith.divf %715, %716 : vector<8x32xf32>
    %718 = vector.extract_strided_slice %688 {offsets = [0, 64], sizes = [8, 32], strides = [1, 1]} : vector<8x96xf32> to vector<8x32xf32>
    %719 = vector.extract_strided_slice %689 {offsets = [0, 64], sizes = [8, 32], strides = [1, 1]} : vector<8x96xf32> to vector<8x32xf32>
    %720 = arith.addf %719, %26 : vector<8x32xf32>
    %721 = arith.mulf %709, %720 : vector<8x32xf32>
    %722 = arith.addf %718, %721 : vector<8x32xf32>
    %723 = math.tanh %722 : vector<8x32xf32>
    %cst_228 = arith.constant 1.000000e+00 : f32
    %724 = vector.broadcast %cst_228 : f32 to vector<8x32xf32>
    %725 = arith.subf %724, %717 : vector<8x32xf32>
    %726 = arith.mulf %725, %723 : vector<8x32xf32>
    %727 = arith.mulf %717, %676 : vector<8x32xf32>
    %728 = arith.addf %726, %727 : vector<8x32xf32>
    %729 = vector.shape_cast %701 : vector<8x1xi1> to vector<8x1xi1>
    %730 = vector.broadcast %729 : vector<8x1xi1> to vector<8x32xi1>
    %731 = arith.select %730, %728, %676 : vector<8x32xi1>, vector<8x32xf32>
    %732 = arith.extui %701 : vector<8x1xi1> to vector<8x1xi32>
    %733 = arith.sitofp %732 : vector<8x1xi32> to vector<8x1xf32>
    %734 = vector.broadcast %733 : vector<8x1xf32> to vector<8x8xf32>
    %735 = arith.mulf %734, %31 : vector<8x8xf32>
    %cst_229 = arith.constant dense<0.000000e+00> : vector<8xf32>
    %736 = vector.multi_reduction <add>, %735, %cst_229 [0] : vector<8x8xf32> to vector<8xf32>
    %737 = vector.shape_cast %736 : vector<8xf32> to vector<1x8xf32>
    %c8_i32_230 = arith.constant 8 : i32
    %738 = arith.addi %c8_i32_230, %c3_i32_218 : i32
    %739 = arith.index_cast %738 : i32 to index
    %c0_231 = arith.constant 0 : index
    %740 = vector.load %arg13[%739, %c0_231] : memref<16x8xf32, #tpu.memory_space<vmem>>, vector<1x8xf32>
    tpu.vector_store %arg13[%739, %c0_231], %737 {strides = array<i32>} : memref<16x8xf32, #tpu.memory_space<vmem>>, vector<1x8xf32>,
    %c4_i32_232 = arith.constant 4 : i32
    %741 = arith.index_cast %c4_i32_232 : i32 to index
    %c0_233 = arith.constant 0 : index
    %c0_234 = arith.constant 0 : index
    %742 = vector.load %arg14[%741, %c0_233, %c0_234] : memref<8x8x96xf32, #tpu.memory_space<vmem>>, vector<1x8x96xf32>
    %743 = vector.shape_cast %742 : vector<1x8x96xf32> to vector<8x96xf32>
    %cst_235 = arith.constant dense<0.000000e+00> : vector<8x96xf32>
    %744 = tpu.matmul %731, %20, %cst_235 {dimension_numbers = #tpu.dot_dimension_numbers<[1], [0], [0], [1], [0, 0, 1, 1], [], []>} : vector<8x32xf32>, vector<32x96xf32>, vector<8x96xf32> -> vector<8x96xf32>
    %745 = arith.mulf %731, %23 : vector<8x32xf32>
    %cst_236 = arith.constant dense<0.000000e+00> : vector<8xf32>
    %746 = vector.multi_reduction <add>, %745, %cst_236 [1] : vector<8x32xf32> to vector<8xf32>
    %747 = vector.shape_cast %746 : vector<8xf32> to vector<8x1xf32>
    %748 = arith.index_cast %c4_i32_232 : i32 to index
    %c0_237 = arith.constant 0 : index
    %749 = vector.load %arg17[%748, %c0_237] : memref<8x8xf32, #tpu.memory_space<vmem>>, vector<1x8xf32>
    %750 = vector.broadcast %749 : vector<1x8xf32> to vector<8x8xf32>
    %751 = arith.mulf %750, %31 : vector<8x8xf32>
    %cst_238 = arith.constant dense<0.000000e+00> : vector<8xf32>
    %752 = vector.multi_reduction <add>, %751, %cst_238 [1] : vector<8x8xf32> to vector<8xf32>
    %753 = vector.shape_cast %752 : vector<8xf32> to vector<8x1xf32>
    %754 = arith.addf %747, %753 : vector<8x1xf32>
    %cst_239 = arith.constant 0.000000e+00 : f32
    %755 = vector.broadcast %cst_239 : f32 to vector<8x1xf32>
    %756 = arith.cmpf oge, %754, %755 : vector<8x1xf32>
    %757 = vector.extract_strided_slice %743 {offsets = [0, 0], sizes = [8, 32], strides = [1, 1]} : vector<8x96xf32> to vector<8x32xf32>
    %758 = vector.extract_strided_slice %744 {offsets = [0, 0], sizes = [8, 32], strides = [1, 1]} : vector<8x96xf32> to vector<8x32xf32>
    %759 = arith.addf %757, %758 : vector<8x32xf32>
    %760 = arith.negf %759 : vector<8x32xf32>
    %761 = math.exp %760 : vector<8x32xf32>
    %cst_240 = arith.constant 1.000000e+00 : f32
    %762 = vector.broadcast %cst_240 : f32 to vector<8x32xf32>
    %763 = arith.addf %762, %761 : vector<8x32xf32>
    %764 = arith.divf %762, %763 : vector<8x32xf32>
    %765 = vector.extract_strided_slice %743 {offsets = [0, 32], sizes = [8, 32], strides = [1, 1]} : vector<8x96xf32> to vector<8x32xf32>
    %766 = vector.extract_strided_slice %744 {offsets = [0, 32], sizes = [8, 32], strides = [1, 1]} : vector<8x96xf32> to vector<8x32xf32>
    %767 = arith.addf %765, %766 : vector<8x32xf32>
    %768 = arith.negf %767 : vector<8x32xf32>
    %769 = math.exp %768 : vector<8x32xf32>
    %cst_241 = arith.constant 1.000000e+00 : f32
    %770 = vector.broadcast %cst_241 : f32 to vector<8x32xf32>
    %771 = arith.addf %770, %769 : vector<8x32xf32>
    %772 = arith.divf %770, %771 : vector<8x32xf32>
    %773 = vector.extract_strided_slice %743 {offsets = [0, 64], sizes = [8, 32], strides = [1, 1]} : vector<8x96xf32> to vector<8x32xf32>
    %774 = vector.extract_strided_slice %744 {offsets = [0, 64], sizes = [8, 32], strides = [1, 1]} : vector<8x96xf32> to vector<8x32xf32>
    %775 = arith.addf %774, %26 : vector<8x32xf32>
    %776 = arith.mulf %764, %775 : vector<8x32xf32>
    %777 = arith.addf %773, %776 : vector<8x32xf32>
    %778 = math.tanh %777 : vector<8x32xf32>
    %cst_242 = arith.constant 1.000000e+00 : f32
    %779 = vector.broadcast %cst_242 : f32 to vector<8x32xf32>
    %780 = arith.subf %779, %772 : vector<8x32xf32>
    %781 = arith.mulf %780, %778 : vector<8x32xf32>
    %782 = arith.mulf %772, %731 : vector<8x32xf32>
    %783 = arith.addf %781, %782 : vector<8x32xf32>
    %784 = vector.shape_cast %756 : vector<8x1xi1> to vector<8x1xi1>
    %785 = vector.broadcast %784 : vector<8x1xi1> to vector<8x32xi1>
    %786 = arith.select %785, %783, %731 : vector<8x32xi1>, vector<8x32xf32>
    %787 = arith.extui %756 : vector<8x1xi1> to vector<8x1xi32>
    %788 = arith.sitofp %787 : vector<8x1xi32> to vector<8x1xf32>
    %789 = vector.broadcast %788 : vector<8x1xf32> to vector<8x8xf32>
    %790 = arith.mulf %789, %31 : vector<8x8xf32>
    %cst_243 = arith.constant dense<0.000000e+00> : vector<8xf32>
    %791 = vector.multi_reduction <add>, %790, %cst_243 [0] : vector<8x8xf32> to vector<8xf32>
    %792 = vector.shape_cast %791 : vector<8xf32> to vector<1x8xf32>
    %c8_i32_244 = arith.constant 8 : i32
    %793 = arith.addi %c8_i32_244, %c4_i32_232 : i32
    %794 = arith.index_cast %793 : i32 to index
    %c0_245 = arith.constant 0 : index
    %795 = vector.load %arg13[%794, %c0_245] : memref<16x8xf32, #tpu.memory_space<vmem>>, vector<1x8xf32>
    tpu.vector_store %arg13[%794, %c0_245], %792 {strides = array<i32>} : memref<16x8xf32, #tpu.memory_space<vmem>>, vector<1x8xf32>,
    %c5_i32_246 = arith.constant 5 : i32
    %796 = arith.index_cast %c5_i32_246 : i32 to index
    %c0_247 = arith.constant 0 : index
    %c0_248 = arith.constant 0 : index
    %797 = vector.load %arg14[%796, %c0_247, %c0_248] : memref<8x8x96xf32, #tpu.memory_space<vmem>>, vector<1x8x96xf32>
    %798 = vector.shape_cast %797 : vector<1x8x96xf32> to vector<8x96xf32>
    %cst_249 = arith.constant dense<0.000000e+00> : vector<8x96xf32>
    %799 = tpu.matmul %786, %20, %cst_249 {dimension_numbers = #tpu.dot_dimension_numbers<[1], [0], [0], [1], [0, 0, 1, 1], [], []>} : vector<8x32xf32>, vector<32x96xf32>, vector<8x96xf32> -> vector<8x96xf32>
    %800 = arith.mulf %786, %23 : vector<8x32xf32>
    %cst_250 = arith.constant dense<0.000000e+00> : vector<8xf32>
    %801 = vector.multi_reduction <add>, %800, %cst_250 [1] : vector<8x32xf32> to vector<8xf32>
    %802 = vector.shape_cast %801 : vector<8xf32> to vector<8x1xf32>
    %803 = arith.index_cast %c5_i32_246 : i32 to index
    %c0_251 = arith.constant 0 : index
    %804 = vector.load %arg17[%803, %c0_251] : memref<8x8xf32, #tpu.memory_space<vmem>>, vector<1x8xf32>
    %805 = vector.broadcast %804 : vector<1x8xf32> to vector<8x8xf32>
    %806 = arith.mulf %805, %31 : vector<8x8xf32>
    %cst_252 = arith.constant dense<0.000000e+00> : vector<8xf32>
    %807 = vector.multi_reduction <add>, %806, %cst_252 [1] : vector<8x8xf32> to vector<8xf32>
    %808 = vector.shape_cast %807 : vector<8xf32> to vector<8x1xf32>
    %809 = arith.addf %802, %808 : vector<8x1xf32>
    %cst_253 = arith.constant 0.000000e+00 : f32
    %810 = vector.broadcast %cst_253 : f32 to vector<8x1xf32>
    %811 = arith.cmpf oge, %809, %810 : vector<8x1xf32>
    %812 = vector.extract_strided_slice %798 {offsets = [0, 0], sizes = [8, 32], strides = [1, 1]} : vector<8x96xf32> to vector<8x32xf32>
    %813 = vector.extract_strided_slice %799 {offsets = [0, 0], sizes = [8, 32], strides = [1, 1]} : vector<8x96xf32> to vector<8x32xf32>
    %814 = arith.addf %812, %813 : vector<8x32xf32>
    %815 = arith.negf %814 : vector<8x32xf32>
    %816 = math.exp %815 : vector<8x32xf32>
    %cst_254 = arith.constant 1.000000e+00 : f32
    %817 = vector.broadcast %cst_254 : f32 to vector<8x32xf32>
    %818 = arith.addf %817, %816 : vector<8x32xf32>
    %819 = arith.divf %817, %818 : vector<8x32xf32>
    %820 = vector.extract_strided_slice %798 {offsets = [0, 32], sizes = [8, 32], strides = [1, 1]} : vector<8x96xf32> to vector<8x32xf32>
    %821 = vector.extract_strided_slice %799 {offsets = [0, 32], sizes = [8, 32], strides = [1, 1]} : vector<8x96xf32> to vector<8x32xf32>
    %822 = arith.addf %820, %821 : vector<8x32xf32>
    %823 = arith.negf %822 : vector<8x32xf32>
    %824 = math.exp %823 : vector<8x32xf32>
    %cst_255 = arith.constant 1.000000e+00 : f32
    %825 = vector.broadcast %cst_255 : f32 to vector<8x32xf32>
    %826 = arith.addf %825, %824 : vector<8x32xf32>
    %827 = arith.divf %825, %826 : vector<8x32xf32>
    %828 = vector.extract_strided_slice %798 {offsets = [0, 64], sizes = [8, 32], strides = [1, 1]} : vector<8x96xf32> to vector<8x32xf32>
    %829 = vector.extract_strided_slice %799 {offsets = [0, 64], sizes = [8, 32], strides = [1, 1]} : vector<8x96xf32> to vector<8x32xf32>
    %830 = arith.addf %829, %26 : vector<8x32xf32>
    %831 = arith.mulf %819, %830 : vector<8x32xf32>
    %832 = arith.addf %828, %831 : vector<8x32xf32>
    %833 = math.tanh %832 : vector<8x32xf32>
    %cst_256 = arith.constant 1.000000e+00 : f32
    %834 = vector.broadcast %cst_256 : f32 to vector<8x32xf32>
    %835 = arith.subf %834, %827 : vector<8x32xf32>
    %836 = arith.mulf %835, %833 : vector<8x32xf32>
    %837 = arith.mulf %827, %786 : vector<8x32xf32>
    %838 = arith.addf %836, %837 : vector<8x32xf32>
    %839 = vector.shape_cast %811 : vector<8x1xi1> to vector<8x1xi1>
    %840 = vector.broadcast %839 : vector<8x1xi1> to vector<8x32xi1>
    %841 = arith.select %840, %838, %786 : vector<8x32xi1>, vector<8x32xf32>
    %842 = arith.extui %811 : vector<8x1xi1> to vector<8x1xi32>
    %843 = arith.sitofp %842 : vector<8x1xi32> to vector<8x1xf32>
    %844 = vector.broadcast %843 : vector<8x1xf32> to vector<8x8xf32>
    %845 = arith.mulf %844, %31 : vector<8x8xf32>
    %cst_257 = arith.constant dense<0.000000e+00> : vector<8xf32>
    %846 = vector.multi_reduction <add>, %845, %cst_257 [0] : vector<8x8xf32> to vector<8xf32>
    %847 = vector.shape_cast %846 : vector<8xf32> to vector<1x8xf32>
    %c8_i32_258 = arith.constant 8 : i32
    %848 = arith.addi %c8_i32_258, %c5_i32_246 : i32
    %849 = arith.index_cast %848 : i32 to index
    %c0_259 = arith.constant 0 : index
    %850 = vector.load %arg13[%849, %c0_259] : memref<16x8xf32, #tpu.memory_space<vmem>>, vector<1x8xf32>
    tpu.vector_store %arg13[%849, %c0_259], %847 {strides = array<i32>} : memref<16x8xf32, #tpu.memory_space<vmem>>, vector<1x8xf32>,
    %c6_i32_260 = arith.constant 6 : i32
    %851 = arith.index_cast %c6_i32_260 : i32 to index
    %c0_261 = arith.constant 0 : index
    %c0_262 = arith.constant 0 : index
    %852 = vector.load %arg14[%851, %c0_261, %c0_262] : memref<8x8x96xf32, #tpu.memory_space<vmem>>, vector<1x8x96xf32>
    %853 = vector.shape_cast %852 : vector<1x8x96xf32> to vector<8x96xf32>
    %cst_263 = arith.constant dense<0.000000e+00> : vector<8x96xf32>
    %854 = tpu.matmul %841, %20, %cst_263 {dimension_numbers = #tpu.dot_dimension_numbers<[1], [0], [0], [1], [0, 0, 1, 1], [], []>} : vector<8x32xf32>, vector<32x96xf32>, vector<8x96xf32> -> vector<8x96xf32>
    %855 = arith.mulf %841, %23 : vector<8x32xf32>
    %cst_264 = arith.constant dense<0.000000e+00> : vector<8xf32>
    %856 = vector.multi_reduction <add>, %855, %cst_264 [1] : vector<8x32xf32> to vector<8xf32>
    %857 = vector.shape_cast %856 : vector<8xf32> to vector<8x1xf32>
    %858 = arith.index_cast %c6_i32_260 : i32 to index
    %c0_265 = arith.constant 0 : index
    %859 = vector.load %arg17[%858, %c0_265] : memref<8x8xf32, #tpu.memory_space<vmem>>, vector<1x8xf32>
    %860 = vector.broadcast %859 : vector<1x8xf32> to vector<8x8xf32>
    %861 = arith.mulf %860, %31 : vector<8x8xf32>
    %cst_266 = arith.constant dense<0.000000e+00> : vector<8xf32>
    %862 = vector.multi_reduction <add>, %861, %cst_266 [1] : vector<8x8xf32> to vector<8xf32>
    %863 = vector.shape_cast %862 : vector<8xf32> to vector<8x1xf32>
    %864 = arith.addf %857, %863 : vector<8x1xf32>
    %cst_267 = arith.constant 0.000000e+00 : f32
    %865 = vector.broadcast %cst_267 : f32 to vector<8x1xf32>
    %866 = arith.cmpf oge, %864, %865 : vector<8x1xf32>
    %867 = vector.extract_strided_slice %853 {offsets = [0, 0], sizes = [8, 32], strides = [1, 1]} : vector<8x96xf32> to vector<8x32xf32>
    %868 = vector.extract_strided_slice %854 {offsets = [0, 0], sizes = [8, 32], strides = [1, 1]} : vector<8x96xf32> to vector<8x32xf32>
    %869 = arith.addf %867, %868 : vector<8x32xf32>
    %870 = arith.negf %869 : vector<8x32xf32>
    %871 = math.exp %870 : vector<8x32xf32>
    %cst_268 = arith.constant 1.000000e+00 : f32
    %872 = vector.broadcast %cst_268 : f32 to vector<8x32xf32>
    %873 = arith.addf %872, %871 : vector<8x32xf32>
    %874 = arith.divf %872, %873 : vector<8x32xf32>
    %875 = vector.extract_strided_slice %853 {offsets = [0, 32], sizes = [8, 32], strides = [1, 1]} : vector<8x96xf32> to vector<8x32xf32>
    %876 = vector.extract_strided_slice %854 {offsets = [0, 32], sizes = [8, 32], strides = [1, 1]} : vector<8x96xf32> to vector<8x32xf32>
    %877 = arith.addf %875, %876 : vector<8x32xf32>
    %878 = arith.negf %877 : vector<8x32xf32>
    %879 = math.exp %878 : vector<8x32xf32>
    %cst_269 = arith.constant 1.000000e+00 : f32
    %880 = vector.broadcast %cst_269 : f32 to vector<8x32xf32>
    %881 = arith.addf %880, %879 : vector<8x32xf32>
    %882 = arith.divf %880, %881 : vector<8x32xf32>
    %883 = vector.extract_strided_slice %853 {offsets = [0, 64], sizes = [8, 32], strides = [1, 1]} : vector<8x96xf32> to vector<8x32xf32>
    %884 = vector.extract_strided_slice %854 {offsets = [0, 64], sizes = [8, 32], strides = [1, 1]} : vector<8x96xf32> to vector<8x32xf32>
    %885 = arith.addf %884, %26 : vector<8x32xf32>
    %886 = arith.mulf %874, %885 : vector<8x32xf32>
    %887 = arith.addf %883, %886 : vector<8x32xf32>
    %888 = math.tanh %887 : vector<8x32xf32>
    %cst_270 = arith.constant 1.000000e+00 : f32
    %889 = vector.broadcast %cst_270 : f32 to vector<8x32xf32>
    %890 = arith.subf %889, %882 : vector<8x32xf32>
    %891 = arith.mulf %890, %888 : vector<8x32xf32>
    %892 = arith.mulf %882, %841 : vector<8x32xf32>
    %893 = arith.addf %891, %892 : vector<8x32xf32>
    %894 = vector.shape_cast %866 : vector<8x1xi1> to vector<8x1xi1>
    %895 = vector.broadcast %894 : vector<8x1xi1> to vector<8x32xi1>
    %896 = arith.select %895, %893, %841 : vector<8x32xi1>, vector<8x32xf32>
    %897 = arith.extui %866 : vector<8x1xi1> to vector<8x1xi32>
    %898 = arith.sitofp %897 : vector<8x1xi32> to vector<8x1xf32>
    %899 = vector.broadcast %898 : vector<8x1xf32> to vector<8x8xf32>
    %900 = arith.mulf %899, %31 : vector<8x8xf32>
    %cst_271 = arith.constant dense<0.000000e+00> : vector<8xf32>
    %901 = vector.multi_reduction <add>, %900, %cst_271 [0] : vector<8x8xf32> to vector<8xf32>
    %902 = vector.shape_cast %901 : vector<8xf32> to vector<1x8xf32>
    %c8_i32_272 = arith.constant 8 : i32
    %903 = arith.addi %c8_i32_272, %c6_i32_260 : i32
    %904 = arith.index_cast %903 : i32 to index
    %c0_273 = arith.constant 0 : index
    %905 = vector.load %arg13[%904, %c0_273] : memref<16x8xf32, #tpu.memory_space<vmem>>, vector<1x8xf32>
    tpu.vector_store %arg13[%904, %c0_273], %902 {strides = array<i32>} : memref<16x8xf32, #tpu.memory_space<vmem>>, vector<1x8xf32>,
    %c7_i32_274 = arith.constant 7 : i32
    %906 = arith.index_cast %c7_i32_274 : i32 to index
    %c0_275 = arith.constant 0 : index
    %c0_276 = arith.constant 0 : index
    %907 = vector.load %arg14[%906, %c0_275, %c0_276] : memref<8x8x96xf32, #tpu.memory_space<vmem>>, vector<1x8x96xf32>
    %908 = vector.shape_cast %907 : vector<1x8x96xf32> to vector<8x96xf32>
    %cst_277 = arith.constant dense<0.000000e+00> : vector<8x96xf32>
    %909 = tpu.matmul %896, %20, %cst_277 {dimension_numbers = #tpu.dot_dimension_numbers<[1], [0], [0], [1], [0, 0, 1, 1], [], []>} : vector<8x32xf32>, vector<32x96xf32>, vector<8x96xf32> -> vector<8x96xf32>
    %910 = arith.mulf %896, %23 : vector<8x32xf32>
    %cst_278 = arith.constant dense<0.000000e+00> : vector<8xf32>
    %911 = vector.multi_reduction <add>, %910, %cst_278 [1] : vector<8x32xf32> to vector<8xf32>
    %912 = vector.shape_cast %911 : vector<8xf32> to vector<8x1xf32>
    %913 = arith.index_cast %c7_i32_274 : i32 to index
    %c0_279 = arith.constant 0 : index
    %914 = vector.load %arg17[%913, %c0_279] : memref<8x8xf32, #tpu.memory_space<vmem>>, vector<1x8xf32>
    %915 = vector.broadcast %914 : vector<1x8xf32> to vector<8x8xf32>
    %916 = arith.mulf %915, %31 : vector<8x8xf32>
    %cst_280 = arith.constant dense<0.000000e+00> : vector<8xf32>
    %917 = vector.multi_reduction <add>, %916, %cst_280 [1] : vector<8x8xf32> to vector<8xf32>
    %918 = vector.shape_cast %917 : vector<8xf32> to vector<8x1xf32>
    %919 = arith.addf %912, %918 : vector<8x1xf32>
    %cst_281 = arith.constant 0.000000e+00 : f32
    %920 = vector.broadcast %cst_281 : f32 to vector<8x1xf32>
    %921 = arith.cmpf oge, %919, %920 : vector<8x1xf32>
    %922 = vector.extract_strided_slice %908 {offsets = [0, 0], sizes = [8, 32], strides = [1, 1]} : vector<8x96xf32> to vector<8x32xf32>
    %923 = vector.extract_strided_slice %909 {offsets = [0, 0], sizes = [8, 32], strides = [1, 1]} : vector<8x96xf32> to vector<8x32xf32>
    %924 = arith.addf %922, %923 : vector<8x32xf32>
    %925 = arith.negf %924 : vector<8x32xf32>
    %926 = math.exp %925 : vector<8x32xf32>
    %cst_282 = arith.constant 1.000000e+00 : f32
    %927 = vector.broadcast %cst_282 : f32 to vector<8x32xf32>
    %928 = arith.addf %927, %926 : vector<8x32xf32>
    %929 = arith.divf %927, %928 : vector<8x32xf32>
    %930 = vector.extract_strided_slice %908 {offsets = [0, 32], sizes = [8, 32], strides = [1, 1]} : vector<8x96xf32> to vector<8x32xf32>
    %931 = vector.extract_strided_slice %909 {offsets = [0, 32], sizes = [8, 32], strides = [1, 1]} : vector<8x96xf32> to vector<8x32xf32>
    %932 = arith.addf %930, %931 : vector<8x32xf32>
    %933 = arith.negf %932 : vector<8x32xf32>
    %934 = math.exp %933 : vector<8x32xf32>
    %cst_283 = arith.constant 1.000000e+00 : f32
    %935 = vector.broadcast %cst_283 : f32 to vector<8x32xf32>
    %936 = arith.addf %935, %934 : vector<8x32xf32>
    %937 = arith.divf %935, %936 : vector<8x32xf32>
    %938 = vector.extract_strided_slice %908 {offsets = [0, 64], sizes = [8, 32], strides = [1, 1]} : vector<8x96xf32> to vector<8x32xf32>
    %939 = vector.extract_strided_slice %909 {offsets = [0, 64], sizes = [8, 32], strides = [1, 1]} : vector<8x96xf32> to vector<8x32xf32>
    %940 = arith.addf %939, %26 : vector<8x32xf32>
    %941 = arith.mulf %929, %940 : vector<8x32xf32>
    %942 = arith.addf %938, %941 : vector<8x32xf32>
    %943 = math.tanh %942 : vector<8x32xf32>
    %cst_284 = arith.constant 1.000000e+00 : f32
    %944 = vector.broadcast %cst_284 : f32 to vector<8x32xf32>
    %945 = arith.subf %944, %937 : vector<8x32xf32>
    %946 = arith.mulf %945, %943 : vector<8x32xf32>
    %947 = arith.mulf %937, %896 : vector<8x32xf32>
    %948 = arith.addf %946, %947 : vector<8x32xf32>
    %949 = vector.shape_cast %921 : vector<8x1xi1> to vector<8x1xi1>
    %950 = vector.broadcast %949 : vector<8x1xi1> to vector<8x32xi1>
    %951 = arith.select %950, %948, %896 : vector<8x32xi1>, vector<8x32xf32>
    %952 = arith.extui %921 : vector<8x1xi1> to vector<8x1xi32>
    %953 = arith.sitofp %952 : vector<8x1xi32> to vector<8x1xf32>
    %954 = vector.broadcast %953 : vector<8x1xf32> to vector<8x8xf32>
    %955 = arith.mulf %954, %31 : vector<8x8xf32>
    %cst_285 = arith.constant dense<0.000000e+00> : vector<8xf32>
    %956 = vector.multi_reduction <add>, %955, %cst_285 [0] : vector<8x8xf32> to vector<8xf32>
    %957 = vector.shape_cast %956 : vector<8xf32> to vector<1x8xf32>
    %c8_i32_286 = arith.constant 8 : i32
    %958 = arith.addi %c8_i32_286, %c7_i32_274 : i32
    %959 = arith.index_cast %958 : i32 to index
    %c0_287 = arith.constant 0 : index
    %960 = vector.load %arg13[%959, %c0_287] : memref<16x8xf32, #tpu.memory_space<vmem>>, vector<1x8xf32>
    tpu.vector_store %arg13[%959, %c0_287], %957 {strides = array<i32>} : memref<16x8xf32, #tpu.memory_space<vmem>>, vector<1x8xf32>,
    %c8_i32_288 = arith.constant 8 : i32
    %c0_289 = arith.constant 0 : index
    %c0_290 = arith.constant 0 : index
    %961 = vector.load %arg18[%c0_289, %c0_290] : memref<8x32xf32, #tpu.memory_space<vmem>>, vector<8x32xf32>
    %962 = arith.addf %961, %951 : vector<8x32xf32>
    %c0_291 = arith.constant 0 : index
    %c0_292 = arith.constant 0 : index
    %963 = vector.load %arg18[%c0_291, %c0_292] : memref<8x32xf32, #tpu.memory_space<vmem>>, vector<8x32xf32>
    tpu.vector_store %arg18[%c0_291, %c0_292], %962 {strides = array<i32>} : memref<8x32xf32, #tpu.memory_space<vmem>>, vector<8x32xf32>,
    %c0_293 = arith.constant 0 : index
    %c0_294 = arith.constant 0 : index
    %964 = vector.load %arg18[%c0_293, %c0_294] : memref<8x32xf32, #tpu.memory_space<vmem>>, vector<8x32xf32>
    %c0_295 = arith.constant 0 : index
    %c0_296 = arith.constant 0 : index
    %965 = vector.load %arg10[%c0_295, %c0_296] : memref<32x32xf32, #tpu.memory_space<vmem>>, vector<32x32xf32>
    %cst_297 = arith.constant dense<0.000000e+00> : vector<8x32xf32>
    %966 = tpu.matmul %964, %965, %cst_297 {dimension_numbers = #tpu.dot_dimension_numbers<[1], [0], [0], [1], [0, 0, 1, 1], [], []>} : vector<8x32xf32>, vector<32x32xf32>, vector<8x32xf32> -> vector<8x32xf32>
    %c0_298 = arith.constant 0 : index
    %c0_299 = arith.constant 0 : index
    %967 = vector.load %arg11[%c0_298, %c0_299] : memref<1x32xf32, #tpu.memory_space<vmem>>, vector<1x32xf32>
    %968 = vector.broadcast %967 : vector<1x32xf32> to vector<8x32xf32>
    %969 = arith.addf %966, %968 : vector<8x32xf32>
    %c0_300 = arith.constant 0 : index
    %c0_301 = arith.constant 0 : index
    %970 = vector.load %arg12[%c0_300, %c0_301] : memref<8x32xf32, #tpu.memory_space<vmem>>, vector<8x32xf32>
    tpu.vector_store %arg12[%c0_300, %c0_301], %969 {strides = array<i32>} : memref<8x32xf32, #tpu.memory_space<vmem>>, vector<8x32xf32>,
    return
  }
}

</mosaic_0001>

<llo_original>
// kernel: tpu_custom_call.1
$region0: #{tpu_custom_call.1}
  #allocation0 [shape = 'u32[]', space=smem, size = 0x4, offset = 0x4, fixed_abs, tag = 'smem constant byte address 0x4 - core index']
  #allocation1 [shape = 'u32[144,128]{1,0:T(1,128)}', space=vmem, size = 0x12000, scoped, tag = 'internal scratch']
  #allocation2 [shape = 'f32[8,8,96]{2,1,0:T(8,128)}', space=vmem, size = 0x8000, scoped, tag = 'scratch operand']
  #allocation3 [shape = 'f32[8,8,32]{2,1,0:T(8,128)}', space=vmem, size = 0x8000, scoped, tag = 'scratch operand']
  #allocation4 [shape = 'f32[8,8,32]{2,1,0:T(8,128)}', space=vmem, size = 0x8000, scoped, tag = 'scratch operand']
  #allocation5 [shape = 'f32[8,8]{1,0:T(8,128)}', space=vmem, size = 0x1000, scoped, tag = 'scratch operand']
  #allocation6 [shape = 'f32[8,32]{1,0:T(8,128)}', space=vmem, size = 0x1000, scoped, tag = 'scratch operand']
  %s0 = inlined_call_operand.hbm [shape: f32[64,32], index: 0, kind: input, shape index: {}]
  %s1 = inlined_call_operand.hbm [shape: f32[2,8,8], index: 1, kind: input, shape index: {}]
  %s2 = inlined_call_operand.hbm [shape: f32[32,128], index: 2, kind: input, shape index: {}]
  %s3 = inlined_call_operand.hbm [shape: f32[1,128], index: 3, kind: input, shape index: {}]
  %s4 = inlined_call_operand.hbm [shape: f32[32,32], index: 4, kind: input, shape index: {}]
  %s5 = inlined_call_operand.hbm [shape: f32[1,32], index: 5, kind: input, shape index: {}]
  %s6 = inlined_call_operand.hbm [shape: f32[1,32], index: 6, kind: input, shape index: {}]
  %s7 = inlined_call_operand.hbm [shape: f32[32,96], index: 7, kind: input, shape index: {}]
  %s8 = inlined_call_operand.hbm [shape: f32[1,32], index: 8, kind: input, shape index: {}]
  %s9 = inlined_call_operand.hbm [shape: f32[1,32], index: 9, kind: input, shape index: {}]
  %s10 = inlined_call_operand.hbm [shape: f32[32,32], index: 10, kind: input, shape index: {}]
  %s11 = inlined_call_operand.hbm [shape: f32[1,32], index: 11, kind: input, shape index: {}]
  %s12 = inlined_call_operand.hbm [shape: f32[8,32], index: 12, kind: output, shape index: {0}]
  %s13 = inlined_call_operand.hbm [shape: f32[16,8], index: 13, kind: output, shape index: {1}]
  %14 = xla_tuple %s12, %s13
  %s15 = sld [smem:[#allocation0]]
  $region114: #{tpu_custom_call.1} parent=0
    _
  %s17 = ssub.s32 1, %s15
  %s18 = scalar_select 0, %s17, %s15
  $region1: #{tpu_custom_call.1} parent=0
    #allocation7 [shape = 'u8[32768]{0}', space=vmem, size = 0x8000, scoped, tag = 'input window, operand 0, single buffered']
    #allocation8 [shape = 's32[1]{0}', space=sflag, size = 0x4, scoped, tag = 'scoped memory for tpu_custom_call.1']
    #allocation9 [shape = 's32[1]{0}', space=sflag, size = 0x4, scoped, tag = 'scoped memory for tpu_custom_call.1']
    #allocation10 [shape = 'u8[8192]{0}', space=vmem, size = 0x2000, scoped, tag = 'input window, operand 1, single buffered']
    #allocation11 [shape = 's32[1]{0}', space=sflag, size = 0x4, scoped, tag = 'scoped memory for tpu_custom_call.1']
    #allocation12 [shape = 'u8[16384]{0}', space=vmem, size = 0x4000, scoped, tag = 'input window, operand 2, single buffered']
    #allocation13 [shape = 'u8[512]{0}', space=vmem, size = 0x400, scoped, tag = 'input window, operand 3, single buffered']
    #allocation14 [shape = 's32[1]{0}', space=sflag, size = 0x4, scoped, tag = 'scoped memory for tpu_custom_call.1']
    #allocation15 [shape = 'u8[16384]{0}', space=vmem, size = 0x4000, scoped, tag = 'input window, operand 4, single buffered']
    #allocation16 [shape = 'u8[512]{0}', space=vmem, size = 0x400, scoped, tag = 'input window, operand 5, single buffered']
    #allocation17 [shape = 's32[1]{0}', space=sflag, size = 0x4, scoped, tag = 'scoped memory for tpu_custom_call.1']
    #allocation18 [shape = 'u8[512]{0}', space=vmem, size = 0x400, scoped, tag = 'input window, operand 6, single buffered']
    #allocation19 [shape = 'u8[16384]{0}', space=vmem, size = 0x4000, scoped, tag = 'input window, operand 7, single buffered']
    #allocation20 [shape = 's32[1]{0}', space=sflag, size = 0x4, scoped, tag = 'scoped memory for tpu_custom_call.1']
    #allocation21 [shape = 'u8[512]{0}', space=vmem, size = 0x400, scoped, tag = 'input window, operand 8, single buffered']
    #allocation22 [shape = 'u8[512]{0}', space=vmem, size = 0x400, scoped, tag = 'input window, operand 9, single buffered']
    #allocation23 [shape = 's32[1]{0}', space=sflag, size = 0x4, scoped, tag = 'scoped memory for tpu_custom_call.1']
    #allocation24 [shape = 'u8[16384]{0}', space=vmem, size = 0x4000, scoped, tag = 'input window, operand 10, single buffered']
    #allocation25 [shape = 'u8[512]{0}', space=vmem, size = 0x400, scoped, tag = 'input window, operand 11, single buffered']
    #allocation26 [shape = 's32[1]{0}', space=sflag, size = 0x4, scoped, tag = 'scoped memory for tpu_custom_call.1']
    #allocation27 [shape = 'u8[4096]{0}', space=vmem, size = 0x1000, scoped, tag = 'output window, operand 0, single buffered']
    #allocation28 [shape = 'u8[8192]{0}', space=vmem, size = 0x2000, scoped, tag = 'output window, operand 1, single buffered']
    #allocation29 [shape = 's32[1]{0}', space=sflag, size = 0x4, scoped, tag = 'scoped memory for tpu_custom_call.1']
    %19 = vsyncpa [#allocation8], 0
    %20 = vsyncpa [#allocation11], 0
    %21 = vsyncpa [#allocation14], 0
    %22 = vsyncpa [#allocation17], 0
    %23 = vsyncpa [#allocation20], 0
    %24 = vsyncpa [#allocation23], 0
    %25 = vsyncpa [#allocation26], 0
    %26 = vsyncpa [#allocation9], 0
    %27 = vsyncpa [#allocation29], 0
    // Predicated region
    $region2: #{tpu_custom_call.1} parent=1 // pred_check
      _
    $region3: #{tpu_custom_call.1} parent=1 // pred_check_branch
      %29 = sbr.rel (0) target = $region5
    $region4: #{tpu_custom_call.1} parent=1 // pred_region
      %s31 = ssub.s32 1024, 1024
      %32 = vsyncadd [#allocation8], %s31
      %s33 = sshll.u32 [#allocation7], 4
      %s34 = int_to_ptr.vmem [resolvable:$true] %s33
      %39 = dma.hbm_to_vmem [thread:$0]  %s0, 1024, %s34, [#allocation8], 128, 128, 8
    $region5: #{tpu_custom_call.1} parent=1 // pred_fallthru
      _
    // Predicated region
    $region6: #{tpu_custom_call.1} parent=1 // pred_check
      _
    $region7: #{tpu_custom_call.1} parent=1 // pred_check_branch
      %41 = sbr.rel (0) target = $region9
    $region8: #{tpu_custom_call.1} parent=1 // pred_region
      %s43 = ssub.s32 256, 256
      %44 = vsyncadd [#allocation11], %s43
      %s45 = sshll.u32 [#allocation10], 4
      %s46 = int_to_ptr.vmem [resolvable:$true] %s45
      %51 = dma.hbm_to_vmem [thread:$0]  %s1, 256, %s46, [#allocation11], 128, 128, 8
    $region9: #{tpu_custom_call.1} parent=1 // pred_fallthru
      _
    // Predicated region
    $region10: #{tpu_custom_call.1} parent=1 // pred_check
      _
    $region11: #{tpu_custom_call.1} parent=1 // pred_check_branch
      %53 = sbr.rel (0) target = $region13
    $region12: #{tpu_custom_call.1} parent=1 // pred_region
      %s55 = ssub.s32 512, 512
      %56 = vsyncadd [#allocation11], %s55
      %s57 = sshll.u32 [#allocation12], 4
      %s58 = int_to_ptr.vmem [resolvable:$true] %s57
      %63 = dma.hbm_to_vmem [thread:$0]  %s2, 512, %s58, [#allocation11], 128, 128, 8
    $region13: #{tpu_custom_call.1} parent=1 // pred_fallthru
      _
    // Predicated region
    $region14: #{tpu_custom_call.1} parent=1 // pred_check
      _
    $region15: #{tpu_custom_call.1} parent=1 // pred_check_branch
      %65 = sbr.rel (0) target = $region17
    $region16: #{tpu_custom_call.1} parent=1 // pred_region
      %s67 = ssub.s32 16, 16
      %68 = vsyncadd [#allocation14], %s67
      %s70 = sshll.u32 [#allocation13], 4
      %s71 = int_to_ptr.vmem [resolvable:$true] %s70
      %73 = dma.hbm_to_vmem [thread:$0]  %s3, 16, %s71, [#allocation14]
    $region17: #{tpu_custom_call.1} parent=1 // pred_fallthru
      _
    // Predicated region
    $region18: #{tpu_custom_call.1} parent=1 // pred_check
      _
    $region19: #{tpu_custom_call.1} parent=1 // pred_check_branch
      %75 = sbr.rel (0) target = $region21
    $region20: #{tpu_custom_call.1} parent=1 // pred_region
      %s77 = ssub.s32 512, 512
      %78 = vsyncadd [#allocation14], %s77
      %s79 = sshll.u32 [#allocation15], 4
      %s80 = int_to_ptr.vmem [resolvable:$true] %s79
      %85 = dma.hbm_to_vmem [thread:$0]  %s4, 512, %s80, [#allocation14], 128, 128, 8
    $region21: #{tpu_custom_call.1} parent=1 // pred_fallthru
      _
    // Predicated region
    $region22: #{tpu_custom_call.1} parent=1 // pred_check
      _
    $region23: #{tpu_custom_call.1} parent=1 // pred_check_branch
      %87 = sbr.rel (0) target = $region25
    $region24: #{tpu_custom_call.1} parent=1 // pred_region
      %s89 = ssub.s32 16, 16
      %90 = vsyncadd [#allocation17], %s89
      %s92 = sshll.u32 [#allocation16], 4
      %s93 = int_to_ptr.vmem [resolvable:$true] %s92
      %95 = dma.hbm_to_vmem [thread:$0]  %s5, 16, %s93, [#allocation17]
    $region25: #{tpu_custom_call.1} parent=1 // pred_fallthru
      _
    // Predicated region
    $region26: #{tpu_custom_call.1} parent=1 // pred_check
      _
    $region27: #{tpu_custom_call.1} parent=1 // pred_check_branch
      %97 = sbr.rel (0) target = $region29
    $region28: #{tpu_custom_call.1} parent=1 // pred_region
      %s99 = ssub.s32 16, 16
      %100 = vsyncadd [#allocation17], %s99
      %s102 = sshll.u32 [#allocation18], 4
      %s103 = int_to_ptr.vmem [resolvable:$true] %s102
      %105 = dma.hbm_to_vmem [thread:$0]  %s6, 16, %s103, [#allocation17]
    $region29: #{tpu_custom_call.1} parent=1 // pred_fallthru
      _
    // Predicated region
    $region30: #{tpu_custom_call.1} parent=1 // pred_check
      _
    $region31: #{tpu_custom_call.1} parent=1 // pred_check_branch
      %107 = sbr.rel (0) target = $region33
    $region32: #{tpu_custom_call.1} parent=1 // pred_region
      %s109 = ssub.s32 512, 512
      %110 = vsyncadd [#allocation20], %s109
      %s111 = sshll.u32 [#allocation19], 4
      %s112 = int_to_ptr.vmem [resolvable:$true] %s111
      %117 = dma.hbm_to_vmem [thread:$0]  %s7, 512, %s112, [#allocation20], 128, 128, 8
    $region33: #{tpu_custom_call.1} parent=1 // pred_fallthru
      _
    // Predicated region
    $region34: #{tpu_custom_call.1} parent=1 // pred_check
      _
    $region35: #{tpu_custom_call.1} parent=1 // pred_check_branch
      %119 = sbr.rel (0) target = $region37
    $region36: #{tpu_custom_call.1} parent=1 // pred_region
      %s121 = ssub.s32 16, 16
      %122 = vsyncadd [#allocation20], %s121
      %s124 = sshll.u32 [#allocation21], 4
      %s125 = int_to_ptr.vmem [resolvable:$true] %s124
      %127 = dma.hbm_to_vmem [thread:$0]  %s8, 16, %s125, [#allocation20]
    $region37: #{tpu_custom_call.1} parent=1 // pred_fallthru
      _
    // Predicated region
    $region38: #{tpu_custom_call.1} parent=1 // pred_check
      _
    $region39: #{tpu_custom_call.1} parent=1 // pred_check_branch
      %129 = sbr.rel (0) target = $region41
    $region40: #{tpu_custom_call.1} parent=1 // pred_region
      %s131 = ssub.s32 16, 16
      %132 = vsyncadd [#allocation23], %s131
      %s134 = sshll.u32 [#allocation22], 4
      %s135 = int_to_ptr.vmem [resolvable:$true] %s134
      %137 = dma.hbm_to_vmem [thread:$0]  %s9, 16, %s135, [#allocation23]
    $region41: #{tpu_custom_call.1} parent=1 // pred_fallthru
      _
    // Predicated region
    $region42: #{tpu_custom_call.1} parent=1 // pred_check
      _
    $region43: #{tpu_custom_call.1} parent=1 // pred_check_branch
      %139 = sbr.rel (0) target = $region45
    $region44: #{tpu_custom_call.1} parent=1 // pred_region
      %s141 = ssub.s32 512, 512
      %142 = vsyncadd [#allocation23], %s141
      %s143 = sshll.u32 [#allocation24], 4
      %s144 = int_to_ptr.vmem [resolvable:$true] %s143
      %149 = dma.hbm_to_vmem [thread:$0]  %s10, 512, %s144, [#allocation23], 128, 128, 8
    $region45: #{tpu_custom_call.1} parent=1 // pred_fallthru
      _
    // Predicated region
    $region46: #{tpu_custom_call.1} parent=1 // pred_check
      _
    $region47: #{tpu_custom_call.1} parent=1 // pred_check_branch
      %151 = sbr.rel (0) target = $region49
    $region48: #{tpu_custom_call.1} parent=1 // pred_region
      %s153 = ssub.s32 16, 16
      %154 = vsyncadd [#allocation26], %s153
      %s156 = sshll.u32 [#allocation25], 4
      %s157 = int_to_ptr.vmem [resolvable:$true] %s156
      %159 = dma.hbm_to_vmem [thread:$0]  %s11, 16, %s157, [#allocation26]
    $region49: #{tpu_custom_call.1} parent=1 // pred_fallthru
      _
    // Predicated region
    $region50: #{tpu_custom_call.1} parent=1 // pred_check
      _
    $region51: #{tpu_custom_call.1} parent=1 // pred_check_branch
      %161 = sbr.rel (0) target = $region53
    $region52: #{tpu_custom_call.1} parent=1 // pred_region
      %162 = dma.done [#allocation8], 1024
    $region53: #{tpu_custom_call.1} parent=1 // pred_fallthru
      _
    // Predicated region
    $region54: #{tpu_custom_call.1} parent=1 // pred_check
      _
    $region55: #{tpu_custom_call.1} parent=1 // pred_check_branch
      %164 = sbr.rel (0) target = $region57
    $region56: #{tpu_custom_call.1} parent=1 // pred_region
      %165 = dma.done [#allocation11], 256
    $region57: #{tpu_custom_call.1} parent=1 // pred_fallthru
      _
    // Predicated region
    $region58: #{tpu_custom_call.1} parent=1 // pred_check
      _
    $region59: #{tpu_custom_call.1} parent=1 // pred_check_branch
      %167 = sbr.rel (0) target = $region61
    $region60: #{tpu_custom_call.1} parent=1 // pred_region
      %168 = dma.done [#allocation11], 512
    $region61: #{tpu_custom_call.1} parent=1 // pred_fallthru
      _
    // Predicated region
    $region62: #{tpu_custom_call.1} parent=1 // pred_check
      _
    $region63: #{tpu_custom_call.1} parent=1 // pred_check_branch
      %170 = sbr.rel (0) target = $region65
    $region64: #{tpu_custom_call.1} parent=1 // pred_region
      %171 = dma.done [#allocation14], 16
    $region65: #{tpu_custom_call.1} parent=1 // pred_fallthru
      _
    // Predicated region
    $region66: #{tpu_custom_call.1} parent=1 // pred_check
      _
    $region67: #{tpu_custom_call.1} parent=1 // pred_check_branch
      %173 = sbr.rel (0) target = $region69
    $region68: #{tpu_custom_call.1} parent=1 // pred_region
      %174 = dma.done [#allocation14], 512
    $region69: #{tpu_custom_call.1} parent=1 // pred_fallthru
      _
    // Predicated region
    $region70: #{tpu_custom_call.1} parent=1 // pred_check
      _
    $region71: #{tpu_custom_call.1} parent=1 // pred_check_branch
      %176 = sbr.rel (0) target = $region73
    $region72: #{tpu_custom_call.1} parent=1 // pred_region
      %177 = dma.done [#allocation17], 16
    $region73: #{tpu_custom_call.1} parent=1 // pred_fallthru
      _
    // Predicated region
    $region74: #{tpu_custom_call.1} parent=1 // pred_check
      _
    $region75: #{tpu_custom_call.1} parent=1 // pred_check_branch
      %179 = sbr.rel (0) target = $region77
    $region76: #{tpu_custom_call.1} parent=1 // pred_region
      %180 = dma.done [#allocation17], 16
    $region77: #{tpu_custom_call.1} parent=1 // pred_fallthru
      _
    // Predicated region
    $region78: #{tpu_custom_call.1} parent=1 // pred_check
      _
    $region79: #{tpu_custom_call.1} parent=1 // pred_check_branch
      %182 = sbr.rel (0) target = $region81
    $region80: #{tpu_custom_call.1} parent=1 // pred_region
      %183 = dma.done [#allocation20], 512
    $region81: #{tpu_custom_call.1} parent=1 // pred_fallthru
      _
    // Predicated region
    $region82: #{tpu_custom_call.1} parent=1 // pred_check
      _
    $region83: #{tpu_custom_call.1} parent=1 // pred_check_branch
      %185 = sbr.rel (0) target = $region85
    $region84: #{tpu_custom_call.1} parent=1 // pred_region
      %186 = dma.done [#allocation20], 16
    $region85: #{tpu_custom_call.1} parent=1 // pred_fallthru
      _
    // Predicated region
    $region86: #{tpu_custom_call.1} parent=1 // pred_check
      _
    $region87: #{tpu_custom_call.1} parent=1 // pred_check_branch
      %188 = sbr.rel (0) target = $region89
    $region88: #{tpu_custom_call.1} parent=1 // pred_region
      %189 = dma.done [#allocation23], 16
    $region89: #{tpu_custom_call.1} parent=1 // pred_fallthru
      _
    // Predicated region
    $region90: #{tpu_custom_call.1} parent=1 // pred_check
      _
    $region91: #{tpu_custom_call.1} parent=1 // pred_check_branch
      %191 = sbr.rel (0) target = $region93
    $region92: #{tpu_custom_call.1} parent=1 // pred_region
      %192 = dma.done [#allocation23], 512
    $region93: #{tpu_custom_call.1} parent=1 // pred_fallthru
      _
    // Predicated region
    $region94: #{tpu_custom_call.1} parent=1 // pred_check
      _
    $region95: #{tpu_custom_call.1} parent=1 // pred_check_branch
      %194 = sbr.rel (0) target = $region97
    $region96: #{tpu_custom_call.1} parent=1 // pred_region
      %195 = dma.done [#allocation26], 16
    $region97: #{tpu_custom_call.1} parent=1 // pred_fallthru
      _
    %v196 = vld [vmem:[#allocation7] sm:$0xff]
    %v197 = vld [vmem:[#allocation7 + $0x8] sm:$0xff]
    %v198 = vld [vmem:[#allocation7 + $0x10] sm:$0xff]
    %v199 = vld [vmem:[#allocation7 + $0x18] sm:$0xff]
    %v200 = vld [vmem:[#allocation7 + $0x20] sm:$0xff]
    %v201 = vld [vmem:[#allocation7 + $0x28] sm:$0xff]
    %v202 = vld [vmem:[#allocation7 + $0x30] sm:$0xff]
    %v203 = vld [vmem:[#allocation7 + $0x38] sm:$0xff]
    %v204 = vld [vmem:[#allocation12] sm:$0xff]
    %v205 = vld [vmem:[#allocation12 + $0x8] sm:$0xff]
    %v206 = vld [vmem:[#allocation12 + $0x10] sm:$0xff]
    %v207 = vld [vmem:[#allocation12 + $0x18] sm:$0xff]
    %v208 = vld [vmem:[#allocation13] sm:$0x1]
    %v210 = vlaneseq
    %v211 = vshrl.u32 %v210, 7
    %v212 = vsub.s32 0, %v211
    %v213 = vrot.slane %v208, %v212
    %vm215 = vcmask 261120
    %v217 = vsel %vm215, %v196, 0
    %v220 = vsel %vm215, %v197, 0
    %v223 = vsel %vm215, %v198, 0
    %v226 = vsel %vm215, %v199, 0
    %v229 = vsel %vm215, %v200, 0
    %v232 = vsel %vm215, %v201, 0
    %v235 = vsel %vm215, %v202, 0
    %v238 = vsel %vm215, %v203, 0
    %240 = vmatprep.subr.mxu0 0.0
    %241 = vmatpush1.msra.mxu0 %v204
    %242 = vmatprep.subr.mxu0 0.0
    %243 = vmatpush1.msra.mxu0 %v205
    %244 = vmatprep.subr.mxu0 0.0
    %245 = vmatpush1.msra.mxu0 %v206
    %246 = vmatprep.subr.mxu0 0.0
    %247 = vmatpush1.msra.mxu0 %v207
    %248 = vmatprep.subr.mxu0 0.0
    %249 = vmatpush1.msra.mxu0 0.0
    %250 = vmatprep.subr.mxu0 0.0
    %251 = vmatpush1.msra.mxu0 0.0
    %252 = vmatprep.subr.mxu0 0.0
    %253 = vmatpush1.msra.mxu0 0.0
    %254 = vmatprep.subr.mxu0 0.0
    %255 = vmatpush1.msra.mxu0 0.0
    %256 = vmatprep.subr.mxu0 0.0
    %257 = vmatpush1.msra.mxu0 0.0
    %258 = vmatprep.subr.mxu0 0.0
    %259 = vmatpush1.msra.mxu0 0.0
    %260 = vmatprep.subr.mxu0 0.0
    %261 = vmatpush1.msra.mxu0 0.0
    %262 = vmatprep.subr.mxu0 0.0
    %263 = vmatpush1.msra.mxu0 0.0
    %264 = vmatprep.subr.mxu0 0.0
    %265 = vmatpush1.msra.mxu0 0.0
    %266 = vmatprep.subr.mxu0 0.0
    %267 = vmatpush1.msra.mxu0 0.0
    %268 = vmatprep.subr.mxu0 0.0
    %269 = vmatpush1.msra.mxu0 0.0
    %270 = vmatprep.subr.mxu0 0.0
    %271 = vmatpush1.msra.mxu0 0.0
    %272 = vmatprep.subr.mxu0 0.0
    %273 = vmatpush1.msra.mxu0 0.0
    %274 = vmatprep.subr.mxu0 0.0
    %275 = vmatpush1.msra.mxu0 0.0
    %276 = vmatprep.subr.mxu0 0.0
    %277 = vmatpush1.msra.mxu0 0.0
    %278 = vmatprep.subr.mxu0 0.0
    %279 = vmatpush1.msra.mxu0 0.0
    %280 = vmatprep.subr.mxu0 0.0
    %281 = vmatpush1.msra.mxu0 0.0
    %282 = vmatprep.subr.mxu0 0.0
    %283 = vmatpush1.msra.mxu0 0.0
    %284 = vmatprep.subr.mxu0 0.0
    %285 = vmatpush1.msra.mxu0 0.0
    %286 = vmatprep.subr.mxu0 0.0
    %287 = vmatpush1.msra.mxu0 0.0
    %288 = vmatprep.subr.mxu0 0.0
    %289 = vmatpush1.msra.mxu0 0.0
    %290 = vmatprep.subr.mxu0 0.0
    %291 = vmatpush1.msra.mxu0 0.0
    %292 = vmatprep.subr.mxu0 0.0
    %293 = vmatpush1.msra.mxu0 0.0
    %294 = vmatprep.subr.mxu0 0.0
    %295 = vmatpush1.msra.mxu0 0.0
    %296 = vmatprep.subr.mxu0 0.0
    %297 = vmatpush1.msra.mxu0 0.0
    %298 = vmatprep.subr.mxu0 0.0
    %299 = vmatpush1.msra.mxu0 0.0
    %300 = vmatprep.subr.mxu0 0.0
    %301 = vmatpush1.msra.mxu0 0.0
    %302 = vmatprep.subr.mxu0 0.0
    %303 = vmatpush1.msra.mxu0 0.0
    %304 = vmatprep.mubr.f32.mxu0 0.0
    %305 = vmatmul.mubr.f32.gmra.mrb[0].mxu0 %v217
    %v306 = vpop.f32.mrb[0].mxu0
    %v307 = vadd.f32 %v213, %v306
    %v308 = vpop.f32.mrb[0].mxu0
    %309 = vmatprep.mubr.f32.mxu0 0.0
    %310 = vmatmul.mubr.f32.gmra.mrb[0].mxu0 %v220
    %v311 = vpop.f32.mrb[0].mxu0
    %v312 = vadd.f32 %v213, %v311
    %v313 = vpop.f32.mrb[0].mxu0
    %314 = vmatprep.mubr.f32.mxu0 0.0
    %315 = vmatmul.mubr.f32.gmra.mrb[0].mxu0 %v223
    %v316 = vpop.f32.mrb[0].mxu0
    %v317 = vadd.f32 %v213, %v316
    %v318 = vpop.f32.mrb[0].mxu0
    %319 = vmatprep.mubr.f32.mxu0 0.0
    %320 = vmatmul.mubr.f32.gmra.mrb[0].mxu0 %v226
    %v321 = vpop.f32.mrb[0].mxu0
    %v322 = vadd.f32 %v213, %v321
    %v323 = vpop.f32.mrb[0].mxu0
    %324 = vmatprep.mubr.f32.mxu0 0.0
    %325 = vmatmul.mubr.f32.gmra.mrb[0].mxu0 %v229
    %v326 = vpop.f32.mrb[0].mxu0
    %v327 = vadd.f32 %v213, %v326
    %v328 = vpop.f32.mrb[0].mxu0
    %329 = vmatprep.mubr.f32.mxu0 0.0
    %330 = vmatmul.mubr.f32.gmra.mrb[0].mxu0 %v232
    %v331 = vpop.f32.mrb[0].mxu0
    %v332 = vadd.f32 %v213, %v331
    %v333 = vpop.f32.mrb[0].mxu0
    %334 = vmatprep.mubr.f32.mxu0 0.0
    %335 = vmatmul.mubr.f32.gmra.mrb[0].mxu0 %v235
    %v336 = vpop.f32.mrb[0].mxu0
    %v337 = vadd.f32 %v213, %v336
    %v338 = vpop.f32.mrb[0].mxu0
    %339 = vmatprep.mubr.f32.mxu0 0.0
    %340 = vmatmul.mubr.f32.gmra.mrb[0].mxu0 %v238
    %v341 = vpop.f32.mrb[0].mxu0
    %v342 = vadd.f32 %v213, %v341
    %v343 = vpop.f32.mrb[0].mxu0
    %344 = vdwg.mxu0
    %345 = vst.msk [vmem:[#allocation3] sm:$0xff] %vm215, %v307
    %346 = vst.msk [vmem:[#allocation3 + $0x8] sm:$0xff] %vm215, %v312
    %347 = vst.msk [vmem:[#allocation3 + $0x10] sm:$0xff] %vm215, %v317
    %348 = vst.msk [vmem:[#allocation3 + $0x18] sm:$0xff] %vm215, %v322
    %349 = vst.msk [vmem:[#allocation3 + $0x20] sm:$0xff] %vm215, %v327
    %350 = vst.msk [vmem:[#allocation3 + $0x28] sm:$0xff] %vm215, %v332
    %351 = vst.msk [vmem:[#allocation3 + $0x30] sm:$0xff] %vm215, %v337
    %352 = vst.msk [vmem:[#allocation3 + $0x38] sm:$0xff] %vm215, %v342
    %361 = vrot.lane.b32.xlu0 %v307, 96
    %v362 = vpop.permute.xlu0 %361
    %363 = vrot.lane.b32.xlu0 %v312, 96
    %v364 = vpop.permute.xlu0 %363
    %365 = vrot.lane.b32.xlu0 %v317, 96
    %v366 = vpop.permute.xlu0 %365
    %367 = vrot.lane.b32.xlu0 %v322, 96
    %v368 = vpop.permute.xlu0 %367
    %369 = vrot.lane.b32.xlu0 %v327, 96
    %v370 = vpop.permute.xlu0 %369
    %371 = vrot.lane.b32.xlu0 %v332, 96
    %v372 = vpop.permute.xlu0 %371
    %373 = vrot.lane.b32.xlu0 %v337, 96
    %v374 = vpop.permute.xlu0 %373
    %375 = vrot.lane.b32.xlu0 %v342, 96
    %v376 = vpop.permute.xlu0 %375
    %vm385 = vcmask 785408
    %386 = vst.msk [vmem:[#allocation2] sm:$0xff] %vm385, %v362
    %387 = vst.msk [vmem:[#allocation2 + $0x8] sm:$0xff] %vm385, %v364
    %388 = vst.msk [vmem:[#allocation2 + $0x10] sm:$0xff] %vm385, %v366
    %389 = vst.msk [vmem:[#allocation2 + $0x18] sm:$0xff] %vm385, %v368
    %390 = vst.msk [vmem:[#allocation2 + $0x20] sm:$0xff] %vm385, %v370
    %391 = vst.msk [vmem:[#allocation2 + $0x28] sm:$0xff] %vm385, %v372
    %392 = vst.msk [vmem:[#allocation2 + $0x30] sm:$0xff] %vm385, %v374
    %393 = vst.msk [vmem:[#allocation2 + $0x38] sm:$0xff] %vm385, %v376
    %v394 = vld [vmem:[#allocation7] sm:$0xff]
    %v395 = vld [vmem:[#allocation7 + $0x8] sm:$0xff]
    %v396 = vld [vmem:[#allocation7 + $0x10] sm:$0xff]
    %v397 = vld [vmem:[#allocation7 + $0x18] sm:$0xff]
    %v398 = vld [vmem:[#allocation7 + $0x20] sm:$0xff]
    %v399 = vld [vmem:[#allocation7 + $0x28] sm:$0xff]
    %v400 = vld [vmem:[#allocation7 + $0x30] sm:$0xff]
    %v401 = vld [vmem:[#allocation7 + $0x38] sm:$0xff]
    %v402 = vld [vmem:[#allocation18] sm:$0x1]
    %v404 = vlaneseq
    %v405 = vshrl.u32 %v404, 7
    %v406 = vsub.s32 0, %v405
    %v407 = vrot.slane %v402, %v406
    %v409 = vmul.f32 %v394, %v407
    %v410 = vmul.f32 %v395, %v407
    %v411 = vmul.f32 %v396, %v407
    %v412 = vmul.f32 %v397, %v407
    %v413 = vmul.f32 %v398, %v407
    %v414 = vmul.f32 %v399, %v407
    %v415 = vmul.f32 %v400, %v407
    %v416 = vmul.f32 %v401, %v407
    %417 = vst.msk [vmem:[#allocation4] sm:$0xff] %vm215, %v409
    %418 = vst.msk [vmem:[#allocation4 + $0x8] sm:$0xff] %vm215, %v410
    %419 = vst.msk [vmem:[#allocation4 + $0x10] sm:$0xff] %vm215, %v411
    %420 = vst.msk [vmem:[#allocation4 + $0x18] sm:$0xff] %vm215, %v412
    %421 = vst.msk [vmem:[#allocation4 + $0x20] sm:$0xff] %vm215, %v413
    %422 = vst.msk [vmem:[#allocation4 + $0x28] sm:$0xff] %vm215, %v414
    %423 = vst.msk [vmem:[#allocation4 + $0x30] sm:$0xff] %vm215, %v415
    %424 = vst.msk [vmem:[#allocation4 + $0x38] sm:$0xff] %vm215, %v416
    %425 = vst.msk [vmem:[#allocation6] sm:$0xff] %vm215, 0.0
    %v426 = vld [vmem:[#allocation19] sm:$0xff]
    %v427 = vld [vmem:[#allocation19 + $0x8] sm:$0xff]
    %v428 = vld [vmem:[#allocation19 + $0x10] sm:$0xff]
    %v429 = vld [vmem:[#allocation19 + $0x18] sm:$0xff]
    %v430 = vld [vmem:[#allocation22] sm:$0x1]
    %v432 = vlaneseq
    %v433 = vshrl.u32 %v432, 7
    %v434 = vsub.s32 0, %v433
    %v435 = vrot.slane %v430, %v434
    %v437 = vld [vmem:[#allocation21] sm:$0x1]
    %v439 = vlaneseq
    %v440 = vshrl.u32 %v439, 7
    %v441 = vsub.s32 0, %v440
    %v442 = vrot.slane %v437, %v441
    %v443 = vlaneseq
    %v444 = vshrl.u32 %v443, 7
    %v445 = vlaneseq
    %v446 = vand.u32 %v445, 127
    %vm447 = vcmp.eq.s32.totalorder %v444, %v446
    %v448 = vsel %vm447, 1, 0
    %v449 = vcvt.s32.f32 %v448
    %v450 = vld [vmem:[#allocation6] sm:$0xff]
    %v451 = vld [vmem:[#allocation15] sm:$0xff]
    %v452 = vld [vmem:[#allocation15 + $0x8] sm:$0xff]
    %v453 = vld [vmem:[#allocation15 + $0x10] sm:$0xff]
    %v454 = vld [vmem:[#allocation15 + $0x18] sm:$0xff]
    %v455 = vld [vmem:[#allocation16] sm:$0x1]
    %v457 = vlaneseq
    %v458 = vshrl.u32 %v457, 7
    %v459 = vsub.s32 0, %v458
    %v460 = vrot.slane %v455, %v459
    %v463 = vsel %vm215, %v450, 0
    %465 = vmatprep.subr.mxu0 0.0
    %466 = vmatpush1.msra.mxu0 %v451
    %467 = vmatprep.subr.mxu0 0.0
    %468 = vmatpush1.msra.mxu0 %v452
    %469 = vmatprep.subr.mxu0 0.0
    %470 = vmatpush1.msra.mxu0 %v453
    %471 = vmatprep.subr.mxu0 0.0
    %472 = vmatpush1.msra.mxu0 %v454
    %473 = vmatprep.subr.mxu0 0.0
    %474 = vmatpush1.msra.mxu0 0.0
    %475 = vmatprep.subr.mxu0 0.0
    %476 = vmatpush1.msra.mxu0 0.0
    %477 = vmatprep.subr.mxu0 0.0
    %478 = vmatpush1.msra.mxu0 0.0
    %479 = vmatprep.subr.mxu0 0.0
    %480 = vmatpush1.msra.mxu0 0.0
    %481 = vmatprep.subr.mxu0 0.0
    %482 = vmatpush1.msra.mxu0 0.0
    %483 = vmatprep.subr.mxu0 0.0
    %484 = vmatpush1.msra.mxu0 0.0
    %485 = vmatprep.subr.mxu0 0.0
    %486 = vmatpush1.msra.mxu0 0.0
    %487 = vmatprep.subr.mxu0 0.0
    %488 = vmatpush1.msra.mxu0 0.0
    %489 = vmatprep.subr.mxu0 0.0
    %490 = vmatpush1.msra.mxu0 0.0
    %491 = vmatprep.subr.mxu0 0.0
    %492 = vmatpush1.msra.mxu0 0.0
    %493 = vmatprep.subr.mxu0 0.0
    %494 = vmatpush1.msra.mxu0 0.0
    %495 = vmatprep.subr.mxu0 0.0
    %496 = vmatpush1.msra.mxu0 0.0
    %497 = vmatprep.subr.mxu0 0.0
    %498 = vmatpush1.msra.mxu0 0.0
    %499 = vmatprep.subr.mxu0 0.0
    %500 = vmatpush1.msra.mxu0 0.0
    %501 = vmatprep.subr.mxu0 0.0
    %502 = vmatpush1.msra.mxu0 0.0
    %503 = vmatprep.subr.mxu0 0.0
    %504 = vmatpush1.msra.mxu0 0.0
    %505 = vmatprep.subr.mxu0 0.0
    %506 = vmatpush1.msra.mxu0 0.0
    %507 = vmatprep.subr.mxu0 0.0
    %508 = vmatpush1.msra.mxu0 0.0
    %509 = vmatprep.subr.mxu0 0.0
    %510 = vmatpush1.msra.mxu0 0.0
    %511 = vmatprep.subr.mxu0 0.0
    %512 = vmatpush1.msra.mxu0 0.0
    %513 = vmatprep.subr.mxu0 0.0
    %514 = vmatpush1.msra.mxu0 0.0
    %515 = vmatprep.subr.mxu0 0.0
    %516 = vmatpush1.msra.mxu0 0.0
    %517 = vmatprep.subr.mxu0 0.0
    %518 = vmatpush1.msra.mxu0 0.0
    %519 = vmatprep.subr.mxu0 0.0
    %520 = vmatpush1.msra.mxu0 0.0
    %521 = vmatprep.subr.mxu0 0.0
    %522 = vmatpush1.msra.mxu0 0.0
    %523 = vmatprep.subr.mxu0 0.0
    %524 = vmatpush1.msra.mxu0 0.0
    %525 = vmatprep.subr.mxu0 0.0
    %526 = vmatpush1.msra.mxu0 0.0
    %527 = vmatprep.subr.mxu0 0.0
    %528 = vmatpush1.msra.mxu0 0.0
    %529 = vmatprep.mubr.f32.mxu0 0.0
    %530 = vmatmul.mubr.f32.gmra.mrb[0].mxu0 %v463
    %v531 = vpop.f32.mrb[0].mxu0
    %v532 = vadd.f32 %v460, %v531
    %v533 = vpop.f32.mrb[0].mxu0
    %534 = vdwg.mxu0
    %v535 = vld [vmem:[#allocation3] sm:$0xff]
    %v536 = vld [vmem:[#allocation3 + $0x8] sm:$0xff]
    %v537 = vld [vmem:[#allocation3 + $0x10] sm:$0xff]
    %v538 = vld [vmem:[#allocation3 + $0x18] sm:$0xff]
    %v539 = vld [vmem:[#allocation3 + $0x20] sm:$0xff]
    %v540 = vld [vmem:[#allocation3 + $0x28] sm:$0xff]
    %v541 = vld [vmem:[#allocation3 + $0x30] sm:$0xff]
    %v542 = vld [vmem:[#allocation3 + $0x38] sm:$0xff]
    %v543 = vadd.f32 %v535, %v532
    %v544 = vadd.f32 %v536, %v532
    %v545 = vadd.f32 %v537, %v532
    %v546 = vadd.f32 %v538, %v532
    %v547 = vadd.f32 %v539, %v532
    %v548 = vadd.f32 %v540, %v532
    %v549 = vadd.f32 %v541, %v532
    %v550 = vadd.f32 %v542, %v532
    %v551 = vxor.u32 %v543, 2147483648
    %v552 = vxor.u32 %v544, 2147483648
    %v553 = vxor.u32 %v545, 2147483648
    %v554 = vxor.u32 %v546, 2147483648
    %v555 = vxor.u32 %v547, 2147483648
    %v556 = vxor.u32 %v548, 2147483648
    %v557 = vxor.u32 %v549, 2147483648
    %v558 = vxor.u32 %v550, 2147483648
    %v559 = vmul.f32 %v551, 1.442695
    %v560 = vpow.pop %v559
    %v561 = vmul.f32 %v552, 1.442695
    %v562 = vpow.pop %v561
    %v563 = vmul.f32 %v553, 1.442695
    %v564 = vpow.pop %v563
    %v565 = vmul.f32 %v554, 1.442695
    %v566 = vpow.pop %v565
    %v567 = vmul.f32 %v555, 1.442695
    %v568 = vpow.pop %v567
    %v569 = vmul.f32 %v556, 1.442695
    %v570 = vpow.pop %v569
    %v571 = vmul.f32 %v557, 1.442695
    %v572 = vpow.pop %v571
    %v573 = vmul.f32 %v558, 1.442695
    %v574 = vpow.pop %v573
    %v575 = vadd.f32 %v560, 1.0
    %v576 = vadd.f32 %v562, 1.0
    %v577 = vadd.f32 %v564, 1.0
    %v578 = vadd.f32 %v566, 1.0
    %v579 = vadd.f32 %v568, 1.0
    %v580 = vadd.f32 %v570, 1.0
    %v581 = vadd.f32 %v572, 1.0
    %v582 = vadd.f32 %v574, 1.0
    %v583 = vrcp.pop %v575
    %v584 = vmul.f32 1.0, %v583
    %v585 = vrcp.pop %v576
    %v586 = vmul.f32 1.0, %v585
    %v587 = vrcp.pop %v577
    %v588 = vmul.f32 1.0, %v587
    %v589 = vrcp.pop %v578
    %v590 = vmul.f32 1.0, %v589
    %v591 = vrcp.pop %v579
    %v592 = vmul.f32 1.0, %v591
    %v593 = vrcp.pop %v580
    %v594 = vmul.f32 1.0, %v593
    %v595 = vrcp.pop %v581
    %v596 = vmul.f32 1.0, %v595
    %v597 = vrcp.pop %v582
    %v598 = vmul.f32 1.0, %v597
    %v599 = vld [vmem:[#allocation4] sm:$0xff]
    %v600 = vld [vmem:[#allocation4 + $0x8] sm:$0xff]
    %v601 = vld [vmem:[#allocation4 + $0x10] sm:$0xff]
    %v602 = vld [vmem:[#allocation4 + $0x18] sm:$0xff]
    %v603 = vld [vmem:[#allocation4 + $0x20] sm:$0xff]
    %v604 = vld [vmem:[#allocation4 + $0x28] sm:$0xff]
    %v605 = vld [vmem:[#allocation4 + $0x30] sm:$0xff]
    %v606 = vld [vmem:[#allocation4 + $0x38] sm:$0xff]
    %v607 = vmul.f32 %v599, %v584
    %v608 = vmul.f32 %v600, %v586
    %v609 = vmul.f32 %v601, %v588
    %v610 = vmul.f32 %v602, %v590
    %v611 = vmul.f32 %v603, %v592
    %v612 = vmul.f32 %v604, %v594
    %v613 = vmul.f32 %v605, %v596
    %v614 = vmul.f32 %v606, %v598
    %v615 = vsel %vm215, %v607, 0.0
    %616 = vadd.xlane.f32.xlu0 %v615
    %v617 = vpop.xlane.xlu0 %616
    %v618 = vsel %vm215, %v608, 0.0
    %619 = vadd.xlane.f32.xlu0 %v618
    %v620 = vpop.xlane.xlu0 %619
    %v621 = vsel %vm215, %v609, 0.0
    %622 = vadd.xlane.f32.xlu0 %v621
    %v623 = vpop.xlane.xlu0 %622
    %v624 = vsel %vm215, %v610, 0.0
    %625 = vadd.xlane.f32.xlu0 %v624
    %v626 = vpop.xlane.xlu0 %625
    %v627 = vsel %vm215, %v611, 0.0
    %628 = vadd.xlane.f32.xlu0 %v627
    %v629 = vpop.xlane.xlu0 %628
    %v630 = vsel %vm215, %v612, 0.0
    %631 = vadd.xlane.f32.xlu0 %v630
    %v632 = vpop.xlane.xlu0 %631
    %v633 = vsel %vm215, %v613, 0.0
    %634 = vadd.xlane.f32.xlu0 %v633
    %v635 = vpop.xlane.xlu0 %634
    %v636 = vsel %vm215, %v614, 0.0
    %637 = vadd.xlane.f32.xlu0 %v636
    %v638 = vpop.xlane.xlu0 %637
    %v639 = vld [vmem:[#allocation10] sm:$0xff]
    %v641 = vlaneseq
    %v642 = vshrl.u32 %v641, 7
    %v643 = vsub.s32 0, %v642
    %v644 = vrot.slane %v639, %v643
    %646 = vbcast.lane.b32.xlu0 %v644, 256
    %v647 = vpop.permute.xlu0 %646
    %v648 = vlaneseq
    %v649 = vshrl.u32 %v648, 7
    %v650 = vsub.s32 1, %v649
    %v651 = vrot.slane %v639, %v650
    %653 = vbcast.lane.b32.xlu0 %v651, 256
    %v654 = vpop.permute.xlu0 %653
    %v655 = vlaneseq
    %v656 = vshrl.u32 %v655, 7
    %v657 = vsub.s32 2, %v656
    %v658 = vrot.slane %v639, %v657
    %660 = vbcast.lane.b32.xlu0 %v658, 256
    %v661 = vpop.permute.xlu0 %660
    %v662 = vlaneseq
    %v663 = vshrl.u32 %v662, 7
    %v664 = vsub.s32 3, %v663
    %v665 = vrot.slane %v639, %v664
    %667 = vbcast.lane.b32.xlu0 %v665, 256
    %v668 = vpop.permute.xlu0 %667
    %v669 = vlaneseq
    %v670 = vshrl.u32 %v669, 7
    %v671 = vsub.s32 4, %v670
    %v672 = vrot.slane %v639, %v671
    %674 = vbcast.lane.b32.xlu0 %v672, 256
    %v675 = vpop.permute.xlu0 %674
    %v676 = vlaneseq
    %v677 = vshrl.u32 %v676, 7
    %v678 = vsub.s32 5, %v677
    %v679 = vrot.slane %v639, %v678
    %681 = vbcast.lane.b32.xlu0 %v679, 256
    %v682 = vpop.permute.xlu0 %681
    %v683 = vlaneseq
    %v684 = vshrl.u32 %v683, 7
    %v685 = vsub.s32 6, %v684
    %v686 = vrot.slane %v639, %v685
    %688 = vbcast.lane.b32.xlu0 %v686, 256
    %v689 = vpop.permute.xlu0 %688
    %v690 = vlaneseq
    %v691 = vshrl.u32 %v690, 7
    %v692 = vsub.s32 7, %v691
    %v693 = vrot.slane %v639, %v692
    %695 = vbcast.lane.b32.xlu0 %v693, 256
    %v696 = vpop.permute.xlu0 %695
    %v705 = vadd.f32 %v617, %v647
    %v706 = vadd.f32 %v620, %v654
    %v707 = vadd.f32 %v623, %v661
    %v708 = vadd.f32 %v626, %v668
    %v709 = vadd.f32 %v629, %v675
    %v710 = vadd.f32 %v632, %v682
    %v711 = vadd.f32 %v635, %v689
    %v712 = vadd.f32 %v638, %v696
    %721 = vset.pattern.permute.xlu0 0
    %722 = vperm.xlu0 %721, %v705
    %v723 = vpop.permute.xlu0 %722
    %724 = vset.pattern.permute.xlu0 0
    %725 = vperm.xlu0 %724, %v706
    %v726 = vpop.permute.xlu0 %725
    %727 = vset.pattern.permute.xlu0 0
    %728 = vperm.xlu0 %727, %v707
    %v729 = vpop.permute.xlu0 %728
    %730 = vset.pattern.permute.xlu0 0
    %731 = vperm.xlu0 %730, %v708
    %v732 = vpop.permute.xlu0 %731
    %733 = vset.pattern.permute.xlu0 0
    %734 = vperm.xlu0 %733, %v709
    %v735 = vpop.permute.xlu0 %734
    %736 = vset.pattern.permute.xlu0 0
    %737 = vperm.xlu0 %736, %v710
    %v738 = vpop.permute.xlu0 %737
    %739 = vset.pattern.permute.xlu0 0
    %740 = vperm.xlu0 %739, %v711
    %v741 = vpop.permute.xlu0 %740
    %742 = vset.pattern.permute.xlu0 0
    %743 = vperm.xlu0 %742, %v712
    %v744 = vpop.permute.xlu0 %743
    %v745 = vlaneseq
    %v746 = vshrl.u32 %v745, 7
    %v747 = vsub.s32 %v446, %v746
    %v748 = vrot.slane %v723, %v747
    %v749 = vlaneseq
    %v750 = vshrl.u32 %v749, 7
    %v751 = vsub.s32 %v446, %v750
    %v752 = vrot.slane %v726, %v751
    %v753 = vlaneseq
    %v754 = vshrl.u32 %v753, 7
    %v755 = vsub.s32 %v446, %v754
    %v756 = vrot.slane %v729, %v755
    %v757 = vlaneseq
    %v758 = vshrl.u32 %v757, 7
    %v759 = vsub.s32 %v446, %v758
    %v760 = vrot.slane %v732, %v759
    %v761 = vlaneseq
    %v762 = vshrl.u32 %v761, 7
    %v763 = vsub.s32 %v446, %v762
    %v764 = vrot.slane %v735, %v763
    %v765 = vlaneseq
    %v766 = vshrl.u32 %v765, 7
    %v767 = vsub.s32 %v446, %v766
    %v768 = vrot.slane %v738, %v767
    %v769 = vlaneseq
    %v770 = vshrl.u32 %v769, 7
    %v771 = vsub.s32 %v446, %v770
    %v772 = vrot.slane %v741, %v771
    %v773 = vlaneseq
    %v774 = vshrl.u32 %v773, 7
    %v775 = vsub.s32 %v446, %v774
    %v776 = vrot.slane %v744, %v775
    %vm777 = vcmask 1041409
    %v778 = vsel %vm777, %v752, %v748
    %vm779 = vcmask 1042434
    %v780 = vsel %vm779, %v756, %v778
    %vm781 = vcmask 1043459
    %v782 = vsel %vm781, %v760, %v780
    %vm783 = vcmask 1044484
    %v784 = vsel %vm783, %v764, %v782
    %vm785 = vcmask 1045509
    %v786 = vsel %vm785, %v768, %v784
    %vm787 = vcmask 1046534
    %v788 = vsel %vm787, %v772, %v786
    %vm789 = vcmask 1047559
    %v790 = vsel %vm789, %v776, %v788
    %vm792 = vcmask 64512
    %793 = vst.msk [vmem:[#allocation5] sm:$0xff] %vm792, %v790
    %v794 = vld [vmem:[#allocation2] sm:$0xff]
    %v796 = vsel %vm215, 0.0, 0
    %798 = vmatprep.subr.mxu0 0.0
    %799 = vmatpush1.msra.mxu0 %v426
    %800 = vmatprep.subr.mxu0 0.0
    %801 = vmatpush1.msra.mxu0 %v427
    %802 = vmatprep.subr.mxu0 0.0
    %803 = vmatpush1.msra.mxu0 %v428
    %804 = vmatprep.subr.mxu0 0.0
    %805 = vmatpush1.msra.mxu0 %v429
    %806 = vmatprep.subr.mxu0 0.0
    %807 = vmatpush1.msra.mxu0 0.0
    %808 = vmatprep.subr.mxu0 0.0
    %809 = vmatpush1.msra.mxu0 0.0
    %810 = vmatprep.subr.mxu0 0.0
    %811 = vmatpush1.msra.mxu0 0.0
    %812 = vmatprep.subr.mxu0 0.0
    %813 = vmatpush1.msra.mxu0 0.0
    %814 = vmatprep.subr.mxu0 0.0
    %815 = vmatpush1.msra.mxu0 0.0
    %816 = vmatprep.subr.mxu0 0.0
    %817 = vmatpush1.msra.mxu0 0.0
    %818 = vmatprep.subr.mxu0 0.0
    %819 = vmatpush1.msra.mxu0 0.0
    %820 = vmatprep.subr.mxu0 0.0
    %821 = vmatpush1.msra.mxu0 0.0
    %822 = vmatprep.subr.mxu0 0.0
    %823 = vmatpush1.msra.mxu0 0.0
    %824 = vmatprep.subr.mxu0 0.0
    %825 = vmatpush1.msra.mxu0 0.0
    %826 = vmatprep.subr.mxu0 0.0
    %827 = vmatpush1.msra.mxu0 0.0
    %828 = vmatprep.subr.mxu0 0.0
    %829 = vmatpush1.msra.mxu0 0.0
    %830 = vmatprep.subr.mxu0 0.0
    %831 = vmatpush1.msra.mxu0 0.0
    %832 = vmatprep.subr.mxu0 0.0
    %833 = vmatpush1.msra.mxu0 0.0
    %834 = vmatprep.subr.mxu0 0.0
    %835 = vmatpush1.msra.mxu0 0.0
    %836 = vmatprep.subr.mxu0 0.0
    %837 = vmatpush1.msra.mxu0 0.0
    %838 = vmatprep.subr.mxu0 0.0
    %839 = vmatpush1.msra.mxu0 0.0
    %840 = vmatprep.subr.mxu0 0.0
    %841 = vmatpush1.msra.mxu0 0.0
    %842 = vmatprep.subr.mxu0 0.0
    %843 = vmatpush1.msra.mxu0 0.0
    %844 = vmatprep.subr.mxu0 0.0
    %845 = vmatpush1.msra.mxu0 0.0
    %846 = vmatprep.subr.mxu0 0.0
    %847 = vmatpush1.msra.mxu0 0.0
    %848 = vmatprep.subr.mxu0 0.0
    %849 = vmatpush1.msra.mxu0 0.0
    %850 = vmatprep.subr.mxu0 0.0
    %851 = vmatpush1.msra.mxu0 0.0
    %852 = vmatprep.subr.mxu0 0.0
    %853 = vmatpush1.msra.mxu0 0.0
    %854 = vmatprep.subr.mxu0 0.0
    %855 = vmatpush1.msra.mxu0 0.0
    %856 = vmatprep.subr.mxu0 0.0
    %857 = vmatpush1.msra.mxu0 0.0
    %858 = vmatprep.subr.mxu0 0.0
    %859 = vmatpush1.msra.mxu0 0.0
    %860 = vmatprep.subr.mxu0 0.0
    %861 = vmatpush1.msra.mxu0 0.0
    %862 = vmatprep.mubr.f32.mxu0 0.0
    %863 = vmatmul.mubr.f32.gmra.mrb[0].mxu0 %v796
    %v864 = vpop.f32.mrb[0].mxu0
    %v865 = vadd.f32 0.0, %v864
    %v866 = vpop.f32.mrb[0].mxu0
    %867 = vdwg.mxu0
    %v868 = vmul.f32 %v435, 0.0
    %v869 = vsel %vm215, %v868, 0.0
    %870 = vadd.xlane.f32.xlu0 %v869
    %v871 = vpop.xlane.xlu0 %870
    %v872 = vld [vmem:[#allocation5] sm:$0x1]
    %v873 = vlaneseq
    %v874 = vshrl.u32 %v873, 7
    %v875 = vsub.s32 0, %v874
    %v876 = vrot.slane %v872, %v875
    %v877 = vmul.f32 %v876, %v449
    %v878 = vsel %vm792, %v877, 0.0
    %879 = vadd.xlane.f32.xlu0 %v878
    %v880 = vpop.xlane.xlu0 %879
    %v881 = vadd.f32 %v871, %v880
    %vm882 = vcmp.ge.f32.partialorder %v881, 0.0
    %v883 = vadd.f32 %v794, %v865
    %v884 = vxor.u32 %v883, 2147483648
    %v885 = vmul.f32 %v884, 1.442695
    %v886 = vpow.pop %v885
    %v887 = vadd.f32 %v886, 1.0
    %v888 = vrcp.pop %v887
    %v889 = vmul.f32 1.0, %v888
    %890 = vrot.lane.b32.xlu0 %v442, 64
    %v891 = vpop.permute.xlu0 %890
    %v893 = vadd.f32 %v865, %v891
    %895 = vrot.lane.b32.xlu0 %v893, 64
    %v896 = vpop.permute.xlu0 %895
    %v898 = vmul.f32 %v889, %v896
    %900 = vrot.lane.b32.xlu0 %v898, 64
    %v901 = vpop.permute.xlu0 %900
    %v903 = vadd.f32 %v794, %v901
    %v904 = vtanh.pop %v903
    %v905 = vsub.f32 1.0, %v889
    %907 = vrot.lane.b32.xlu0 %v904, 96
    %v908 = vpop.permute.xlu0 %907
    %v910 = vmul.f32 %v905, %v908
    %v911 = vmul.f32 %v889, 0.0
    %v912 = vadd.f32 %v910, %v911
    %v913 = vsel %vm882, 1, 0
    %vm914 = vcmp.eq.s32.totalorder %v913, 1
    %v915 = vsel %vm914, %v912, 0.0
    %v916 = vcvt.s32.f32 %v913
    %v917 = vmul.f32 %v916, %v449
    %v918 = vsel %vm792, %v917, 0.0
    %v919 = vrot.slane %v918, 4
    %v920 = vadd.f32 %v918, %v919
    %v921 = vrot.slane %v920, 2
    %v922 = vadd.f32 %v920, %v921
    %v923 = vrot.slane %v922, 1
    %v924 = vadd.f32 %v922, %v923
    %vm925 = vcmask 57344
    %926 = vst.msk [vmem:[#allocation28] sm:$0x1] %vm925, %v924
    %s927 = scalar_lea.vmem [#allocation2], 8
    %v928 = vld [vmem:[%s927] sm:$0xff]
    %930 = vrot.lane.b32.xlu0 %v915, 96
    %v931 = vpop.permute.xlu0 %930
    %v932 = vsel %vm215, %v931, 0
    %934 = vmatprep.subr.mxu0 0.0
    %935 = vmatpush1.msra.mxu0 %v426
    %936 = vmatprep.subr.mxu0 0.0
    %937 = vmatpush1.msra.mxu0 %v427
    %938 = vmatprep.subr.mxu0 0.0
    %939 = vmatpush1.msra.mxu0 %v428
    %940 = vmatprep.subr.mxu0 0.0
    %941 = vmatpush1.msra.mxu0 %v429
    %942 = vmatprep.subr.mxu0 0.0
    %943 = vmatpush1.msra.mxu0 0.0
    %944 = vmatprep.subr.mxu0 0.0
    %945 = vmatpush1.msra.mxu0 0.0
    %946 = vmatprep.subr.mxu0 0.0
    %947 = vmatpush1.msra.mxu0 0.0
    %948 = vmatprep.subr.mxu0 0.0
    %949 = vmatpush1.msra.mxu0 0.0
    %950 = vmatprep.subr.mxu0 0.0
    %951 = vmatpush1.msra.mxu0 0.0
    %952 = vmatprep.subr.mxu0 0.0
    %953 = vmatpush1.msra.mxu0 0.0
    %954 = vmatprep.subr.mxu0 0.0
    %955 = vmatpush1.msra.mxu0 0.0
    %956 = vmatprep.subr.mxu0 0.0
    %957 = vmatpush1.msra.mxu0 0.0
    %958 = vmatprep.subr.mxu0 0.0
    %959 = vmatpush1.msra.mxu0 0.0
    %960 = vmatprep.subr.mxu0 0.0
    %961 = vmatpush1.msra.mxu0 0.0
    %962 = vmatprep.subr.mxu0 0.0
    %963 = vmatpush1.msra.mxu0 0.0
    %964 = vmatprep.subr.mxu0 0.0
    %965 = vmatpush1.msra.mxu0 0.0
    %966 = vmatprep.subr.mxu0 0.0
    %967 = vmatpush1.msra.mxu0 0.0
    %968 = vmatprep.subr.mxu0 0.0
    %969 = vmatpush1.msra.mxu0 0.0
    %970 = vmatprep.subr.mxu0 0.0
    %971 = vmatpush1.msra.mxu0 0.0
    %972 = vmatprep.subr.mxu0 0.0
    %973 = vmatpush1.msra.mxu0 0.0
    %974 = vmatprep.subr.mxu0 0.0
    %975 = vmatpush1.msra.mxu0 0.0
    %976 = vmatprep.subr.mxu0 0.0
    %977 = vmatpush1.msra.mxu0 0.0
    %978 = vmatprep.subr.mxu0 0.0
    %979 = vmatpush1.msra.mxu0 0.0
    %980 = vmatprep.subr.mxu0 0.0
    %981 = vmatpush1.msra.mxu0 0.0
    %982 = vmatprep.subr.mxu0 0.0
    %983 = vmatpush1.msra.mxu0 0.0
    %984 = vmatprep.subr.mxu0 0.0
    %985 = vmatpush1.msra.mxu0 0.0
    %986 = vmatprep.subr.mxu0 0.0
    %987 = vmatpush1.msra.mxu0 0.0
    %988 = vmatprep.subr.mxu0 0.0
    %989 = vmatpush1.msra.mxu0 0.0
    %990 = vmatprep.subr.mxu0 0.0
    %991 = vmatpush1.msra.mxu0 0.0
    %992 = vmatprep.subr.mxu0 0.0
    %993 = vmatpush1.msra.mxu0 0.0
    %994 = vmatprep.subr.mxu0 0.0
    %995 = vmatpush1.msra.mxu0 0.0
    %996 = vmatprep.subr.mxu0 0.0
    %997 = vmatpush1.msra.mxu0 0.0
    %998 = vmatprep.mubr.f32.mxu0 0.0
    %999 = vmatmul.mubr.f32.gmra.mrb[0].mxu0 %v932
    %v1000 = vpop.f32.mrb[0].mxu0
    %v1001 = vadd.f32 0.0, %v1000
    %v1002 = vpop.f32.mrb[0].mxu0
    %1003 = vdwg.mxu0
    %1004 = vrot.lane.b32.xlu0 %v435, 32
    %v1005 = vpop.permute.xlu0 %1004
    %v1007 = vmul.f32 %v915, %v1005
    %1009 = vrot.lane.b32.xlu0 %v1007, 96
    %v1010 = vpop.permute.xlu0 %1009
    %v1012 = vsel %vm215, %v1010, 0.0
    %1013 = vadd.xlane.f32.xlu0 %v1012
    %v1014 = vpop.xlane.xlu0 %1013
    %v1015 = vld [vmem:[#allocation5 + $0x1] sm:$0x1]
    %v1016 = vlaneseq
    %v1017 = vshrl.u32 %v1016, 7
    %v1018 = vsub.s32 0, %v1017
    %v1019 = vrot.slane %v1015, %v1018
    %v1020 = vmul.f32 %v1019, %v449
    %v1021 = vsel %vm792, %v1020, 0.0
    %1022 = vadd.xlane.f32.xlu0 %v1021
    %v1023 = vpop.xlane.xlu0 %1022
    %v1024 = vadd.f32 %v1014, %v1023
    %vm1025 = vcmp.ge.f32.partialorder %v1024, 0.0
    %v1026 = vadd.f32 %v928, %v1001
    %v1027 = vxor.u32 %v1026, 2147483648
    %v1028 = vmul.f32 %v1027, 1.442695
    %v1029 = vpow.pop %v1028
    %v1030 = vadd.f32 %v1029, 1.0
    %v1031 = vrcp.pop %v1030
    %v1032 = vmul.f32 1.0, %v1031
    %v1033 = vadd.f32 %v1001, %v891
    %1035 = vrot.lane.b32.xlu0 %v1033, 64
    %v1036 = vpop.permute.xlu0 %1035
    %v1038 = vmul.f32 %v1032, %v1036
    %1040 = vrot.lane.b32.xlu0 %v1038, 64
    %v1041 = vpop.permute.xlu0 %1040
    %v1043 = vadd.f32 %v928, %v1041
    %v1044 = vtanh.pop %v1043
    %v1045 = vsub.f32 1.0, %v1032
    %1047 = vrot.lane.b32.xlu0 %v1044, 96
    %v1048 = vpop.permute.xlu0 %1047
    %v1050 = vmul.f32 %v1045, %v1048
    %v1051 = vmul.f32 %v1032, %v915
    %v1052 = vadd.f32 %v1050, %v1051
    %v1053 = vsel %vm1025, 1, 0
    %vm1054 = vcmp.eq.s32.totalorder %v1053, 1
    %v1055 = vsel %vm1054, %v1052, %v915
    %v1056 = vcvt.s32.f32 %v1053
    %v1057 = vmul.f32 %v1056, %v449
    %v1058 = vsel %vm792, %v1057, 0.0
    %v1059 = vrot.slane %v1058, 4
    %v1060 = vadd.f32 %v1058, %v1059
    %v1061 = vrot.slane %v1060, 2
    %v1062 = vadd.f32 %v1060, %v1061
    %v1063 = vrot.slane %v1062, 1
    %v1064 = vadd.f32 %v1062, %v1063
    %1065 = vst.msk [vmem:[#allocation28 + $0x1] sm:$0x1] %vm925, %v1064
    %s1066 = scalar_lea.vmem [#allocation2], 16
    %v1067 = vld [vmem:[%s1066] sm:$0xff]
    %1069 = vrot.lane.b32.xlu0 %v1055, 96
    %v1070 = vpop.permute.xlu0 %1069
    %v1071 = vsel %vm215, %v1070, 0
    %1073 = vmatprep.subr.mxu0 0.0
    %1074 = vmatpush1.msra.mxu0 %v426
    %1075 = vmatprep.subr.mxu0 0.0
    %1076 = vmatpush1.msra.mxu0 %v427
    %1077 = vmatprep.subr.mxu0 0.0
    %1078 = vmatpush1.msra.mxu0 %v428
    %1079 = vmatprep.subr.mxu0 0.0
    %1080 = vmatpush1.msra.mxu0 %v429
    %1081 = vmatprep.subr.mxu0 0.0
    %1082 = vmatpush1.msra.mxu0 0.0
    %1083 = vmatprep.subr.mxu0 0.0
    %1084 = vmatpush1.msra.mxu0 0.0
    %1085 = vmatprep.subr.mxu0 0.0
    %1086 = vmatpush1.msra.mxu0 0.0
    %1087 = vmatprep.subr.mxu0 0.0
    %1088 = vmatpush1.msra.mxu0 0.0
    %1089 = vmatprep.subr.mxu0 0.0
    %1090 = vmatpush1.msra.mxu0 0.0
    %1091 = vmatprep.subr.mxu0 0.0
    %1092 = vmatpush1.msra.mxu0 0.0
    %1093 = vmatprep.subr.mxu0 0.0
    %1094 = vmatpush1.msra.mxu0 0.0
    %1095 = vmatprep.subr.mxu0 0.0
    %1096 = vmatpush1.msra.mxu0 0.0
    %1097 = vmatprep.subr.mxu0 0.0
    %1098 = vmatpush1.msra.mxu0 0.0
    %1099 = vmatprep.subr.mxu0 0.0
    %1100 = vmatpush1.msra.mxu0 0.0
    %1101 = vmatprep.subr.mxu0 0.0
    %1102 = vmatpush1.msra.mxu0 0.0
    %1103 = vmatprep.subr.mxu0 0.0
    %1104 = vmatpush1.msra.mxu0 0.0
    %1105 = vmatprep.subr.mxu0 0.0
    %1106 = vmatpush1.msra.mxu0 0.0
    %1107 = vmatprep.subr.mxu0 0.0
    %1108 = vmatpush1.msra.mxu0 0.0
    %1109 = vmatprep.subr.mxu0 0.0
    %1110 = vmatpush1.msra.mxu0 0.0
    %1111 = vmatprep.subr.mxu0 0.0
    %1112 = vmatpush1.msra.mxu0 0.0
    %1113 = vmatprep.subr.mxu0 0.0
    %1114 = vmatpush1.msra.mxu0 0.0
    %1115 = vmatprep.subr.mxu0 0.0
    %1116 = vmatpush1.msra.mxu0 0.0
    %1117 = vmatprep.subr.mxu0 0.0
    %1118 = vmatpush1.msra.mxu0 0.0
    %1119 = vmatprep.subr.mxu0 0.0
    %1120 = vmatpush1.msra.mxu0 0.0
    %1121 = vmatprep.subr.mxu0 0.0
    %1122 = vmatpush1.msra.mxu0 0.0
    %1123 = vmatprep.subr.mxu0 0.0
    %1124 = vmatpush1.msra.mxu0 0.0
    %1125 = vmatprep.subr.mxu0 0.0
    %1126 = vmatpush1.msra.mxu0 0.0
    %1127 = vmatprep.subr.mxu0 0.0
    %1128 = vmatpush1.msra.mxu0 0.0
    %1129 = vmatprep.subr.mxu0 0.0
    %1130 = vmatpush1.msra.mxu0 0.0
    %1131 = vmatprep.subr.mxu0 0.0
    %1132 = vmatpush1.msra.mxu0 0.0
    %1133 = vmatprep.subr.mxu0 0.0
    %1134 = vmatpush1.msra.mxu0 0.0
    %1135 = vmatprep.subr.mxu0 0.0
    %1136 = vmatpush1.msra.mxu0 0.0
    %1137 = vmatprep.mubr.f32.mxu0 0.0
    %1138 = vmatmul.mubr.f32.gmra.mrb[0].mxu0 %v1071
    %v1139 = vpop.f32.mrb[0].mxu0
    %v1140 = vadd.f32 0.0, %v1139
    %v1141 = vpop.f32.mrb[0].mxu0
    %1142 = vdwg.mxu0
    %v1143 = vmul.f32 %v1055, %v1005
    %1145 = vrot.lane.b32.xlu0 %v1143, 96
    %v1146 = vpop.permute.xlu0 %1145
    %v1148 = vsel %vm215, %v1146, 0.0
    %1149 = vadd.xlane.f32.xlu0 %v1148
    %v1150 = vpop.xlane.xlu0 %1149
    %v1151 = vld [vmem:[#allocation5 + $0x2] sm:$0x1]
    %v1152 = vlaneseq
    %v1153 = vshrl.u32 %v1152, 7
    %v1154 = vsub.s32 0, %v1153
    %v1155 = vrot.slane %v1151, %v1154
    %v1156 = vmul.f32 %v1155, %v449
    %v1157 = vsel %vm792, %v1156, 0.0
    %1158 = vadd.xlane.f32.xlu0 %v1157
    %v1159 = vpop.xlane.xlu0 %1158
    %v1160 = vadd.f32 %v1150, %v1159
    %vm1161 = vcmp.ge.f32.partialorder %v1160, 0.0
    %v1162 = vadd.f32 %v1067, %v1140
    %v1163 = vxor.u32 %v1162, 2147483648
    %v1164 = vmul.f32 %v1163, 1.442695
    %v1165 = vpow.pop %v1164
    %v1166 = vadd.f32 %v1165, 1.0
    %v1167 = vrcp.pop %v1166
    %v1168 = vmul.f32 1.0, %v1167
    %v1169 = vadd.f32 %v1140, %v891
    %1171 = vrot.lane.b32.xlu0 %v1169, 64
    %v1172 = vpop.permute.xlu0 %1171
    %v1174 = vmul.f32 %v1168, %v1172
    %1176 = vrot.lane.b32.xlu0 %v1174, 64
    %v1177 = vpop.permute.xlu0 %1176
    %v1179 = vadd.f32 %v1067, %v1177
    %v1180 = vtanh.pop %v1179
    %v1181 = vsub.f32 1.0, %v1168
    %1183 = vrot.lane.b32.xlu0 %v1180, 96
    %v1184 = vpop.permute.xlu0 %1183
    %v1186 = vmul.f32 %v1181, %v1184
    %v1187 = vmul.f32 %v1168, %v1055
    %v1188 = vadd.f32 %v1186, %v1187
    %v1189 = vsel %vm1161, 1, 0
    %vm1190 = vcmp.eq.s32.totalorder %v1189, 1
    %v1191 = vsel %vm1190, %v1188, %v1055
    %v1192 = vcvt.s32.f32 %v1189
    %v1193 = vmul.f32 %v1192, %v449
    %v1194 = vsel %vm792, %v1193, 0.0
    %v1195 = vrot.slane %v1194, 4
    %v1196 = vadd.f32 %v1194, %v1195
    %v1197 = vrot.slane %v1196, 2
    %v1198 = vadd.f32 %v1196, %v1197
    %v1199 = vrot.slane %v1198, 1
    %v1200 = vadd.f32 %v1198, %v1199
    %1201 = vst.msk [vmem:[#allocation28 + $0x2] sm:$0x1] %vm925, %v1200
    %s1202 = scalar_lea.vmem [#allocation2], 24
    %v1203 = vld [vmem:[%s1202] sm:$0xff]
    %1205 = vrot.lane.b32.xlu0 %v1191, 96
    %v1206 = vpop.permute.xlu0 %1205
    %v1207 = vsel %vm215, %v1206, 0
    %1209 = vmatprep.subr.mxu0 0.0
    %1210 = vmatpush1.msra.mxu0 %v426
    %1211 = vmatprep.subr.mxu0 0.0
    %1212 = vmatpush1.msra.mxu0 %v427
    %1213 = vmatprep.subr.mxu0 0.0
    %1214 = vmatpush1.msra.mxu0 %v428
    %1215 = vmatprep.subr.mxu0 0.0
    %1216 = vmatpush1.msra.mxu0 %v429
    %1217 = vmatprep.subr.mxu0 0.0
    %1218 = vmatpush1.msra.mxu0 0.0
    %1219 = vmatprep.subr.mxu0 0.0
    %1220 = vmatpush1.msra.mxu0 0.0
    %1221 = vmatprep.subr.mxu0 0.0
    %1222 = vmatpush1.msra.mxu0 0.0
    %1223 = vmatprep.subr.mxu0 0.0
    %1224 = vmatpush1.msra.mxu0 0.0
    %1225 = vmatprep.subr.mxu0 0.0
    %1226 = vmatpush1.msra.mxu0 0.0
    %1227 = vmatprep.subr.mxu0 0.0
    %1228 = vmatpush1.msra.mxu0 0.0
    %1229 = vmatprep.subr.mxu0 0.0
    %1230 = vmatpush1.msra.mxu0 0.0
    %1231 = vmatprep.subr.mxu0 0.0
    %1232 = vmatpush1.msra.mxu0 0.0
    %1233 = vmatprep.subr.mxu0 0.0
    %1234 = vmatpush1.msra.mxu0 0.0
    %1235 = vmatprep.subr.mxu0 0.0
    %1236 = vmatpush1.msra.mxu0 0.0
    %1237 = vmatprep.subr.mxu0 0.0
    %1238 = vmatpush1.msra.mxu0 0.0
    %1239 = vmatprep.subr.mxu0 0.0
    %1240 = vmatpush1.msra.mxu0 0.0
    %1241 = vmatprep.subr.mxu0 0.0
    %1242 = vmatpush1.msra.mxu0 0.0
    %1243 = vmatprep.subr.mxu0 0.0
    %1244 = vmatpush1.msra.mxu0 0.0
    %1245 = vmatprep.subr.mxu0 0.0
    %1246 = vmatpush1.msra.mxu0 0.0
    %1247 = vmatprep.subr.mxu0 0.0
    %1248 = vmatpush1.msra.mxu0 0.0
    %1249 = vmatprep.subr.mxu0 0.0
    %1250 = vmatpush1.msra.mxu0 0.0
    %1251 = vmatprep.subr.mxu0 0.0
    %1252 = vmatpush1.msra.mxu0 0.0
    %1253 = vmatprep.subr.mxu0 0.0
    %1254 = vmatpush1.msra.mxu0 0.0
    %1255 = vmatprep.subr.mxu0 0.0
    %1256 = vmatpush1.msra.mxu0 0.0
    %1257 = vmatprep.subr.mxu0 0.0
    %1258 = vmatpush1.msra.mxu0 0.0
    %1259 = vmatprep.subr.mxu0 0.0
    %1260 = vmatpush1.msra.mxu0 0.0
    %1261 = vmatprep.subr.mxu0 0.0
    %1262 = vmatpush1.msra.mxu0 0.0
    %1263 = vmatprep.subr.mxu0 0.0
    %1264 = vmatpush1.msra.mxu0 0.0
    %1265 = vmatprep.subr.mxu0 0.0
    %1266 = vmatpush1.msra.mxu0 0.0
    %1267 = vmatprep.subr.mxu0 0.0
    %1268 = vmatpush1.msra.mxu0 0.0
    %1269 = vmatprep.subr.mxu0 0.0
    %1270 = vmatpush1.msra.mxu0 0.0
    %1271 = vmatprep.subr.mxu0 0.0
    %1272 = vmatpush1.msra.mxu0 0.0
    %1273 = vmatprep.mubr.f32.mxu0 0.0
    %1274 = vmatmul.mubr.f32.gmra.mrb[0].mxu0 %v1207
    %v1275 = vpop.f32.mrb[0].mxu0
    %v1276 = vadd.f32 0.0, %v1275
    %v1277 = vpop.f32.mrb[0].mxu0
    %1278 = vdwg.mxu0
    %v1279 = vmul.f32 %v1191, %v1005
    %1281 = vrot.lane.b32.xlu0 %v1279, 96
    %v1282 = vpop.permute.xlu0 %1281
    %v1284 = vsel %vm215, %v1282, 0.0
    %1285 = vadd.xlane.f32.xlu0 %v1284
    %v1286 = vpop.xlane.xlu0 %1285
    %v1287 = vld [vmem:[#allocation5 + $0x3] sm:$0x1]
    %v1288 = vlaneseq
    %v1289 = vshrl.u32 %v1288, 7
    %v1290 = vsub.s32 0, %v1289
    %v1291 = vrot.slane %v1287, %v1290
    %v1292 = vmul.f32 %v1291, %v449
    %v1293 = vsel %vm792, %v1292, 0.0
    %1294 = vadd.xlane.f32.xlu0 %v1293
    %v1295 = vpop.xlane.xlu0 %1294
    %v1296 = vadd.f32 %v1286, %v1295
    %vm1297 = vcmp.ge.f32.partialorder %v1296, 0.0
    %v1298 = vadd.f32 %v1203, %v1276
    %v1299 = vxor.u32 %v1298, 2147483648
    %v1300 = vmul.f32 %v1299, 1.442695
    %v1301 = vpow.pop %v1300
    %v1302 = vadd.f32 %v1301, 1.0
    %v1303 = vrcp.pop %v1302
    %v1304 = vmul.f32 1.0, %v1303
    %v1305 = vadd.f32 %v1276, %v891
    %1307 = vrot.lane.b32.xlu0 %v1305, 64
    %v1308 = vpop.permute.xlu0 %1307
    %v1310 = vmul.f32 %v1304, %v1308
    %1312 = vrot.lane.b32.xlu0 %v1310, 64
    %v1313 = vpop.permute.xlu0 %1312
    %v1315 = vadd.f32 %v1203, %v1313
    %v1316 = vtanh.pop %v1315
    %v1317 = vsub.f32 1.0, %v1304
    %1319 = vrot.lane.b32.xlu0 %v1316, 96
    %v1320 = vpop.permute.xlu0 %1319
    %v1322 = vmul.f32 %v1317, %v1320
    %v1323 = vmul.f32 %v1304, %v1191
    %v1324 = vadd.f32 %v1322, %v1323
    %v1325 = vsel %vm1297, 1, 0
    %vm1326 = vcmp.eq.s32.totalorder %v1325, 1
    %v1327 = vsel %vm1326, %v1324, %v1191
    %v1328 = vcvt.s32.f32 %v1325
    %v1329 = vmul.f32 %v1328, %v449
    %v1330 = vsel %vm792, %v1329, 0.0
    %v1331 = vrot.slane %v1330, 4
    %v1332 = vadd.f32 %v1330, %v1331
    %v1333 = vrot.slane %v1332, 2
    %v1334 = vadd.f32 %v1332, %v1333
    %v1335 = vrot.slane %v1334, 1
    %v1336 = vadd.f32 %v1334, %v1335
    %1337 = vst.msk [vmem:[#allocation28 + $0x3] sm:$0x1] %vm925, %v1336
    %s1338 = scalar_lea.vmem [#allocation2], 32
    %v1339 = vld [vmem:[%s1338] sm:$0xff]
    %1341 = vrot.lane.b32.xlu0 %v1327, 96
    %v1342 = vpop.permute.xlu0 %1341
    %v1343 = vsel %vm215, %v1342, 0
    %1345 = vmatprep.subr.mxu0 0.0
    %1346 = vmatpush1.msra.mxu0 %v426
    %1347 = vmatprep.subr.mxu0 0.0
    %1348 = vmatpush1.msra.mxu0 %v427
    %1349 = vmatprep.subr.mxu0 0.0
    %1350 = vmatpush1.msra.mxu0 %v428
    %1351 = vmatprep.subr.mxu0 0.0
    %1352 = vmatpush1.msra.mxu0 %v429
    %1353 = vmatprep.subr.mxu0 0.0
    %1354 = vmatpush1.msra.mxu0 0.0
    %1355 = vmatprep.subr.mxu0 0.0
    %1356 = vmatpush1.msra.mxu0 0.0
    %1357 = vmatprep.subr.mxu0 0.0
    %1358 = vmatpush1.msra.mxu0 0.0
    %1359 = vmatprep.subr.mxu0 0.0
    %1360 = vmatpush1.msra.mxu0 0.0
    %1361 = vmatprep.subr.mxu0 0.0
    %1362 = vmatpush1.msra.mxu0 0.0
    %1363 = vmatprep.subr.mxu0 0.0
    %1364 = vmatpush1.msra.mxu0 0.0
    %1365 = vmatprep.subr.mxu0 0.0
    %1366 = vmatpush1.msra.mxu0 0.0
    %1367 = vmatprep.subr.mxu0 0.0
    %1368 = vmatpush1.msra.mxu0 0.0
    %1369 = vmatprep.subr.mxu0 0.0
    %1370 = vmatpush1.msra.mxu0 0.0
    %1371 = vmatprep.subr.mxu0 0.0
    %1372 = vmatpush1.msra.mxu0 0.0
    %1373 = vmatprep.subr.mxu0 0.0
    %1374 = vmatpush1.msra.mxu0 0.0
    %1375 = vmatprep.subr.mxu0 0.0
    %1376 = vmatpush1.msra.mxu0 0.0
    %1377 = vmatprep.subr.mxu0 0.0
    %1378 = vmatpush1.msra.mxu0 0.0
    %1379 = vmatprep.subr.mxu0 0.0
    %1380 = vmatpush1.msra.mxu0 0.0
    %1381 = vmatprep.subr.mxu0 0.0
    %1382 = vmatpush1.msra.mxu0 0.0
    %1383 = vmatprep.subr.mxu0 0.0
    %1384 = vmatpush1.msra.mxu0 0.0
    %1385 = vmatprep.subr.mxu0 0.0
    %1386 = vmatpush1.msra.mxu0 0.0
    %1387 = vmatprep.subr.mxu0 0.0
    %1388 = vmatpush1.msra.mxu0 0.0
    %1389 = vmatprep.subr.mxu0 0.0
    %1390 = vmatpush1.msra.mxu0 0.0
    %1391 = vmatprep.subr.mxu0 0.0
    %1392 = vmatpush1.msra.mxu0 0.0
    %1393 = vmatprep.subr.mxu0 0.0
    %1394 = vmatpush1.msra.mxu0 0.0
    %1395 = vmatprep.subr.mxu0 0.0
    %1396 = vmatpush1.msra.mxu0 0.0
    %1397 = vmatprep.subr.mxu0 0.0
    %1398 = vmatpush1.msra.mxu0 0.0
    %1399 = vmatprep.subr.mxu0 0.0
    %1400 = vmatpush1.msra.mxu0 0.0
    %1401 = vmatprep.subr.mxu0 0.0
    %1402 = vmatpush1.msra.mxu0 0.0
    %1403 = vmatprep.subr.mxu0 0.0
    %1404 = vmatpush1.msra.mxu0 0.0
    %1405 = vmatprep.subr.mxu0 0.0
    %1406 = vmatpush1.msra.mxu0 0.0
    %1407 = vmatprep.subr.mxu0 0.0
    %1408 = vmatpush1.msra.mxu0 0.0
    %1409 = vmatprep.mubr.f32.mxu0 0.0
    %1410 = vmatmul.mubr.f32.gmra.mrb[0].mxu0 %v1343
    %v1411 = vpop.f32.mrb[0].mxu0
    %v1412 = vadd.f32 0.0, %v1411
    %v1413 = vpop.f32.mrb[0].mxu0
    %1414 = vdwg.mxu0
    %v1415 = vmul.f32 %v1327, %v1005
    %1417 = vrot.lane.b32.xlu0 %v1415, 96
    %v1418 = vpop.permute.xlu0 %1417
    %v1420 = vsel %vm215, %v1418, 0.0
    %1421 = vadd.xlane.f32.xlu0 %v1420
    %v1422 = vpop.xlane.xlu0 %1421
    %v1423 = vld [vmem:[#allocation5 + $0x4] sm:$0x1]
    %v1424 = vlaneseq
    %v1425 = vshrl.u32 %v1424, 7
    %v1426 = vsub.s32 0, %v1425
    %v1427 = vrot.slane %v1423, %v1426
    %v1428 = vmul.f32 %v1427, %v449
    %v1429 = vsel %vm792, %v1428, 0.0
    %1430 = vadd.xlane.f32.xlu0 %v1429
    %v1431 = vpop.xlane.xlu0 %1430
    %v1432 = vadd.f32 %v1422, %v1431
    %vm1433 = vcmp.ge.f32.partialorder %v1432, 0.0
    %v1434 = vadd.f32 %v1339, %v1412
    %v1435 = vxor.u32 %v1434, 2147483648
    %v1436 = vmul.f32 %v1435, 1.442695
    %v1437 = vpow.pop %v1436
    %v1438 = vadd.f32 %v1437, 1.0
    %v1439 = vrcp.pop %v1438
    %v1440 = vmul.f32 1.0, %v1439
    %v1441 = vadd.f32 %v1412, %v891
    %1443 = vrot.lane.b32.xlu0 %v1441, 64
    %v1444 = vpop.permute.xlu0 %1443
    %v1446 = vmul.f32 %v1440, %v1444
    %1448 = vrot.lane.b32.xlu0 %v1446, 64
    %v1449 = vpop.permute.xlu0 %1448
    %v1451 = vadd.f32 %v1339, %v1449
    %v1452 = vtanh.pop %v1451
    %v1453 = vsub.f32 1.0, %v1440
    %1455 = vrot.lane.b32.xlu0 %v1452, 96
    %v1456 = vpop.permute.xlu0 %1455
    %v1458 = vmul.f32 %v1453, %v1456
    %v1459 = vmul.f32 %v1440, %v1327
    %v1460 = vadd.f32 %v1458, %v1459
    %v1461 = vsel %vm1433, 1, 0
    %vm1462 = vcmp.eq.s32.totalorder %v1461, 1
    %v1463 = vsel %vm1462, %v1460, %v1327
    %v1464 = vcvt.s32.f32 %v1461
    %v1465 = vmul.f32 %v1464, %v449
    %v1466 = vsel %vm792, %v1465, 0.0
    %v1467 = vrot.slane %v1466, 4
    %v1468 = vadd.f32 %v1466, %v1467
    %v1469 = vrot.slane %v1468, 2
    %v1470 = vadd.f32 %v1468, %v1469
    %v1471 = vrot.slane %v1470, 1
    %v1472 = vadd.f32 %v1470, %v1471
    %1473 = vst.msk [vmem:[#allocation28 + $0x4] sm:$0x1] %vm925, %v1472
    %s1474 = scalar_lea.vmem [#allocation2], 40
    %v1475 = vld [vmem:[%s1474] sm:$0xff]
    %1477 = vrot.lane.b32.xlu0 %v1463, 96
    %v1478 = vpop.permute.xlu0 %1477
    %v1479 = vsel %vm215, %v1478, 0
    %1481 = vmatprep.subr.mxu0 0.0
    %1482 = vmatpush1.msra.mxu0 %v426
    %1483 = vmatprep.subr.mxu0 0.0
    %1484 = vmatpush1.msra.mxu0 %v427
    %1485 = vmatprep.subr.mxu0 0.0
    %1486 = vmatpush1.msra.mxu0 %v428
    %1487 = vmatprep.subr.mxu0 0.0
    %1488 = vmatpush1.msra.mxu0 %v429
    %1489 = vmatprep.subr.mxu0 0.0
    %1490 = vmatpush1.msra.mxu0 0.0
    %1491 = vmatprep.subr.mxu0 0.0
    %1492 = vmatpush1.msra.mxu0 0.0
    %1493 = vmatprep.subr.mxu0 0.0
    %1494 = vmatpush1.msra.mxu0 0.0
    %1495 = vmatprep.subr.mxu0 0.0
    %1496 = vmatpush1.msra.mxu0 0.0
    %1497 = vmatprep.subr.mxu0 0.0
    %1498 = vmatpush1.msra.mxu0 0.0
    %1499 = vmatprep.subr.mxu0 0.0
    %1500 = vmatpush1.msra.mxu0 0.0
    %1501 = vmatprep.subr.mxu0 0.0
    %1502 = vmatpush1.msra.mxu0 0.0
    %1503 = vmatprep.subr.mxu0 0.0
    %1504 = vmatpush1.msra.mxu0 0.0
    %1505 = vmatprep.subr.mxu0 0.0
    %1506 = vmatpush1.msra.mxu0 0.0
    %1507 = vmatprep.subr.mxu0 0.0
    %1508 = vmatpush1.msra.mxu0 0.0
    %1509 = vmatprep.subr.mxu0 0.0
    %1510 = vmatpush1.msra.mxu0 0.0
    %1511 = vmatprep.subr.mxu0 0.0
    %1512 = vmatpush1.msra.mxu0 0.0
    %1513 = vmatprep.subr.mxu0 0.0
    %1514 = vmatpush1.msra.mxu0 0.0
    %1515 = vmatprep.subr.mxu0 0.0
    %1516 = vmatpush1.msra.mxu0 0.0
    %1517 = vmatprep.subr.mxu0 0.0
    %1518 = vmatpush1.msra.mxu0 0.0
    %1519 = vmatprep.subr.mxu0 0.0
    %1520 = vmatpush1.msra.mxu0 0.0
    %1521 = vmatprep.subr.mxu0 0.0
    %1522 = vmatpush1.msra.mxu0 0.0
    %1523 = vmatprep.subr.mxu0 0.0
    %1524 = vmatpush1.msra.mxu0 0.0
    %1525 = vmatprep.subr.mxu0 0.0
    %1526 = vmatpush1.msra.mxu0 0.0
    %1527 = vmatprep.subr.mxu0 0.0
    %1528 = vmatpush1.msra.mxu0 0.0
    %1529 = vmatprep.subr.mxu0 0.0
    %1530 = vmatpush1.msra.mxu0 0.0
    %1531 = vmatprep.subr.mxu0 0.0
    %1532 = vmatpush1.msra.mxu0 0.0
    %1533 = vmatprep.subr.mxu0 0.0
    %1534 = vmatpush1.msra.mxu0 0.0
    %1535 = vmatprep.subr.mxu0 0.0
    %1536 = vmatpush1.msra.mxu0 0.0
    %1537 = vmatprep.subr.mxu0 0.0
    %1538 = vmatpush1.msra.mxu0 0.0
    %1539 = vmatprep.subr.mxu0 0.0
    %1540 = vmatpush1.msra.mxu0 0.0
    %1541 = vmatprep.subr.mxu0 0.0
    %1542 = vmatpush1.msra.mxu0 0.0
    %1543 = vmatprep.subr.mxu0 0.0
    %1544 = vmatpush1.msra.mxu0 0.0
    %1545 = vmatprep.mubr.f32.mxu0 0.0
    %1546 = vmatmul.mubr.f32.gmra.mrb[0].mxu0 %v1479
    %v1547 = vpop.f32.mrb[0].mxu0
    %v1548 = vadd.f32 0.0, %v1547
    %v1549 = vpop.f32.mrb[0].mxu0
    %1550 = vdwg.mxu0
    %v1551 = vmul.f32 %v1463, %v1005
    %1553 = vrot.lane.b32.xlu0 %v1551, 96
    %v1554 = vpop.permute.xlu0 %1553
    %v1556 = vsel %vm215, %v1554, 0.0
    %1557 = vadd.xlane.f32.xlu0 %v1556
    %v1558 = vpop.xlane.xlu0 %1557
    %v1559 = vld [vmem:[#allocation5 + $0x5] sm:$0x1]
    %v1560 = vlaneseq
    %v1561 = vshrl.u32 %v1560, 7
    %v1562 = vsub.s32 0, %v1561
    %v1563 = vrot.slane %v1559, %v1562
    %v1564 = vmul.f32 %v1563, %v449
    %v1565 = vsel %vm792, %v1564, 0.0
    %1566 = vadd.xlane.f32.xlu0 %v1565
    %v1567 = vpop.xlane.xlu0 %1566
    %v1568 = vadd.f32 %v1558, %v1567
    %vm1569 = vcmp.ge.f32.partialorder %v1568, 0.0
    %v1570 = vadd.f32 %v1475, %v1548
    %v1571 = vxor.u32 %v1570, 2147483648
    %v1572 = vmul.f32 %v1571, 1.442695
    %v1573 = vpow.pop %v1572
    %v1574 = vadd.f32 %v1573, 1.0
    %v1575 = vrcp.pop %v1574
    %v1576 = vmul.f32 1.0, %v1575
    %v1577 = vadd.f32 %v1548, %v891
    %1579 = vrot.lane.b32.xlu0 %v1577, 64
    %v1580 = vpop.permute.xlu0 %1579
    %v1582 = vmul.f32 %v1576, %v1580
    %1584 = vrot.lane.b32.xlu0 %v1582, 64
    %v1585 = vpop.permute.xlu0 %1584
    %v1587 = vadd.f32 %v1475, %v1585
    %v1588 = vtanh.pop %v1587
    %v1589 = vsub.f32 1.0, %v1576
    %1591 = vrot.lane.b32.xlu0 %v1588, 96
    %v1592 = vpop.permute.xlu0 %1591
    %v1594 = vmul.f32 %v1589, %v1592
    %v1595 = vmul.f32 %v1576, %v1463
    %v1596 = vadd.f32 %v1594, %v1595
    %v1597 = vsel %vm1569, 1, 0
    %vm1598 = vcmp.eq.s32.totalorder %v1597, 1
    %v1599 = vsel %vm1598, %v1596, %v1463
    %v1600 = vcvt.s32.f32 %v1597
    %v1601 = vmul.f32 %v1600, %v449
    %v1602 = vsel %vm792, %v1601, 0.0
    %v1603 = vrot.slane %v1602, 4
    %v1604 = vadd.f32 %v1602, %v1603
    %v1605 = vrot.slane %v1604, 2
    %v1606 = vadd.f32 %v1604, %v1605
    %v1607 = vrot.slane %v1606, 1
    %v1608 = vadd.f32 %v1606, %v1607
    %1609 = vst.msk [vmem:[#allocation28 + $0x5] sm:$0x1] %vm925, %v1608
    %s1610 = scalar_lea.vmem [#allocation2], 48
    %v1611 = vld [vmem:[%s1610] sm:$0xff]
    %1613 = vrot.lane.b32.xlu0 %v1599, 96
    %v1614 = vpop.permute.xlu0 %1613
    %v1615 = vsel %vm215, %v1614, 0
    %1617 = vmatprep.subr.mxu0 0.0
    %1618 = vmatpush1.msra.mxu0 %v426
    %1619 = vmatprep.subr.mxu0 0.0
    %1620 = vmatpush1.msra.mxu0 %v427
    %1621 = vmatprep.subr.mxu0 0.0
    %1622 = vmatpush1.msra.mxu0 %v428
    %1623 = vmatprep.subr.mxu0 0.0
    %1624 = vmatpush1.msra.mxu0 %v429
    %1625 = vmatprep.subr.mxu0 0.0
    %1626 = vmatpush1.msra.mxu0 0.0
    %1627 = vmatprep.subr.mxu0 0.0
    %1628 = vmatpush1.msra.mxu0 0.0
    %1629 = vmatprep.subr.mxu0 0.0
    %1630 = vmatpush1.msra.mxu0 0.0
    %1631 = vmatprep.subr.mxu0 0.0
    %1632 = vmatpush1.msra.mxu0 0.0
    %1633 = vmatprep.subr.mxu0 0.0
    %1634 = vmatpush1.msra.mxu0 0.0
    %1635 = vmatprep.subr.mxu0 0.0
    %1636 = vmatpush1.msra.mxu0 0.0
    %1637 = vmatprep.subr.mxu0 0.0
    %1638 = vmatpush1.msra.mxu0 0.0
    %1639 = vmatprep.subr.mxu0 0.0
    %1640 = vmatpush1.msra.mxu0 0.0
    %1641 = vmatprep.subr.mxu0 0.0
    %1642 = vmatpush1.msra.mxu0 0.0
    %1643 = vmatprep.subr.mxu0 0.0
    %1644 = vmatpush1.msra.mxu0 0.0
    %1645 = vmatprep.subr.mxu0 0.0
    %1646 = vmatpush1.msra.mxu0 0.0
    %1647 = vmatprep.subr.mxu0 0.0
    %1648 = vmatpush1.msra.mxu0 0.0
    %1649 = vmatprep.subr.mxu0 0.0
    %1650 = vmatpush1.msra.mxu0 0.0
    %1651 = vmatprep.subr.mxu0 0.0
    %1652 = vmatpush1.msra.mxu0 0.0
    %1653 = vmatprep.subr.mxu0 0.0
    %1654 = vmatpush1.msra.mxu0 0.0
    %1655 = vmatprep.subr.mxu0 0.0
    %1656 = vmatpush1.msra.mxu0 0.0
    %1657 = vmatprep.subr.mxu0 0.0
    %1658 = vmatpush1.msra.mxu0 0.0
    %1659 = vmatprep.subr.mxu0 0.0
    %1660 = vmatpush1.msra.mxu0 0.0
    %1661 = vmatprep.subr.mxu0 0.0
    %1662 = vmatpush1.msra.mxu0 0.0
    %1663 = vmatprep.subr.mxu0 0.0
    %1664 = vmatpush1.msra.mxu0 0.0
    %1665 = vmatprep.subr.mxu0 0.0
    %1666 = vmatpush1.msra.mxu0 0.0
    %1667 = vmatprep.subr.mxu0 0.0
    %1668 = vmatpush1.msra.mxu0 0.0
    %1669 = vmatprep.subr.mxu0 0.0
    %1670 = vmatpush1.msra.mxu0 0.0
    %1671 = vmatprep.subr.mxu0 0.0
    %1672 = vmatpush1.msra.mxu0 0.0
    %1673 = vmatprep.subr.mxu0 0.0
    %1674 = vmatpush1.msra.mxu0 0.0
    %1675 = vmatprep.subr.mxu0 0.0
    %1676 = vmatpush1.msra.mxu0 0.0
    %1677 = vmatprep.subr.mxu0 0.0
    %1678 = vmatpush1.msra.mxu0 0.0
    %1679 = vmatprep.subr.mxu0 0.0
    %1680 = vmatpush1.msra.mxu0 0.0
    %1681 = vmatprep.mubr.f32.mxu0 0.0
    %1682 = vmatmul.mubr.f32.gmra.mrb[0].mxu0 %v1615
    %v1683 = vpop.f32.mrb[0].mxu0
    %v1684 = vadd.f32 0.0, %v1683
    %v1685 = vpop.f32.mrb[0].mxu0
    %1686 = vdwg.mxu0
    %v1687 = vmul.f32 %v1599, %v1005
    %1689 = vrot.lane.b32.xlu0 %v1687, 96
    %v1690 = vpop.permute.xlu0 %1689
    %v1692 = vsel %vm215, %v1690, 0.0
    %1693 = vadd.xlane.f32.xlu0 %v1692
    %v1694 = vpop.xlane.xlu0 %1693
    %v1695 = vld [vmem:[#allocation5 + $0x6] sm:$0x1]
    %v1696 = vlaneseq
    %v1697 = vshrl.u32 %v1696, 7
    %v1698 = vsub.s32 0, %v1697
    %v1699 = vrot.slane %v1695, %v1698
    %v1700 = vmul.f32 %v1699, %v449
    %v1701 = vsel %vm792, %v1700, 0.0
    %1702 = vadd.xlane.f32.xlu0 %v1701
    %v1703 = vpop.xlane.xlu0 %1702
    %v1704 = vadd.f32 %v1694, %v1703
    %vm1705 = vcmp.ge.f32.partialorder %v1704, 0.0
    %v1706 = vadd.f32 %v1611, %v1684
    %v1707 = vxor.u32 %v1706, 2147483648
    %v1708 = vmul.f32 %v1707, 1.442695
    %v1709 = vpow.pop %v1708
    %v1710 = vadd.f32 %v1709, 1.0
    %v1711 = vrcp.pop %v1710
    %v1712 = vmul.f32 1.0, %v1711
    %v1713 = vadd.f32 %v1684, %v891
    %1715 = vrot.lane.b32.xlu0 %v1713, 64
    %v1716 = vpop.permute.xlu0 %1715
    %v1718 = vmul.f32 %v1712, %v1716
    %1720 = vrot.lane.b32.xlu0 %v1718, 64
    %v1721 = vpop.permute.xlu0 %1720
    %v1723 = vadd.f32 %v1611, %v1721
    %v1724 = vtanh.pop %v1723
    %v1725 = vsub.f32 1.0, %v1712
    %1727 = vrot.lane.b32.xlu0 %v1724, 96
    %v1728 = vpop.permute.xlu0 %1727
    %v1730 = vmul.f32 %v1725, %v1728
    %v1731 = vmul.f32 %v1712, %v1599
    %v1732 = vadd.f32 %v1730, %v1731
    %v1733 = vsel %vm1705, 1, 0
    %vm1734 = vcmp.eq.s32.totalorder %v1733, 1
    %v1735 = vsel %vm1734, %v1732, %v1599
    %v1736 = vcvt.s32.f32 %v1733
    %v1737 = vmul.f32 %v1736, %v449
    %v1738 = vsel %vm792, %v1737, 0.0
    %v1739 = vrot.slane %v1738, 4
    %v1740 = vadd.f32 %v1738, %v1739
    %v1741 = vrot.slane %v1740, 2
    %v1742 = vadd.f32 %v1740, %v1741
    %v1743 = vrot.slane %v1742, 1
    %v1744 = vadd.f32 %v1742, %v1743
    %1745 = vst.msk [vmem:[#allocation28 + $0x6] sm:$0x1] %vm925, %v1744
    %s1746 = scalar_lea.vmem [#allocation2], 56
    %v1747 = vld [vmem:[%s1746] sm:$0xff]
    %1749 = vrot.lane.b32.xlu0 %v1735, 96
    %v1750 = vpop.permute.xlu0 %1749
    %v1751 = vsel %vm215, %v1750, 0
    %1753 = vmatprep.subr.mxu0 0.0
    %1754 = vmatpush1.msra.mxu0 %v426
    %1755 = vmatprep.subr.mxu0 0.0
    %1756 = vmatpush1.msra.mxu0 %v427
    %1757 = vmatprep.subr.mxu0 0.0
    %1758 = vmatpush1.msra.mxu0 %v428
    %1759 = vmatprep.subr.mxu0 0.0
    %1760 = vmatpush1.msra.mxu0 %v429
    %1761 = vmatprep.subr.mxu0 0.0
    %1762 = vmatpush1.msra.mxu0 0.0
    %1763 = vmatprep.subr.mxu0 0.0
    %1764 = vmatpush1.msra.mxu0 0.0
    %1765 = vmatprep.subr.mxu0 0.0
    %1766 = vmatpush1.msra.mxu0 0.0
    %1767 = vmatprep.subr.mxu0 0.0
    %1768 = vmatpush1.msra.mxu0 0.0
    %1769 = vmatprep.subr.mxu0 0.0
    %1770 = vmatpush1.msra.mxu0 0.0
    %1771 = vmatprep.subr.mxu0 0.0
    %1772 = vmatpush1.msra.mxu0 0.0
    %1773 = vmatprep.subr.mxu0 0.0
    %1774 = vmatpush1.msra.mxu0 0.0
    %1775 = vmatprep.subr.mxu0 0.0
    %1776 = vmatpush1.msra.mxu0 0.0
    %1777 = vmatprep.subr.mxu0 0.0
    %1778 = vmatpush1.msra.mxu0 0.0
    %1779 = vmatprep.subr.mxu0 0.0
    %1780 = vmatpush1.msra.mxu0 0.0
    %1781 = vmatprep.subr.mxu0 0.0
    %1782 = vmatpush1.msra.mxu0 0.0
    %1783 = vmatprep.subr.mxu0 0.0
    %1784 = vmatpush1.msra.mxu0 0.0
    %1785 = vmatprep.subr.mxu0 0.0
    %1786 = vmatpush1.msra.mxu0 0.0
    %1787 = vmatprep.subr.mxu0 0.0
    %1788 = vmatpush1.msra.mxu0 0.0
    %1789 = vmatprep.subr.mxu0 0.0
    %1790 = vmatpush1.msra.mxu0 0.0
    %1791 = vmatprep.subr.mxu0 0.0
    %1792 = vmatpush1.msra.mxu0 0.0
    %1793 = vmatprep.subr.mxu0 0.0
    %1794 = vmatpush1.msra.mxu0 0.0
    %1795 = vmatprep.subr.mxu0 0.0
    %1796 = vmatpush1.msra.mxu0 0.0
    %1797 = vmatprep.subr.mxu0 0.0
    %1798 = vmatpush1.msra.mxu0 0.0
    %1799 = vmatprep.subr.mxu0 0.0
    %1800 = vmatpush1.msra.mxu0 0.0
    %1801 = vmatprep.subr.mxu0 0.0
    %1802 = vmatpush1.msra.mxu0 0.0
    %1803 = vmatprep.subr.mxu0 0.0
    %1804 = vmatpush1.msra.mxu0 0.0
    %1805 = vmatprep.subr.mxu0 0.0
    %1806 = vmatpush1.msra.mxu0 0.0
    %1807 = vmatprep.subr.mxu0 0.0
    %1808 = vmatpush1.msra.mxu0 0.0
    %1809 = vmatprep.subr.mxu0 0.0
    %1810 = vmatpush1.msra.mxu0 0.0
    %1811 = vmatprep.subr.mxu0 0.0
    %1812 = vmatpush1.msra.mxu0 0.0
    %1813 = vmatprep.subr.mxu0 0.0
    %1814 = vmatpush1.msra.mxu0 0.0
    %1815 = vmatprep.subr.mxu0 0.0
    %1816 = vmatpush1.msra.mxu0 0.0
    %1817 = vmatprep.mubr.f32.mxu0 0.0
    %1818 = vmatmul.mubr.f32.gmra.mrb[0].mxu0 %v1751
    %v1819 = vpop.f32.mrb[0].mxu0
    %v1820 = vadd.f32 0.0, %v1819
    %v1821 = vpop.f32.mrb[0].mxu0
    %1822 = vdwg.mxu0
    %v1823 = vmul.f32 %v1735, %v1005
    %1825 = vrot.lane.b32.xlu0 %v1823, 96
    %v1826 = vpop.permute.xlu0 %1825
    %v1828 = vsel %vm215, %v1826, 0.0
    %1829 = vadd.xlane.f32.xlu0 %v1828
    %v1830 = vpop.xlane.xlu0 %1829
    %v1831 = vld [vmem:[#allocation5 + $0x7] sm:$0x1]
    %v1832 = vlaneseq
    %v1833 = vshrl.u32 %v1832, 7
    %v1834 = vsub.s32 0, %v1833
    %v1835 = vrot.slane %v1831, %v1834
    %v1836 = vmul.f32 %v1835, %v449
    %v1837 = vsel %vm792, %v1836, 0.0
    %1838 = vadd.xlane.f32.xlu0 %v1837
    %v1839 = vpop.xlane.xlu0 %1838
    %v1840 = vadd.f32 %v1830, %v1839
    %vm1841 = vcmp.ge.f32.partialorder %v1840, 0.0
    %v1842 = vadd.f32 %v1747, %v1820
    %v1843 = vxor.u32 %v1842, 2147483648
    %v1844 = vmul.f32 %v1843, 1.442695
    %v1845 = vpow.pop %v1844
    %v1846 = vadd.f32 %v1845, 1.0
    %v1847 = vrcp.pop %v1846
    %v1848 = vmul.f32 1.0, %v1847
    %v1849 = vadd.f32 %v1820, %v891
    %1851 = vrot.lane.b32.xlu0 %v1849, 64
    %v1852 = vpop.permute.xlu0 %1851
    %v1854 = vmul.f32 %v1848, %v1852
    %1856 = vrot.lane.b32.xlu0 %v1854, 64
    %v1857 = vpop.permute.xlu0 %1856
    %v1859 = vadd.f32 %v1747, %v1857
    %v1860 = vtanh.pop %v1859
    %v1861 = vsub.f32 1.0, %v1848
    %1863 = vrot.lane.b32.xlu0 %v1860, 96
    %v1864 = vpop.permute.xlu0 %1863
    %v1866 = vmul.f32 %v1861, %v1864
    %v1867 = vmul.f32 %v1848, %v1735
    %v1868 = vadd.f32 %v1866, %v1867
    %v1869 = vsel %vm1841, 1, 0
    %vm1870 = vcmp.eq.s32.totalorder %v1869, 1
    %v1871 = vsel %vm1870, %v1868, %v1735
    %v1872 = vcvt.s32.f32 %v1869
    %v1873 = vmul.f32 %v1872, %v449
    %v1874 = vsel %vm792, %v1873, 0.0
    %v1875 = vrot.slane %v1874, 4
    %v1876 = vadd.f32 %v1874, %v1875
    %v1877 = vrot.slane %v1876, 2
    %v1878 = vadd.f32 %v1876, %v1877
    %v1879 = vrot.slane %v1878, 1
    %v1880 = vadd.f32 %v1878, %v1879
    %1881 = vst.msk [vmem:[#allocation28 + $0x7] sm:$0x1] %vm925, %v1880
    %v1882 = vld [vmem:[#allocation6] sm:$0xff]
    %1884 = vrot.lane.b32.xlu0 %v1871, 96
    %v1885 = vpop.permute.xlu0 %1884
    %v1887 = vadd.f32 %v1882, %v1885
    %1888 = vst.msk [vmem:[#allocation6] sm:$0xff] %vm215, %v1887
    %v1889 = vld [vmem:[#allocation6] sm:$0xff]
    %v1890 = vld [vmem:[#allocation15] sm:$0xff]
    %v1891 = vld [vmem:[#allocation15 + $0x8] sm:$0xff]
    %v1892 = vld [vmem:[#allocation15 + $0x10] sm:$0xff]
    %v1893 = vld [vmem:[#allocation15 + $0x18] sm:$0xff]
    %v1894 = vld [vmem:[#allocation16] sm:$0x1]
    %v1896 = vlaneseq
    %v1897 = vshrl.u32 %v1896, 7
    %v1898 = vsub.s32 0, %v1897
    %v1899 = vrot.slane %v1894, %v1898
    %v1902 = vsel %vm215, %v1889, 0
    %1904 = vmatprep.subr.mxu0 0.0
    %1905 = vmatpush1.msra.mxu0 %v1890
    %1906 = vmatprep.subr.mxu0 0.0
    %1907 = vmatpush1.msra.mxu0 %v1891
    %1908 = vmatprep.subr.mxu0 0.0
    %1909 = vmatpush1.msra.mxu0 %v1892
    %1910 = vmatprep.subr.mxu0 0.0
    %1911 = vmatpush1.msra.mxu0 %v1893
    %1912 = vmatprep.subr.mxu0 0.0
    %1913 = vmatpush1.msra.mxu0 0.0
    %1914 = vmatprep.subr.mxu0 0.0
    %1915 = vmatpush1.msra.mxu0 0.0
    %1916 = vmatprep.subr.mxu0 0.0
    %1917 = vmatpush1.msra.mxu0 0.0
    %1918 = vmatprep.subr.mxu0 0.0
    %1919 = vmatpush1.msra.mxu0 0.0
    %1920 = vmatprep.subr.mxu0 0.0
    %1921 = vmatpush1.msra.mxu0 0.0
    %1922 = vmatprep.subr.mxu0 0.0
    %1923 = vmatpush1.msra.mxu0 0.0
    %1924 = vmatprep.subr.mxu0 0.0
    %1925 = vmatpush1.msra.mxu0 0.0
    %1926 = vmatprep.subr.mxu0 0.0
    %1927 = vmatpush1.msra.mxu0 0.0
    %1928 = vmatprep.subr.mxu0 0.0
    %1929 = vmatpush1.msra.mxu0 0.0
    %1930 = vmatprep.subr.mxu0 0.0
    %1931 = vmatpush1.msra.mxu0 0.0
    %1932 = vmatprep.subr.mxu0 0.0
    %1933 = vmatpush1.msra.mxu0 0.0
    %1934 = vmatprep.subr.mxu0 0.0
    %1935 = vmatpush1.msra.mxu0 0.0
    %1936 = vmatprep.subr.mxu0 0.0
    %1937 = vmatpush1.msra.mxu0 0.0
    %1938 = vmatprep.subr.mxu0 0.0
    %1939 = vmatpush1.msra.mxu0 0.0
    %1940 = vmatprep.subr.mxu0 0.0
    %1941 = vmatpush1.msra.mxu0 0.0
    %1942 = vmatprep.subr.mxu0 0.0
    %1943 = vmatpush1.msra.mxu0 0.0
    %1944 = vmatprep.subr.mxu0 0.0
    %1945 = vmatpush1.msra.mxu0 0.0
    %1946 = vmatprep.subr.mxu0 0.0
    %1947 = vmatpush1.msra.mxu0 0.0
    %1948 = vmatprep.subr.mxu0 0.0
    %1949 = vmatpush1.msra.mxu0 0.0
    %1950 = vmatprep.subr.mxu0 0.0
    %1951 = vmatpush1.msra.mxu0 0.0
    %1952 = vmatprep.subr.mxu0 0.0
    %1953 = vmatpush1.msra.mxu0 0.0
    %1954 = vmatprep.subr.mxu0 0.0
    %1955 = vmatpush1.msra.mxu0 0.0
    %1956 = vmatprep.subr.mxu0 0.0
    %1957 = vmatpush1.msra.mxu0 0.0
    %1958 = vmatprep.subr.mxu0 0.0
    %1959 = vmatpush1.msra.mxu0 0.0
    %1960 = vmatprep.subr.mxu0 0.0
    %1961 = vmatpush1.msra.mxu0 0.0
    %1962 = vmatprep.subr.mxu0 0.0
    %1963 = vmatpush1.msra.mxu0 0.0
    %1964 = vmatprep.subr.mxu0 0.0
    %1965 = vmatpush1.msra.mxu0 0.0
    %1966 = vmatprep.subr.mxu0 0.0
    %1967 = vmatpush1.msra.mxu0 0.0
    %1968 = vmatprep.mubr.f32.mxu0 0.0
    %1969 = vmatmul.mubr.f32.gmra.mrb[0].mxu0 %v1902
    %v1970 = vpop.f32.mrb[0].mxu0
    %v1971 = vadd.f32 %v1899, %v1970
    %v1972 = vpop.f32.mrb[0].mxu0
    %1973 = vdwg.mxu0
    %v1974 = vld [vmem:[#allocation3] sm:$0xff]
    %v1975 = vld [vmem:[#allocation3 + $0x8] sm:$0xff]
    %v1976 = vld [vmem:[#allocation3 + $0x10] sm:$0xff]
    %v1977 = vld [vmem:[#allocation3 + $0x18] sm:$0xff]
    %v1978 = vld [vmem:[#allocation3 + $0x20] sm:$0xff]
    %v1979 = vld [vmem:[#allocation3 + $0x28] sm:$0xff]
    %v1980 = vld [vmem:[#allocation3 + $0x30] sm:$0xff]
    %v1981 = vld [vmem:[#allocation3 + $0x38] sm:$0xff]
    %v1982 = vadd.f32 %v1974, %v1971
    %v1983 = vadd.f32 %v1975, %v1971
    %v1984 = vadd.f32 %v1976, %v1971
    %v1985 = vadd.f32 %v1977, %v1971
    %v1986 = vadd.f32 %v1978, %v1971
    %v1987 = vadd.f32 %v1979, %v1971
    %v1988 = vadd.f32 %v1980, %v1971
    %v1989 = vadd.f32 %v1981, %v1971
    %v1990 = vxor.u32 %v1982, 2147483648
    %v1991 = vxor.u32 %v1983, 2147483648
    %v1992 = vxor.u32 %v1984, 2147483648
    %v1993 = vxor.u32 %v1985, 2147483648
    %v1994 = vxor.u32 %v1986, 2147483648
    %v1995 = vxor.u32 %v1987, 2147483648
    %v1996 = vxor.u32 %v1988, 2147483648
    %v1997 = vxor.u32 %v1989, 2147483648
    %v1998 = vmul.f32 %v1990, 1.442695
    %v1999 = vpow.pop %v1998
    %v2000 = vmul.f32 %v1991, 1.442695
    %v2001 = vpow.pop %v2000
    %v2002 = vmul.f32 %v1992, 1.442695
    %v2003 = vpow.pop %v2002
    %v2004 = vmul.f32 %v1993, 1.442695
    %v2005 = vpow.pop %v2004
    %v2006 = vmul.f32 %v1994, 1.442695
    %v2007 = vpow.pop %v2006
    %v2008 = vmul.f32 %v1995, 1.442695
    %v2009 = vpow.pop %v2008
    %v2010 = vmul.f32 %v1996, 1.442695
    %v2011 = vpow.pop %v2010
    %v2012 = vmul.f32 %v1997, 1.442695
    %v2013 = vpow.pop %v2012
    %v2014 = vadd.f32 %v1999, 1.0
    %v2015 = vadd.f32 %v2001, 1.0
    %v2016 = vadd.f32 %v2003, 1.0
    %v2017 = vadd.f32 %v2005, 1.0
    %v2018 = vadd.f32 %v2007, 1.0
    %v2019 = vadd.f32 %v2009, 1.0
    %v2020 = vadd.f32 %v2011, 1.0
    %v2021 = vadd.f32 %v2013, 1.0
    %v2022 = vrcp.pop %v2014
    %v2023 = vmul.f32 1.0, %v2022
    %v2024 = vrcp.pop %v2015
    %v2025 = vmul.f32 1.0, %v2024
    %v2026 = vrcp.pop %v2016
    %v2027 = vmul.f32 1.0, %v2026
    %v2028 = vrcp.pop %v2017
    %v2029 = vmul.f32 1.0, %v2028
    %v2030 = vrcp.pop %v2018
    %v2031 = vmul.f32 1.0, %v2030
    %v2032 = vrcp.pop %v2019
    %v2033 = vmul.f32 1.0, %v2032
    %v2034 = vrcp.pop %v2020
    %v2035 = vmul.f32 1.0, %v2034
    %v2036 = vrcp.pop %v2021
    %v2037 = vmul.f32 1.0, %v2036
    %v2038 = vld [vmem:[#allocation4] sm:$0xff]
    %v2039 = vld [vmem:[#allocation4 + $0x8] sm:$0xff]
    %v2040 = vld [vmem:[#allocation4 + $0x10] sm:$0xff]
    %v2041 = vld [vmem:[#allocation4 + $0x18] sm:$0xff]
    %v2042 = vld [vmem:[#allocation4 + $0x20] sm:$0xff]
    %v2043 = vld [vmem:[#allocation4 + $0x28] sm:$0xff]
    %v2044 = vld [vmem:[#allocation4 + $0x30] sm:$0xff]
    %v2045 = vld [vmem:[#allocation4 + $0x38] sm:$0xff]
    %v2046 = vmul.f32 %v2038, %v2023
    %v2047 = vmul.f32 %v2039, %v2025
    %v2048 = vmul.f32 %v2040, %v2027
    %v2049 = vmul.f32 %v2041, %v2029
    %v2050 = vmul.f32 %v2042, %v2031
    %v2051 = vmul.f32 %v2043, %v2033
    %v2052 = vmul.f32 %v2044, %v2035
    %v2053 = vmul.f32 %v2045, %v2037
    %v2054 = vsel %vm215, %v2046, 0.0
    %2055 = vadd.xlane.f32.xlu0 %v2054
    %v2056 = vpop.xlane.xlu0 %2055
    %v2057 = vsel %vm215, %v2047, 0.0
    %2058 = vadd.xlane.f32.xlu0 %v2057
    %v2059 = vpop.xlane.xlu0 %2058
    %v2060 = vsel %vm215, %v2048, 0.0
    %2061 = vadd.xlane.f32.xlu0 %v2060
    %v2062 = vpop.xlane.xlu0 %2061
    %v2063 = vsel %vm215, %v2049, 0.0
    %2064 = vadd.xlane.f32.xlu0 %v2063
    %v2065 = vpop.xlane.xlu0 %2064
    %v2066 = vsel %vm215, %v2050, 0.0
    %2067 = vadd.xlane.f32.xlu0 %v2066
    %v2068 = vpop.xlane.xlu0 %2067
    %v2069 = vsel %vm215, %v2051, 0.0
    %2070 = vadd.xlane.f32.xlu0 %v2069
    %v2071 = vpop.xlane.xlu0 %2070
    %v2072 = vsel %vm215, %v2052, 0.0
    %2073 = vadd.xlane.f32.xlu0 %v2072
    %v2074 = vpop.xlane.xlu0 %2073
    %v2075 = vsel %vm215, %v2053, 0.0
    %2076 = vadd.xlane.f32.xlu0 %v2075
    %v2077 = vpop.xlane.xlu0 %2076
    %s2078 = scalar_lea.vmem [#allocation10], 8
    %v2079 = vld [vmem:[%s2078] sm:$0xff]
    %v2081 = vlaneseq
    %v2082 = vshrl.u32 %v2081, 7
    %v2083 = vsub.s32 0, %v2082
    %v2084 = vrot.slane %v2079, %v2083
    %2086 = vbcast.lane.b32.xlu0 %v2084, 256
    %v2087 = vpop.permute.xlu0 %2086
    %v2088 = vlaneseq
    %v2089 = vshrl.u32 %v2088, 7
    %v2090 = vsub.s32 1, %v2089
    %v2091 = vrot.slane %v2079, %v2090
    %2093 = vbcast.lane.b32.xlu0 %v2091, 256
    %v2094 = vpop.permute.xlu0 %2093
    %v2095 = vlaneseq
    %v2096 = vshrl.u32 %v2095, 7
    %v2097 = vsub.s32 2, %v2096
    %v2098 = vrot.slane %v2079, %v2097
    %2100 = vbcast.lane.b32.xlu0 %v2098, 256
    %v2101 = vpop.permute.xlu0 %2100
    %v2102 = vlaneseq
    %v2103 = vshrl.u32 %v2102, 7
    %v2104 = vsub.s32 3, %v2103
    %v2105 = vrot.slane %v2079, %v2104
    %2107 = vbcast.lane.b32.xlu0 %v2105, 256
    %v2108 = vpop.permute.xlu0 %2107
    %v2109 = vlaneseq
    %v2110 = vshrl.u32 %v2109, 7
    %v2111 = vsub.s32 4, %v2110
    %v2112 = vrot.slane %v2079, %v2111
    %2114 = vbcast.lane.b32.xlu0 %v2112, 256
    %v2115 = vpop.permute.xlu0 %2114
    %v2116 = vlaneseq
    %v2117 = vshrl.u32 %v2116, 7
    %v2118 = vsub.s32 5, %v2117
    %v2119 = vrot.slane %v2079, %v2118
    %2121 = vbcast.lane.b32.xlu0 %v2119, 256
    %v2122 = vpop.permute.xlu0 %2121
    %v2123 = vlaneseq
    %v2124 = vshrl.u32 %v2123, 7
    %v2125 = vsub.s32 6, %v2124
    %v2126 = vrot.slane %v2079, %v2125
    %2128 = vbcast.lane.b32.xlu0 %v2126, 256
    %v2129 = vpop.permute.xlu0 %2128
    %v2130 = vlaneseq
    %v2131 = vshrl.u32 %v2130, 7
    %v2132 = vsub.s32 7, %v2131
    %v2133 = vrot.slane %v2079, %v2132
    %2135 = vbcast.lane.b32.xlu0 %v2133, 256
    %v2136 = vpop.permute.xlu0 %2135
    %v2145 = vadd.f32 %v2056, %v2087
    %v2146 = vadd.f32 %v2059, %v2094
    %v2147 = vadd.f32 %v2062, %v2101
    %v2148 = vadd.f32 %v2065, %v2108
    %v2149 = vadd.f32 %v2068, %v2115
    %v2150 = vadd.f32 %v2071, %v2122
    %v2151 = vadd.f32 %v2074, %v2129
    %v2152 = vadd.f32 %v2077, %v2136
    %2161 = vset.pattern.permute.xlu0 0
    %2162 = vperm.xlu0 %2161, %v2145
    %v2163 = vpop.permute.xlu0 %2162
    %2164 = vset.pattern.permute.xlu0 0
    %2165 = vperm.xlu0 %2164, %v2146
    %v2166 = vpop.permute.xlu0 %2165
    %2167 = vset.pattern.permute.xlu0 0
    %2168 = vperm.xlu0 %2167, %v2147
    %v2169 = vpop.permute.xlu0 %2168
    %2170 = vset.pattern.permute.xlu0 0
    %2171 = vperm.xlu0 %2170, %v2148
    %v2172 = vpop.permute.xlu0 %2171
    %2173 = vset.pattern.permute.xlu0 0
    %2174 = vperm.xlu0 %2173, %v2149
    %v2175 = vpop.permute.xlu0 %2174
    %2176 = vset.pattern.permute.xlu0 0
    %2177 = vperm.xlu0 %2176, %v2150
    %v2178 = vpop.permute.xlu0 %2177
    %2179 = vset.pattern.permute.xlu0 0
    %2180 = vperm.xlu0 %2179, %v2151
    %v2181 = vpop.permute.xlu0 %2180
    %2182 = vset.pattern.permute.xlu0 0
    %2183 = vperm.xlu0 %2182, %v2152
    %v2184 = vpop.permute.xlu0 %2183
    %v2185 = vlaneseq
    %v2186 = vshrl.u32 %v2185, 7
    %v2187 = vsub.s32 %v446, %v2186
    %v2188 = vrot.slane %v2163, %v2187
    %v2189 = vlaneseq
    %v2190 = vshrl.u32 %v2189, 7
    %v2191 = vsub.s32 %v446, %v2190
    %v2192 = vrot.slane %v2166, %v2191
    %v2193 = vlaneseq
    %v2194 = vshrl.u32 %v2193, 7
    %v2195 = vsub.s32 %v446, %v2194
    %v2196 = vrot.slane %v2169, %v2195
    %v2197 = vlaneseq
    %v2198 = vshrl.u32 %v2197, 7
    %v2199 = vsub.s32 %v446, %v2198
    %v2200 = vrot.slane %v2172, %v2199
    %v2201 = vlaneseq
    %v2202 = vshrl.u32 %v2201, 7
    %v2203 = vsub.s32 %v446, %v2202
    %v2204 = vrot.slane %v2175, %v2203
    %v2205 = vlaneseq
    %v2206 = vshrl.u32 %v2205, 7
    %v2207 = vsub.s32 %v446, %v2206
    %v2208 = vrot.slane %v2178, %v2207
    %v2209 = vlaneseq
    %v2210 = vshrl.u32 %v2209, 7
    %v2211 = vsub.s32 %v446, %v2210
    %v2212 = vrot.slane %v2181, %v2211
    %v2213 = vlaneseq
    %v2214 = vshrl.u32 %v2213, 7
    %v2215 = vsub.s32 %v446, %v2214
    %v2216 = vrot.slane %v2184, %v2215
    %v2217 = vsel %vm777, %v2192, %v2188
    %v2218 = vsel %vm779, %v2196, %v2217
    %v2219 = vsel %vm781, %v2200, %v2218
    %v2220 = vsel %vm783, %v2204, %v2219
    %v2221 = vsel %vm785, %v2208, %v2220
    %v2222 = vsel %vm787, %v2212, %v2221
    %v2223 = vsel %vm789, %v2216, %v2222
    %2225 = vst.msk [vmem:[#allocation5] sm:$0xff] %vm792, %v2223
    %v2226 = vld [vmem:[#allocation2] sm:$0xff]
    %v2227 = vld [vmem:[#allocation5] sm:$0x1]
    %v2228 = vlaneseq
    %v2229 = vshrl.u32 %v2228, 7
    %v2230 = vsub.s32 0, %v2229
    %v2231 = vrot.slane %v2227, %v2230
    %v2232 = vmul.f32 %v2231, %v449
    %v2233 = vsel %vm792, %v2232, 0.0
    %2234 = vadd.xlane.f32.xlu0 %v2233
    %v2235 = vpop.xlane.xlu0 %2234
    %v2236 = vadd.f32 %v871, %v2235
    %vm2237 = vcmp.ge.f32.partialorder %v2236, 0.0
    %v2238 = vadd.f32 %v2226, %v865
    %v2239 = vxor.u32 %v2238, 2147483648
    %v2240 = vmul.f32 %v2239, 1.442695
    %v2241 = vpow.pop %v2240
    %v2242 = vadd.f32 %v2241, 1.0
    %v2243 = vrcp.pop %v2242
    %v2244 = vmul.f32 1.0, %v2243
    %v2245 = vmul.f32 %v2244, %v896
    %2247 = vrot.lane.b32.xlu0 %v2245, 64
    %v2248 = vpop.permute.xlu0 %2247
    %v2250 = vadd.f32 %v2226, %v2248
    %v2251 = vtanh.pop %v2250
    %v2252 = vsub.f32 1.0, %v2244
    %2254 = vrot.lane.b32.xlu0 %v2251, 96
    %v2255 = vpop.permute.xlu0 %2254
    %v2257 = vmul.f32 %v2252, %v2255
    %v2258 = vmul.f32 %v2244, 0.0
    %v2259 = vadd.f32 %v2257, %v2258
    %v2260 = vsel %vm2237, 1, 0
    %vm2261 = vcmp.eq.s32.totalorder %v2260, 1
    %v2262 = vsel %vm2261, %v2259, 0.0
    %v2263 = vcvt.s32.f32 %v2260
    %v2264 = vmul.f32 %v2263, %v449
    %v2265 = vsel %vm792, %v2264, 0.0
    %v2266 = vrot.slane %v2265, 4
    %v2267 = vadd.f32 %v2265, %v2266
    %v2268 = vrot.slane %v2267, 2
    %v2269 = vadd.f32 %v2267, %v2268
    %v2270 = vrot.slane %v2269, 1
    %v2271 = vadd.f32 %v2269, %v2270
    %2272 = vst.msk [vmem:[#allocation28 + $0x8] sm:$0x1] %vm925, %v2271
    %v2273 = vld [vmem:[%s927] sm:$0xff]
    %2275 = vrot.lane.b32.xlu0 %v2262, 96
    %v2276 = vpop.permute.xlu0 %2275
    %v2277 = vsel %vm215, %v2276, 0
    %2279 = vmatprep.subr.mxu0 0.0
    %2280 = vmatpush1.msra.mxu0 %v426
    %2281 = vmatprep.subr.mxu0 0.0
    %2282 = vmatpush1.msra.mxu0 %v427
    %2283 = vmatprep.subr.mxu0 0.0
    %2284 = vmatpush1.msra.mxu0 %v428
    %2285 = vmatprep.subr.mxu0 0.0
    %2286 = vmatpush1.msra.mxu0 %v429
    %2287 = vmatprep.subr.mxu0 0.0
    %2288 = vmatpush1.msra.mxu0 0.0
    %2289 = vmatprep.subr.mxu0 0.0
    %2290 = vmatpush1.msra.mxu0 0.0
    %2291 = vmatprep.subr.mxu0 0.0
    %2292 = vmatpush1.msra.mxu0 0.0
    %2293 = vmatprep.subr.mxu0 0.0
    %2294 = vmatpush1.msra.mxu0 0.0
    %2295 = vmatprep.subr.mxu0 0.0
    %2296 = vmatpush1.msra.mxu0 0.0
    %2297 = vmatprep.subr.mxu0 0.0
    %2298 = vmatpush1.msra.mxu0 0.0
    %2299 = vmatprep.subr.mxu0 0.0
    %2300 = vmatpush1.msra.mxu0 0.0
    %2301 = vmatprep.subr.mxu0 0.0
    %2302 = vmatpush1.msra.mxu0 0.0
    %2303 = vmatprep.subr.mxu0 0.0
    %2304 = vmatpush1.msra.mxu0 0.0
    %2305 = vmatprep.subr.mxu0 0.0
    %2306 = vmatpush1.msra.mxu0 0.0
    %2307 = vmatprep.subr.mxu0 0.0
    %2308 = vmatpush1.msra.mxu0 0.0
    %2309 = vmatprep.subr.mxu0 0.0
    %2310 = vmatpush1.msra.mxu0 0.0
    %2311 = vmatprep.subr.mxu0 0.0
    %2312 = vmatpush1.msra.mxu0 0.0
    %2313 = vmatprep.subr.mxu0 0.0
    %2314 = vmatpush1.msra.mxu0 0.0
    %2315 = vmatprep.subr.mxu0 0.0
    %2316 = vmatpush1.msra.mxu0 0.0
    %2317 = vmatprep.subr.mxu0 0.0
    %2318 = vmatpush1.msra.mxu0 0.0
    %2319 = vmatprep.subr.mxu0 0.0
    %2320 = vmatpush1.msra.mxu0 0.0
    %2321 = vmatprep.subr.mxu0 0.0
    %2322 = vmatpush1.msra.mxu0 0.0
    %2323 = vmatprep.subr.mxu0 0.0
    %2324 = vmatpush1.msra.mxu0 0.0
    %2325 = vmatprep.subr.mxu0 0.0
    %2326 = vmatpush1.msra.mxu0 0.0
    %2327 = vmatprep.subr.mxu0 0.0
    %2328 = vmatpush1.msra.mxu0 0.0
    %2329 = vmatprep.subr.mxu0 0.0
    %2330 = vmatpush1.msra.mxu0 0.0
    %2331 = vmatprep.subr.mxu0 0.0
    %2332 = vmatpush1.msra.mxu0 0.0
    %2333 = vmatprep.subr.mxu0 0.0
    %2334 = vmatpush1.msra.mxu0 0.0
    %2335 = vmatprep.subr.mxu0 0.0
    %2336 = vmatpush1.msra.mxu0 0.0
    %2337 = vmatprep.subr.mxu0 0.0
    %2338 = vmatpush1.msra.mxu0 0.0
    %2339 = vmatprep.subr.mxu0 0.0
    %2340 = vmatpush1.msra.mxu0 0.0
    %2341 = vmatprep.subr.mxu0 0.0
    %2342 = vmatpush1.msra.mxu0 0.0
    %2343 = vmatprep.mubr.f32.mxu0 0.0
    %2344 = vmatmul.mubr.f32.gmra.mrb[0].mxu0 %v2277
    %v2345 = vpop.f32.mrb[0].mxu0
    %v2346 = vadd.f32 0.0, %v2345
    %v2347 = vpop.f32.mrb[0].mxu0
    %2348 = vdwg.mxu0
    %v2349 = vmul.f32 %v2262, %v1005
    %2351 = vrot.lane.b32.xlu0 %v2349, 96
    %v2352 = vpop.permute.xlu0 %2351
    %v2354 = vsel %vm215, %v2352, 0.0
    %2355 = vadd.xlane.f32.xlu0 %v2354
    %v2356 = vpop.xlane.xlu0 %2355
    %v2357 = vld [vmem:[#allocation5 + $0x1] sm:$0x1]
    %v2358 = vlaneseq
    %v2359 = vshrl.u32 %v2358, 7
    %v2360 = vsub.s32 0, %v2359
    %v2361 = vrot.slane %v2357, %v2360
    %v2362 = vmul.f32 %v2361, %v449
    %v2363 = vsel %vm792, %v2362, 0.0
    %2364 = vadd.xlane.f32.xlu0 %v2363
    %v2365 = vpop.xlane.xlu0 %2364
    %v2366 = vadd.f32 %v2356, %v2365
    %vm2367 = vcmp.ge.f32.partialorder %v2366, 0.0
    %v2368 = vadd.f32 %v2273, %v2346
    %v2369 = vxor.u32 %v2368, 2147483648
    %v2370 = vmul.f32 %v2369, 1.442695
    %v2371 = vpow.pop %v2370
    %v2372 = vadd.f32 %v2371, 1.0
    %v2373 = vrcp.pop %v2372
    %v2374 = vmul.f32 1.0, %v2373
    %v2375 = vadd.f32 %v2346, %v891
    %2377 = vrot.lane.b32.xlu0 %v2375, 64
    %v2378 = vpop.permute.xlu0 %2377
    %v2380 = vmul.f32 %v2374, %v2378
    %2382 = vrot.lane.b32.xlu0 %v2380, 64
    %v2383 = vpop.permute.xlu0 %2382
    %v2385 = vadd.f32 %v2273, %v2383
    %v2386 = vtanh.pop %v2385
    %v2387 = vsub.f32 1.0, %v2374
    %2389 = vrot.lane.b32.xlu0 %v2386, 96
    %v2390 = vpop.permute.xlu0 %2389
    %v2392 = vmul.f32 %v2387, %v2390
    %v2393 = vmul.f32 %v2374, %v2262
    %v2394 = vadd.f32 %v2392, %v2393
    %v2395 = vsel %vm2367, 1, 0
    %vm2396 = vcmp.eq.s32.totalorder %v2395, 1
    %v2397 = vsel %vm2396, %v2394, %v2262
    %v2398 = vcvt.s32.f32 %v2395
    %v2399 = vmul.f32 %v2398, %v449
    %v2400 = vsel %vm792, %v2399, 0.0
    %v2401 = vrot.slane %v2400, 4
    %v2402 = vadd.f32 %v2400, %v2401
    %v2403 = vrot.slane %v2402, 2
    %v2404 = vadd.f32 %v2402, %v2403
    %v2405 = vrot.slane %v2404, 1
    %v2406 = vadd.f32 %v2404, %v2405
    %2407 = vst.msk [vmem:[#allocation28 + $0x9] sm:$0x1] %vm925, %v2406
    %v2408 = vld [vmem:[%s1066] sm:$0xff]
    %2410 = vrot.lane.b32.xlu0 %v2397, 96
    %v2411 = vpop.permute.xlu0 %2410
    %v2412 = vsel %vm215, %v2411, 0
    %2414 = vmatprep.subr.mxu0 0.0
    %2415 = vmatpush1.msra.mxu0 %v426
    %2416 = vmatprep.subr.mxu0 0.0
    %2417 = vmatpush1.msra.mxu0 %v427
    %2418 = vmatprep.subr.mxu0 0.0
    %2419 = vmatpush1.msra.mxu0 %v428
    %2420 = vmatprep.subr.mxu0 0.0
    %2421 = vmatpush1.msra.mxu0 %v429
    %2422 = vmatprep.subr.mxu0 0.0
    %2423 = vmatpush1.msra.mxu0 0.0
    %2424 = vmatprep.subr.mxu0 0.0
    %2425 = vmatpush1.msra.mxu0 0.0
    %2426 = vmatprep.subr.mxu0 0.0
    %2427 = vmatpush1.msra.mxu0 0.0
    %2428 = vmatprep.subr.mxu0 0.0
    %2429 = vmatpush1.msra.mxu0 0.0
    %2430 = vmatprep.subr.mxu0 0.0
    %2431 = vmatpush1.msra.mxu0 0.0
    %2432 = vmatprep.subr.mxu0 0.0
    %2433 = vmatpush1.msra.mxu0 0.0
    %2434 = vmatprep.subr.mxu0 0.0
    %2435 = vmatpush1.msra.mxu0 0.0
    %2436 = vmatprep.subr.mxu0 0.0
    %2437 = vmatpush1.msra.mxu0 0.0
    %2438 = vmatprep.subr.mxu0 0.0
    %2439 = vmatpush1.msra.mxu0 0.0
    %2440 = vmatprep.subr.mxu0 0.0
    %2441 = vmatpush1.msra.mxu0 0.0
    %2442 = vmatprep.subr.mxu0 0.0
    %2443 = vmatpush1.msra.mxu0 0.0
    %2444 = vmatprep.subr.mxu0 0.0
    %2445 = vmatpush1.msra.mxu0 0.0
    %2446 = vmatprep.subr.mxu0 0.0
    %2447 = vmatpush1.msra.mxu0 0.0
    %2448 = vmatprep.subr.mxu0 0.0
    %2449 = vmatpush1.msra.mxu0 0.0
    %2450 = vmatprep.subr.mxu0 0.0
    %2451 = vmatpush1.msra.mxu0 0.0
    %2452 = vmatprep.subr.mxu0 0.0
    %2453 = vmatpush1.msra.mxu0 0.0
    %2454 = vmatprep.subr.mxu0 0.0
    %2455 = vmatpush1.msra.mxu0 0.0
    %2456 = vmatprep.subr.mxu0 0.0
    %2457 = vmatpush1.msra.mxu0 0.0
    %2458 = vmatprep.subr.mxu0 0.0
    %2459 = vmatpush1.msra.mxu0 0.0
    %2460 = vmatprep.subr.mxu0 0.0
    %2461 = vmatpush1.msra.mxu0 0.0
    %2462 = vmatprep.subr.mxu0 0.0
    %2463 = vmatpush1.msra.mxu0 0.0
    %2464 = vmatprep.subr.mxu0 0.0
    %2465 = vmatpush1.msra.mxu0 0.0
    %2466 = vmatprep.subr.mxu0 0.0
    %2467 = vmatpush1.msra.mxu0 0.0
    %2468 = vmatprep.subr.mxu0 0.0
    %2469 = vmatpush1.msra.mxu0 0.0
    %2470 = vmatprep.subr.mxu0 0.0
    %2471 = vmatpush1.msra.mxu0 0.0
    %2472 = vmatprep.subr.mxu0 0.0
    %2473 = vmatpush1.msra.mxu0 0.0
    %2474 = vmatprep.subr.mxu0 0.0
    %2475 = vmatpush1.msra.mxu0 0.0
    %2476 = vmatprep.subr.mxu0 0.0
    %2477 = vmatpush1.msra.mxu0 0.0
    %2478 = vmatprep.mubr.f32.mxu0 0.0
    %2479 = vmatmul.mubr.f32.gmra.mrb[0].mxu0 %v2412
    %v2480 = vpop.f32.mrb[0].mxu0
    %v2481 = vadd.f32 0.0, %v2480
    %v2482 = vpop.f32.mrb[0].mxu0
    %2483 = vdwg.mxu0
    %v2484 = vmul.f32 %v2397, %v1005
    %2486 = vrot.lane.b32.xlu0 %v2484, 96
    %v2487 = vpop.permute.xlu0 %2486
    %v2489 = vsel %vm215, %v2487, 0.0
    %2490 = vadd.xlane.f32.xlu0 %v2489
    %v2491 = vpop.xlane.xlu0 %2490
    %v2492 = vld [vmem:[#allocation5 + $0x2] sm:$0x1]
    %v2493 = vlaneseq
    %v2494 = vshrl.u32 %v2493, 7
    %v2495 = vsub.s32 0, %v2494
    %v2496 = vrot.slane %v2492, %v2495
    %v2497 = vmul.f32 %v2496, %v449
    %v2498 = vsel %vm792, %v2497, 0.0
    %2499 = vadd.xlane.f32.xlu0 %v2498
    %v2500 = vpop.xlane.xlu0 %2499
    %v2501 = vadd.f32 %v2491, %v2500
    %vm2502 = vcmp.ge.f32.partialorder %v2501, 0.0
    %v2503 = vadd.f32 %v2408, %v2481
    %v2504 = vxor.u32 %v2503, 2147483648
    %v2505 = vmul.f32 %v2504, 1.442695
    %v2506 = vpow.pop %v2505
    %v2507 = vadd.f32 %v2506, 1.0
    %v2508 = vrcp.pop %v2507
    %v2509 = vmul.f32 1.0, %v2508
    %v2510 = vadd.f32 %v2481, %v891
    %2512 = vrot.lane.b32.xlu0 %v2510, 64
    %v2513 = vpop.permute.xlu0 %2512
    %v2515 = vmul.f32 %v2509, %v2513
    %2517 = vrot.lane.b32.xlu0 %v2515, 64
    %v2518 = vpop.permute.xlu0 %2517
    %v2520 = vadd.f32 %v2408, %v2518
    %v2521 = vtanh.pop %v2520
    %v2522 = vsub.f32 1.0, %v2509
    %2524 = vrot.lane.b32.xlu0 %v2521, 96
    %v2525 = vpop.permute.xlu0 %2524
    %v2527 = vmul.f32 %v2522, %v2525
    %v2528 = vmul.f32 %v2509, %v2397
    %v2529 = vadd.f32 %v2527, %v2528
    %v2530 = vsel %vm2502, 1, 0
    %vm2531 = vcmp.eq.s32.totalorder %v2530, 1
    %v2532 = vsel %vm2531, %v2529, %v2397
    %v2533 = vcvt.s32.f32 %v2530
    %v2534 = vmul.f32 %v2533, %v449
    %v2535 = vsel %vm792, %v2534, 0.0
    %v2536 = vrot.slane %v2535, 4
    %v2537 = vadd.f32 %v2535, %v2536
    %v2538 = vrot.slane %v2537, 2
    %v2539 = vadd.f32 %v2537, %v2538
    %v2540 = vrot.slane %v2539, 1
    %v2541 = vadd.f32 %v2539, %v2540
    %2542 = vst.msk [vmem:[#allocation28 + $0xa] sm:$0x1] %vm925, %v2541
    %v2543 = vld [vmem:[%s1202] sm:$0xff]
    %2545 = vrot.lane.b32.xlu0 %v2532, 96
    %v2546 = vpop.permute.xlu0 %2545
    %v2547 = vsel %vm215, %v2546, 0
    %2549 = vmatprep.subr.mxu0 0.0
    %2550 = vmatpush1.msra.mxu0 %v426
    %2551 = vmatprep.subr.mxu0 0.0
    %2552 = vmatpush1.msra.mxu0 %v427
    %2553 = vmatprep.subr.mxu0 0.0
    %2554 = vmatpush1.msra.mxu0 %v428
    %2555 = vmatprep.subr.mxu0 0.0
    %2556 = vmatpush1.msra.mxu0 %v429
    %2557 = vmatprep.subr.mxu0 0.0
    %2558 = vmatpush1.msra.mxu0 0.0
    %2559 = vmatprep.subr.mxu0 0.0
    %2560 = vmatpush1.msra.mxu0 0.0
    %2561 = vmatprep.subr.mxu0 0.0
    %2562 = vmatpush1.msra.mxu0 0.0
    %2563 = vmatprep.subr.mxu0 0.0
    %2564 = vmatpush1.msra.mxu0 0.0
    %2565 = vmatprep.subr.mxu0 0.0
    %2566 = vmatpush1.msra.mxu0 0.0
    %2567 = vmatprep.subr.mxu0 0.0
    %2568 = vmatpush1.msra.mxu0 0.0
    %2569 = vmatprep.subr.mxu0 0.0
    %2570 = vmatpush1.msra.mxu0 0.0
    %2571 = vmatprep.subr.mxu0 0.0
    %2572 = vmatpush1.msra.mxu0 0.0
    %2573 = vmatprep.subr.mxu0 0.0
    %2574 = vmatpush1.msra.mxu0 0.0
    %2575 = vmatprep.subr.mxu0 0.0
    %2576 = vmatpush1.msra.mxu0 0.0
    %2577 = vmatprep.subr.mxu0 0.0
    %2578 = vmatpush1.msra.mxu0 0.0
    %2579 = vmatprep.subr.mxu0 0.0
    %2580 = vmatpush1.msra.mxu0 0.0
    %2581 = vmatprep.subr.mxu0 0.0
    %2582 = vmatpush1.msra.mxu0 0.0
    %2583 = vmatprep.subr.mxu0 0.0
    %2584 = vmatpush1.msra.mxu0 0.0
    %2585 = vmatprep.subr.mxu0 0.0
    %2586 = vmatpush1.msra.mxu0 0.0
    %2587 = vmatprep.subr.mxu0 0.0
    %2588 = vmatpush1.msra.mxu0 0.0
    %2589 = vmatprep.subr.mxu0 0.0
    %2590 = vmatpush1.msra.mxu0 0.0
    %2591 = vmatprep.subr.mxu0 0.0
    %2592 = vmatpush1.msra.mxu0 0.0
    %2593 = vmatprep.subr.mxu0 0.0
    %2594 = vmatpush1.msra.mxu0 0.0
    %2595 = vmatprep.subr.mxu0 0.0
    %2596 = vmatpush1.msra.mxu0 0.0
    %2597 = vmatprep.subr.mxu0 0.0
    %2598 = vmatpush1.msra.mxu0 0.0
    %2599 = vmatprep.subr.mxu0 0.0
    %2600 = vmatpush1.msra.mxu0 0.0
    %2601 = vmatprep.subr.mxu0 0.0
    %2602 = vmatpush1.msra.mxu0 0.0
    %2603 = vmatprep.subr.mxu0 0.0
    %2604 = vmatpush1.msra.mxu0 0.0
    %2605 = vmatprep.subr.mxu0 0.0
    %2606 = vmatpush1.msra.mxu0 0.0
    %2607 = vmatprep.subr.mxu0 0.0
    %2608 = vmatpush1.msra.mxu0 0.0
    %2609 = vmatprep.subr.mxu0 0.0
    %2610 = vmatpush1.msra.mxu0 0.0
    %2611 = vmatprep.subr.mxu0 0.0
    %2612 = vmatpush1.msra.mxu0 0.0
    %2613 = vmatprep.mubr.f32.mxu0 0.0
    %2614 = vmatmul.mubr.f32.gmra.mrb[0].mxu0 %v2547
    %v2615 = vpop.f32.mrb[0].mxu0
    %v2616 = vadd.f32 0.0, %v2615
    %v2617 = vpop.f32.mrb[0].mxu0
    %2618 = vdwg.mxu0
    %v2619 = vmul.f32 %v2532, %v1005
    %2621 = vrot.lane.b32.xlu0 %v2619, 96
    %v2622 = vpop.permute.xlu0 %2621
    %v2624 = vsel %vm215, %v2622, 0.0
    %2625 = vadd.xlane.f32.xlu0 %v2624
    %v2626 = vpop.xlane.xlu0 %2625
    %v2627 = vld [vmem:[#allocation5 + $0x3] sm:$0x1]
    %v2628 = vlaneseq
    %v2629 = vshrl.u32 %v2628, 7
    %v2630 = vsub.s32 0, %v2629
    %v2631 = vrot.slane %v2627, %v2630
    %v2632 = vmul.f32 %v2631, %v449
    %v2633 = vsel %vm792, %v2632, 0.0
    %2634 = vadd.xlane.f32.xlu0 %v2633
    %v2635 = vpop.xlane.xlu0 %2634
    %v2636 = vadd.f32 %v2626, %v2635
    %vm2637 = vcmp.ge.f32.partialorder %v2636, 0.0
    %v2638 = vadd.f32 %v2543, %v2616
    %v2639 = vxor.u32 %v2638, 2147483648
    %v2640 = vmul.f32 %v2639, 1.442695
    %v2641 = vpow.pop %v2640
    %v2642 = vadd.f32 %v2641, 1.0
    %v2643 = vrcp.pop %v2642
    %v2644 = vmul.f32 1.0, %v2643
    %v2645 = vadd.f32 %v2616, %v891
    %2647 = vrot.lane.b32.xlu0 %v2645, 64
    %v2648 = vpop.permute.xlu0 %2647
    %v2650 = vmul.f32 %v2644, %v2648
    %2652 = vrot.lane.b32.xlu0 %v2650, 64
    %v2653 = vpop.permute.xlu0 %2652
    %v2655 = vadd.f32 %v2543, %v2653
    %v2656 = vtanh.pop %v2655
    %v2657 = vsub.f32 1.0, %v2644
    %2659 = vrot.lane.b32.xlu0 %v2656, 96
    %v2660 = vpop.permute.xlu0 %2659
    %v2662 = vmul.f32 %v2657, %v2660
    %v2663 = vmul.f32 %v2644, %v2532
    %v2664 = vadd.f32 %v2662, %v2663
    %v2665 = vsel %vm2637, 1, 0
    %vm2666 = vcmp.eq.s32.totalorder %v2665, 1
    %v2667 = vsel %vm2666, %v2664, %v2532
    %v2668 = vcvt.s32.f32 %v2665
    %v2669 = vmul.f32 %v2668, %v449
    %v2670 = vsel %vm792, %v2669, 0.0
    %v2671 = vrot.slane %v2670, 4
    %v2672 = vadd.f32 %v2670, %v2671
    %v2673 = vrot.slane %v2672, 2
    %v2674 = vadd.f32 %v2672, %v2673
    %v2675 = vrot.slane %v2674, 1
    %v2676 = vadd.f32 %v2674, %v2675
    %2677 = vst.msk [vmem:[#allocation28 + $0xb] sm:$0x1] %vm925, %v2676
    %v2678 = vld [vmem:[%s1338] sm:$0xff]
    %2680 = vrot.lane.b32.xlu0 %v2667, 96
    %v2681 = vpop.permute.xlu0 %2680
    %v2682 = vsel %vm215, %v2681, 0
    %2684 = vmatprep.subr.mxu0 0.0
    %2685 = vmatpush1.msra.mxu0 %v426
    %2686 = vmatprep.subr.mxu0 0.0
    %2687 = vmatpush1.msra.mxu0 %v427
    %2688 = vmatprep.subr.mxu0 0.0
    %2689 = vmatpush1.msra.mxu0 %v428
    %2690 = vmatprep.subr.mxu0 0.0
    %2691 = vmatpush1.msra.mxu0 %v429
    %2692 = vmatprep.subr.mxu0 0.0
    %2693 = vmatpush1.msra.mxu0 0.0
    %2694 = vmatprep.subr.mxu0 0.0
    %2695 = vmatpush1.msra.mxu0 0.0
    %2696 = vmatprep.subr.mxu0 0.0
    %2697 = vmatpush1.msra.mxu0 0.0
    %2698 = vmatprep.subr.mxu0 0.0
    %2699 = vmatpush1.msra.mxu0 0.0
    %2700 = vmatprep.subr.mxu0 0.0
    %2701 = vmatpush1.msra.mxu0 0.0
    %2702 = vmatprep.subr.mxu0 0.0
    %2703 = vmatpush1.msra.mxu0 0.0
    %2704 = vmatprep.subr.mxu0 0.0
    %2705 = vmatpush1.msra.mxu0 0.0
    %2706 = vmatprep.subr.mxu0 0.0
    %2707 = vmatpush1.msra.mxu0 0.0
    %2708 = vmatprep.subr.mxu0 0.0
    %2709 = vmatpush1.msra.mxu0 0.0
    %2710 = vmatprep.subr.mxu0 0.0
    %2711 = vmatpush1.msra.mxu0 0.0
    %2712 = vmatprep.subr.mxu0 0.0
    %2713 = vmatpush1.msra.mxu0 0.0
    %2714 = vmatprep.subr.mxu0 0.0
    %2715 = vmatpush1.msra.mxu0 0.0
    %2716 = vmatprep.subr.mxu0 0.0
    %2717 = vmatpush1.msra.mxu0 0.0
    %2718 = vmatprep.subr.mxu0 0.0
    %2719 = vmatpush1.msra.mxu0 0.0
    %2720 = vmatprep.subr.mxu0 0.0
    %2721 = vmatpush1.msra.mxu0 0.0
    %2722 = vmatprep.subr.mxu0 0.0
    %2723 = vmatpush1.msra.mxu0 0.0
    %2724 = vmatprep.subr.mxu0 0.0
    %2725 = vmatpush1.msra.mxu0 0.0
    %2726 = vmatprep.subr.mxu0 0.0
    %2727 = vmatpush1.msra.mxu0 0.0
    %2728 = vmatprep.subr.mxu0 0.0
    %2729 = vmatpush1.msra.mxu0 0.0
    %2730 = vmatprep.subr.mxu0 0.0
    %2731 = vmatpush1.msra.mxu0 0.0
    %2732 = vmatprep.subr.mxu0 0.0
    %2733 = vmatpush1.msra.mxu0 0.0
    %2734 = vmatprep.subr.mxu0 0.0
    %2735 = vmatpush1.msra.mxu0 0.0
    %2736 = vmatprep.subr.mxu0 0.0
    %2737 = vmatpush1.msra.mxu0 0.0
    %2738 = vmatprep.subr.mxu0 0.0
    %2739 = vmatpush1.msra.mxu0 0.0
    %2740 = vmatprep.subr.mxu0 0.0
    %2741 = vmatpush1.msra.mxu0 0.0
    %2742 = vmatprep.subr.mxu0 0.0
    %2743 = vmatpush1.msra.mxu0 0.0
    %2744 = vmatprep.subr.mxu0 0.0
    %2745 = vmatpush1.msra.mxu0 0.0
    %2746 = vmatprep.subr.mxu0 0.0
    %2747 = vmatpush1.msra.mxu0 0.0
    %2748 = vmatprep.mubr.f32.mxu0 0.0
    %2749 = vmatmul.mubr.f32.gmra.mrb[0].mxu0 %v2682
    %v2750 = vpop.f32.mrb[0].mxu0
    %v2751 = vadd.f32 0.0, %v2750
    %v2752 = vpop.f32.mrb[0].mxu0
    %2753 = vdwg.mxu0
    %v2754 = vmul.f32 %v2667, %v1005
    %2756 = vrot.lane.b32.xlu0 %v2754, 96
    %v2757 = vpop.permute.xlu0 %2756
    %v2759 = vsel %vm215, %v2757, 0.0
    %2760 = vadd.xlane.f32.xlu0 %v2759
    %v2761 = vpop.xlane.xlu0 %2760
    %v2762 = vld [vmem:[#allocation5 + $0x4] sm:$0x1]
    %v2763 = vlaneseq
    %v2764 = vshrl.u32 %v2763, 7
    %v2765 = vsub.s32 0, %v2764
    %v2766 = vrot.slane %v2762, %v2765
    %v2767 = vmul.f32 %v2766, %v449
    %v2768 = vsel %vm792, %v2767, 0.0
    %2769 = vadd.xlane.f32.xlu0 %v2768
    %v2770 = vpop.xlane.xlu0 %2769
    %v2771 = vadd.f32 %v2761, %v2770
    %vm2772 = vcmp.ge.f32.partialorder %v2771, 0.0
    %v2773 = vadd.f32 %v2678, %v2751
    %v2774 = vxor.u32 %v2773, 2147483648
    %v2775 = vmul.f32 %v2774, 1.442695
    %v2776 = vpow.pop %v2775
    %v2777 = vadd.f32 %v2776, 1.0
    %v2778 = vrcp.pop %v2777
    %v2779 = vmul.f32 1.0, %v2778
    %v2780 = vadd.f32 %v2751, %v891
    %2782 = vrot.lane.b32.xlu0 %v2780, 64
    %v2783 = vpop.permute.xlu0 %2782
    %v2785 = vmul.f32 %v2779, %v2783
    %2787 = vrot.lane.b32.xlu0 %v2785, 64
    %v2788 = vpop.permute.xlu0 %2787
    %v2790 = vadd.f32 %v2678, %v2788
    %v2791 = vtanh.pop %v2790
    %v2792 = vsub.f32 1.0, %v2779
    %2794 = vrot.lane.b32.xlu0 %v2791, 96
    %v2795 = vpop.permute.xlu0 %2794
    %v2797 = vmul.f32 %v2792, %v2795
    %v2798 = vmul.f32 %v2779, %v2667
    %v2799 = vadd.f32 %v2797, %v2798
    %v2800 = vsel %vm2772, 1, 0
    %vm2801 = vcmp.eq.s32.totalorder %v2800, 1
    %v2802 = vsel %vm2801, %v2799, %v2667
    %v2803 = vcvt.s32.f32 %v2800
    %v2804 = vmul.f32 %v2803, %v449
    %v2805 = vsel %vm792, %v2804, 0.0
    %v2806 = vrot.slane %v2805, 4
    %v2807 = vadd.f32 %v2805, %v2806
    %v2808 = vrot.slane %v2807, 2
    %v2809 = vadd.f32 %v2807, %v2808
    %v2810 = vrot.slane %v2809, 1
    %v2811 = vadd.f32 %v2809, %v2810
    %2812 = vst.msk [vmem:[#allocation28 + $0xc] sm:$0x1] %vm925, %v2811
    %v2813 = vld [vmem:[%s1474] sm:$0xff]
    %2815 = vrot.lane.b32.xlu0 %v2802, 96
    %v2816 = vpop.permute.xlu0 %2815
    %v2817 = vsel %vm215, %v2816, 0
    %2819 = vmatprep.subr.mxu0 0.0
    %2820 = vmatpush1.msra.mxu0 %v426
    %2821 = vmatprep.subr.mxu0 0.0
    %2822 = vmatpush1.msra.mxu0 %v427
    %2823 = vmatprep.subr.mxu0 0.0
    %2824 = vmatpush1.msra.mxu0 %v428
    %2825 = vmatprep.subr.mxu0 0.0
    %2826 = vmatpush1.msra.mxu0 %v429
    %2827 = vmatprep.subr.mxu0 0.0
    %2828 = vmatpush1.msra.mxu0 0.0
    %2829 = vmatprep.subr.mxu0 0.0
    %2830 = vmatpush1.msra.mxu0 0.0
    %2831 = vmatprep.subr.mxu0 0.0
    %2832 = vmatpush1.msra.mxu0 0.0
    %2833 = vmatprep.subr.mxu0 0.0
    %2834 = vmatpush1.msra.mxu0 0.0
    %2835 = vmatprep.subr.mxu0 0.0
    %2836 = vmatpush1.msra.mxu0 0.0
    %2837 = vmatprep.subr.mxu0 0.0
    %2838 = vmatpush1.msra.mxu0 0.0
    %2839 = vmatprep.subr.mxu0 0.0
    %2840 = vmatpush1.msra.mxu0 0.0
    %2841 = vmatprep.subr.mxu0 0.0
    %2842 = vmatpush1.msra.mxu0 0.0
    %2843 = vmatprep.subr.mxu0 0.0
    %2844 = vmatpush1.msra.mxu0 0.0
    %2845 = vmatprep.subr.mxu0 0.0
    %2846 = vmatpush1.msra.mxu0 0.0
    %2847 = vmatprep.subr.mxu0 0.0
    %2848 = vmatpush1.msra.mxu0 0.0
    %2849 = vmatprep.subr.mxu0 0.0
    %2850 = vmatpush1.msra.mxu0 0.0
    %2851 = vmatprep.subr.mxu0 0.0
    %2852 = vmatpush1.msra.mxu0 0.0
    %2853 = vmatprep.subr.mxu0 0.0
    %2854 = vmatpush1.msra.mxu0 0.0
    %2855 = vmatprep.subr.mxu0 0.0
    %2856 = vmatpush1.msra.mxu0 0.0
    %2857 = vmatprep.subr.mxu0 0.0
    %2858 = vmatpush1.msra.mxu0 0.0
    %2859 = vmatprep.subr.mxu0 0.0
    %2860 = vmatpush1.msra.mxu0 0.0
    %2861 = vmatprep.subr.mxu0 0.0
    %2862 = vmatpush1.msra.mxu0 0.0
    %2863 = vmatprep.subr.mxu0 0.0
    %2864 = vmatpush1.msra.mxu0 0.0
    %2865 = vmatprep.subr.mxu0 0.0
    %2866 = vmatpush1.msra.mxu0 0.0
    %2867 = vmatprep.subr.mxu0 0.0
    %2868 = vmatpush1.msra.mxu0 0.0
    %2869 = vmatprep.subr.mxu0 0.0
    %2870 = vmatpush1.msra.mxu0 0.0
    %2871 = vmatprep.subr.mxu0 0.0
    %2872 = vmatpush1.msra.mxu0 0.0
    %2873 = vmatprep.subr.mxu0 0.0
    %2874 = vmatpush1.msra.mxu0 0.0
    %2875 = vmatprep.subr.mxu0 0.0
    %2876 = vmatpush1.msra.mxu0 0.0
    %2877 = vmatprep.subr.mxu0 0.0
    %2878 = vmatpush1.msra.mxu0 0.0
    %2879 = vmatprep.subr.mxu0 0.0
    %2880 = vmatpush1.msra.mxu0 0.0
    %2881 = vmatprep.subr.mxu0 0.0
    %2882 = vmatpush1.msra.mxu0 0.0
    %2883 = vmatprep.mubr.f32.mxu0 0.0
    %2884 = vmatmul.mubr.f32.gmra.mrb[0].mxu0 %v2817
    %v2885 = vpop.f32.mrb[0].mxu0
    %v2886 = vadd.f32 0.0, %v2885
    %v2887 = vpop.f32.mrb[0].mxu0
    %2888 = vdwg.mxu0
    %v2889 = vmul.f32 %v2802, %v1005
    %2891 = vrot.lane.b32.xlu0 %v2889, 96
    %v2892 = vpop.permute.xlu0 %2891
    %v2894 = vsel %vm215, %v2892, 0.0
    %2895 = vadd.xlane.f32.xlu0 %v2894
    %v2896 = vpop.xlane.xlu0 %2895
    %v2897 = vld [vmem:[#allocation5 + $0x5] sm:$0x1]
    %v2898 = vlaneseq
    %v2899 = vshrl.u32 %v2898, 7
    %v2900 = vsub.s32 0, %v2899
    %v2901 = vrot.slane %v2897, %v2900
    %v2902 = vmul.f32 %v2901, %v449
    %v2903 = vsel %vm792, %v2902, 0.0
    %2904 = vadd.xlane.f32.xlu0 %v2903
    %v2905 = vpop.xlane.xlu0 %2904
    %v2906 = vadd.f32 %v2896, %v2905
    %vm2907 = vcmp.ge.f32.partialorder %v2906, 0.0
    %v2908 = vadd.f32 %v2813, %v2886
    %v2909 = vxor.u32 %v2908, 2147483648
    %v2910 = vmul.f32 %v2909, 1.442695
    %v2911 = vpow.pop %v2910
    %v2912 = vadd.f32 %v2911, 1.0
    %v2913 = vrcp.pop %v2912
    %v2914 = vmul.f32 1.0, %v2913
    %v2915 = vadd.f32 %v2886, %v891
    %2917 = vrot.lane.b32.xlu0 %v2915, 64
    %v2918 = vpop.permute.xlu0 %2917
    %v2920 = vmul.f32 %v2914, %v2918
    %2922 = vrot.lane.b32.xlu0 %v2920, 64
    %v2923 = vpop.permute.xlu0 %2922
    %v2925 = vadd.f32 %v2813, %v2923
    %v2926 = vtanh.pop %v2925
    %v2927 = vsub.f32 1.0, %v2914
    %2929 = vrot.lane.b32.xlu0 %v2926, 96
    %v2930 = vpop.permute.xlu0 %2929
    %v2932 = vmul.f32 %v2927, %v2930
    %v2933 = vmul.f32 %v2914, %v2802
    %v2934 = vadd.f32 %v2932, %v2933
    %v2935 = vsel %vm2907, 1, 0
    %vm2936 = vcmp.eq.s32.totalorder %v2935, 1
    %v2937 = vsel %vm2936, %v2934, %v2802
    %v2938 = vcvt.s32.f32 %v2935
    %v2939 = vmul.f32 %v2938, %v449
    %v2940 = vsel %vm792, %v2939, 0.0
    %v2941 = vrot.slane %v2940, 4
    %v2942 = vadd.f32 %v2940, %v2941
    %v2943 = vrot.slane %v2942, 2
    %v2944 = vadd.f32 %v2942, %v2943
    %v2945 = vrot.slane %v2944, 1
    %v2946 = vadd.f32 %v2944, %v2945
    %2947 = vst.msk [vmem:[#allocation28 + $0xd] sm:$0x1] %vm925, %v2946
    %v2948 = vld [vmem:[%s1610] sm:$0xff]
    %2950 = vrot.lane.b32.xlu0 %v2937, 96
    %v2951 = vpop.permute.xlu0 %2950
    %v2952 = vsel %vm215, %v2951, 0
    %2954 = vmatprep.subr.mxu0 0.0
    %2955 = vmatpush1.msra.mxu0 %v426
    %2956 = vmatprep.subr.mxu0 0.0
    %2957 = vmatpush1.msra.mxu0 %v427
    %2958 = vmatprep.subr.mxu0 0.0
    %2959 = vmatpush1.msra.mxu0 %v428
    %2960 = vmatprep.subr.mxu0 0.0
    %2961 = vmatpush1.msra.mxu0 %v429
    %2962 = vmatprep.subr.mxu0 0.0
    %2963 = vmatpush1.msra.mxu0 0.0
    %2964 = vmatprep.subr.mxu0 0.0
    %2965 = vmatpush1.msra.mxu0 0.0
    %2966 = vmatprep.subr.mxu0 0.0
    %2967 = vmatpush1.msra.mxu0 0.0
    %2968 = vmatprep.subr.mxu0 0.0
    %2969 = vmatpush1.msra.mxu0 0.0
    %2970 = vmatprep.subr.mxu0 0.0
    %2971 = vmatpush1.msra.mxu0 0.0
    %2972 = vmatprep.subr.mxu0 0.0
    %2973 = vmatpush1.msra.mxu0 0.0
    %2974 = vmatprep.subr.mxu0 0.0
    %2975 = vmatpush1.msra.mxu0 0.0
    %2976 = vmatprep.subr.mxu0 0.0
    %2977 = vmatpush1.msra.mxu0 0.0
    %2978 = vmatprep.subr.mxu0 0.0
    %2979 = vmatpush1.msra.mxu0 0.0
    %2980 = vmatprep.subr.mxu0 0.0
    %2981 = vmatpush1.msra.mxu0 0.0
    %2982 = vmatprep.subr.mxu0 0.0
    %2983 = vmatpush1.msra.mxu0 0.0
    %2984 = vmatprep.subr.mxu0 0.0
    %2985 = vmatpush1.msra.mxu0 0.0
    %2986 = vmatprep.subr.mxu0 0.0
    %2987 = vmatpush1.msra.mxu0 0.0
    %2988 = vmatprep.subr.mxu0 0.0
    %2989 = vmatpush1.msra.mxu0 0.0
    %2990 = vmatprep.subr.mxu0 0.0
    %2991 = vmatpush1.msra.mxu0 0.0
    %2992 = vmatprep.subr.mxu0 0.0
    %2993 = vmatpush1.msra.mxu0 0.0
    %2994 = vmatprep.subr.mxu0 0.0
    %2995 = vmatpush1.msra.mxu0 0.0
    %2996 = vmatprep.subr.mxu0 0.0
    %2997 = vmatpush1.msra.mxu0 0.0
    %2998 = vmatprep.subr.mxu0 0.0
    %2999 = vmatpush1.msra.mxu0 0.0
    %3000 = vmatprep.subr.mxu0 0.0
    %3001 = vmatpush1.msra.mxu0 0.0
    %3002 = vmatprep.subr.mxu0 0.0
    %3003 = vmatpush1.msra.mxu0 0.0
    %3004 = vmatprep.subr.mxu0 0.0
    %3005 = vmatpush1.msra.mxu0 0.0
    %3006 = vmatprep.subr.mxu0 0.0
    %3007 = vmatpush1.msra.mxu0 0.0
    %3008 = vmatprep.subr.mxu0 0.0
    %3009 = vmatpush1.msra.mxu0 0.0
    %3010 = vmatprep.subr.mxu0 0.0
    %3011 = vmatpush1.msra.mxu0 0.0
    %3012 = vmatprep.subr.mxu0 0.0
    %3013 = vmatpush1.msra.mxu0 0.0
    %3014 = vmatprep.subr.mxu0 0.0
    %3015 = vmatpush1.msra.mxu0 0.0
    %3016 = vmatprep.subr.mxu0 0.0
    %3017 = vmatpush1.msra.mxu0 0.0
    %3018 = vmatprep.mubr.f32.mxu0 0.0
    %3019 = vmatmul.mubr.f32.gmra.mrb[0].mxu0 %v2952
    %v3020 = vpop.f32.mrb[0].mxu0
    %v3021 = vadd.f32 0.0, %v3020
    %v3022 = vpop.f32.mrb[0].mxu0
    %3023 = vdwg.mxu0
    %v3024 = vmul.f32 %v2937, %v1005
    %3026 = vrot.lane.b32.xlu0 %v3024, 96
    %v3027 = vpop.permute.xlu0 %3026
    %v3029 = vsel %vm215, %v3027, 0.0
    %3030 = vadd.xlane.f32.xlu0 %v3029
    %v3031 = vpop.xlane.xlu0 %3030
    %v3032 = vld [vmem:[#allocation5 + $0x6] sm:$0x1]
    %v3033 = vlaneseq
    %v3034 = vshrl.u32 %v3033, 7
    %v3035 = vsub.s32 0, %v3034
    %v3036 = vrot.slane %v3032, %v3035
    %v3037 = vmul.f32 %v3036, %v449
    %v3038 = vsel %vm792, %v3037, 0.0
    %3039 = vadd.xlane.f32.xlu0 %v3038
    %v3040 = vpop.xlane.xlu0 %3039
    %v3041 = vadd.f32 %v3031, %v3040
    %vm3042 = vcmp.ge.f32.partialorder %v3041, 0.0
    %v3043 = vadd.f32 %v2948, %v3021
    %v3044 = vxor.u32 %v3043, 2147483648
    %v3045 = vmul.f32 %v3044, 1.442695
    %v3046 = vpow.pop %v3045
    %v3047 = vadd.f32 %v3046, 1.0
    %v3048 = vrcp.pop %v3047
    %v3049 = vmul.f32 1.0, %v3048
    %v3050 = vadd.f32 %v3021, %v891
    %3052 = vrot.lane.b32.xlu0 %v3050, 64
    %v3053 = vpop.permute.xlu0 %3052
    %v3055 = vmul.f32 %v3049, %v3053
    %3057 = vrot.lane.b32.xlu0 %v3055, 64
    %v3058 = vpop.permute.xlu0 %3057
    %v3060 = vadd.f32 %v2948, %v3058
    %v3061 = vtanh.pop %v3060
    %v3062 = vsub.f32 1.0, %v3049
    %3064 = vrot.lane.b32.xlu0 %v3061, 96
    %v3065 = vpop.permute.xlu0 %3064
    %v3067 = vmul.f32 %v3062, %v3065
    %v3068 = vmul.f32 %v3049, %v2937
    %v3069 = vadd.f32 %v3067, %v3068
    %v3070 = vsel %vm3042, 1, 0
    %vm3071 = vcmp.eq.s32.totalorder %v3070, 1
    %v3072 = vsel %vm3071, %v3069, %v2937
    %v3073 = vcvt.s32.f32 %v3070
    %v3074 = vmul.f32 %v3073, %v449
    %v3075 = vsel %vm792, %v3074, 0.0
    %v3076 = vrot.slane %v3075, 4
    %v3077 = vadd.f32 %v3075, %v3076
    %v3078 = vrot.slane %v3077, 2
    %v3079 = vadd.f32 %v3077, %v3078
    %v3080 = vrot.slane %v3079, 1
    %v3081 = vadd.f32 %v3079, %v3080
    %3082 = vst.msk [vmem:[#allocation28 + $0xe] sm:$0x1] %vm925, %v3081
    %v3083 = vld [vmem:[%s1746] sm:$0xff]
    %3085 = vrot.lane.b32.xlu0 %v3072, 96
    %v3086 = vpop.permute.xlu0 %3085
    %v3087 = vsel %vm215, %v3086, 0
    %3089 = vmatprep.subr.mxu0 0.0
    %3090 = vmatpush1.msra.mxu0 %v426
    %3091 = vmatprep.subr.mxu0 0.0
    %3092 = vmatpush1.msra.mxu0 %v427
    %3093 = vmatprep.subr.mxu0 0.0
    %3094 = vmatpush1.msra.mxu0 %v428
    %3095 = vmatprep.subr.mxu0 0.0
    %3096 = vmatpush1.msra.mxu0 %v429
    %3097 = vmatprep.subr.mxu0 0.0
    %3098 = vmatpush1.msra.mxu0 0.0
    %3099 = vmatprep.subr.mxu0 0.0
    %3100 = vmatpush1.msra.mxu0 0.0
    %3101 = vmatprep.subr.mxu0 0.0
    %3102 = vmatpush1.msra.mxu0 0.0
    %3103 = vmatprep.subr.mxu0 0.0
    %3104 = vmatpush1.msra.mxu0 0.0
    %3105 = vmatprep.subr.mxu0 0.0
    %3106 = vmatpush1.msra.mxu0 0.0
    %3107 = vmatprep.subr.mxu0 0.0
    %3108 = vmatpush1.msra.mxu0 0.0
    %3109 = vmatprep.subr.mxu0 0.0
    %3110 = vmatpush1.msra.mxu0 0.0
    %3111 = vmatprep.subr.mxu0 0.0
    %3112 = vmatpush1.msra.mxu0 0.0
    %3113 = vmatprep.subr.mxu0 0.0
    %3114 = vmatpush1.msra.mxu0 0.0
    %3115 = vmatprep.subr.mxu0 0.0
    %3116 = vmatpush1.msra.mxu0 0.0
    %3117 = vmatprep.subr.mxu0 0.0
    %3118 = vmatpush1.msra.mxu0 0.0
    %3119 = vmatprep.subr.mxu0 0.0
    %3120 = vmatpush1.msra.mxu0 0.0
    %3121 = vmatprep.subr.mxu0 0.0
    %3122 = vmatpush1.msra.mxu0 0.0
    %3123 = vmatprep.subr.mxu0 0.0
    %3124 = vmatpush1.msra.mxu0 0.0
    %3125 = vmatprep.subr.mxu0 0.0
    %3126 = vmatpush1.msra.mxu0 0.0
    %3127 = vmatprep.subr.mxu0 0.0
    %3128 = vmatpush1.msra.mxu0 0.0
    %3129 = vmatprep.subr.mxu0 0.0
    %3130 = vmatpush1.msra.mxu0 0.0
    %3131 = vmatprep.subr.mxu0 0.0
    %3132 = vmatpush1.msra.mxu0 0.0
    %3133 = vmatprep.subr.mxu0 0.0
    %3134 = vmatpush1.msra.mxu0 0.0
    %3135 = vmatprep.subr.mxu0 0.0
    %3136 = vmatpush1.msra.mxu0 0.0
    %3137 = vmatprep.subr.mxu0 0.0
    %3138 = vmatpush1.msra.mxu0 0.0
    %3139 = vmatprep.subr.mxu0 0.0
    %3140 = vmatpush1.msra.mxu0 0.0
    %3141 = vmatprep.subr.mxu0 0.0
    %3142 = vmatpush1.msra.mxu0 0.0
    %3143 = vmatprep.subr.mxu0 0.0
    %3144 = vmatpush1.msra.mxu0 0.0
    %3145 = vmatprep.subr.mxu0 0.0
    %3146 = vmatpush1.msra.mxu0 0.0
    %3147 = vmatprep.subr.mxu0 0.0
    %3148 = vmatpush1.msra.mxu0 0.0
    %3149 = vmatprep.subr.mxu0 0.0
    %3150 = vmatpush1.msra.mxu0 0.0
    %3151 = vmatprep.subr.mxu0 0.0
    %3152 = vmatpush1.msra.mxu0 0.0
    %3153 = vmatprep.mubr.f32.mxu0 0.0
    %3154 = vmatmul.mubr.f32.gmra.mrb[0].mxu0 %v3087
    %v3155 = vpop.f32.mrb[0].mxu0
    %v3156 = vadd.f32 0.0, %v3155
    %v3157 = vpop.f32.mrb[0].mxu0
    %3158 = vdwg.mxu0
    %v3159 = vmul.f32 %v3072, %v1005
    %3161 = vrot.lane.b32.xlu0 %v3159, 96
    %v3162 = vpop.permute.xlu0 %3161
    %v3164 = vsel %vm215, %v3162, 0.0
    %3165 = vadd.xlane.f32.xlu0 %v3164
    %v3166 = vpop.xlane.xlu0 %3165
    %v3167 = vld [vmem:[#allocation5 + $0x7] sm:$0x1]
    %v3168 = vlaneseq
    %v3169 = vshrl.u32 %v3168, 7
    %v3170 = vsub.s32 0, %v3169
    %v3171 = vrot.slane %v3167, %v3170
    %v3172 = vmul.f32 %v3171, %v449
    %v3173 = vsel %vm792, %v3172, 0.0
    %3174 = vadd.xlane.f32.xlu0 %v3173
    %v3175 = vpop.xlane.xlu0 %3174
    %v3176 = vadd.f32 %v3166, %v3175
    %vm3177 = vcmp.ge.f32.partialorder %v3176, 0.0
    %v3178 = vadd.f32 %v3083, %v3156
    %v3179 = vxor.u32 %v3178, 2147483648
    %v3180 = vmul.f32 %v3179, 1.442695
    %v3181 = vpow.pop %v3180
    %v3182 = vadd.f32 %v3181, 1.0
    %v3183 = vrcp.pop %v3182
    %v3184 = vmul.f32 1.0, %v3183
    %v3185 = vadd.f32 %v3156, %v891
    %3187 = vrot.lane.b32.xlu0 %v3185, 64
    %v3188 = vpop.permute.xlu0 %3187
    %v3190 = vmul.f32 %v3184, %v3188
    %3192 = vrot.lane.b32.xlu0 %v3190, 64
    %v3193 = vpop.permute.xlu0 %3192
    %v3195 = vadd.f32 %v3083, %v3193
    %v3196 = vtanh.pop %v3195
    %v3197 = vsub.f32 1.0, %v3184
    %3199 = vrot.lane.b32.xlu0 %v3196, 96
    %v3200 = vpop.permute.xlu0 %3199
    %v3202 = vmul.f32 %v3197, %v3200
    %v3203 = vmul.f32 %v3184, %v3072
    %v3204 = vadd.f32 %v3202, %v3203
    %v3205 = vsel %vm3177, 1, 0
    %vm3206 = vcmp.eq.s32.totalorder %v3205, 1
    %v3207 = vsel %vm3206, %v3204, %v3072
    %v3208 = vcvt.s32.f32 %v3205
    %v3209 = vmul.f32 %v3208, %v449
    %v3210 = vsel %vm792, %v3209, 0.0
    %v3211 = vrot.slane %v3210, 4
    %v3212 = vadd.f32 %v3210, %v3211
    %v3213 = vrot.slane %v3212, 2
    %v3214 = vadd.f32 %v3212, %v3213
    %v3215 = vrot.slane %v3214, 1
    %v3216 = vadd.f32 %v3214, %v3215
    %3217 = vst.msk [vmem:[#allocation28 + $0xf] sm:$0x1] %vm925, %v3216
    %v3218 = vld [vmem:[#allocation6] sm:$0xff]
    %3220 = vrot.lane.b32.xlu0 %v3207, 96
    %v3221 = vpop.permute.xlu0 %3220
    %v3223 = vadd.f32 %v3218, %v3221
    %3224 = vst.msk [vmem:[#allocation6] sm:$0xff] %vm215, %v3223
    %v3225 = vld [vmem:[#allocation6] sm:$0xff]
    %v3226 = vld [vmem:[#allocation24] sm:$0xff]
    %v3227 = vld [vmem:[#allocation24 + $0x8] sm:$0xff]
    %v3228 = vld [vmem:[#allocation24 + $0x10] sm:$0xff]
    %v3229 = vld [vmem:[#allocation24 + $0x18] sm:$0xff]
    %v3230 = vld [vmem:[#allocation25] sm:$0x1]
    %v3232 = vlaneseq
    %v3233 = vshrl.u32 %v3232, 7
    %v3234 = vsub.s32 0, %v3233
    %v3235 = vrot.slane %v3230, %v3234
    %v3238 = vsel %vm215, %v3225, 0
    %3240 = vmatprep.subr.mxu0 0.0
    %3241 = vmatpush1.msra.mxu0 %v3226
    %3242 = vmatprep.subr.mxu0 0.0
    %3243 = vmatpush1.msra.mxu0 %v3227
    %3244 = vmatprep.subr.mxu0 0.0
    %3245 = vmatpush1.msra.mxu0 %v3228
    %3246 = vmatprep.subr.mxu0 0.0
    %3247 = vmatpush1.msra.mxu0 %v3229
    %3248 = vmatprep.subr.mxu0 0.0
    %3249 = vmatpush1.msra.mxu0 0.0
    %3250 = vmatprep.subr.mxu0 0.0
    %3251 = vmatpush1.msra.mxu0 0.0
    %3252 = vmatprep.subr.mxu0 0.0
    %3253 = vmatpush1.msra.mxu0 0.0
    %3254 = vmatprep.subr.mxu0 0.0
    %3255 = vmatpush1.msra.mxu0 0.0
    %3256 = vmatprep.subr.mxu0 0.0
    %3257 = vmatpush1.msra.mxu0 0.0
    %3258 = vmatprep.subr.mxu0 0.0
    %3259 = vmatpush1.msra.mxu0 0.0
    %3260 = vmatprep.subr.mxu0 0.0
    %3261 = vmatpush1.msra.mxu0 0.0
    %3262 = vmatprep.subr.mxu0 0.0
    %3263 = vmatpush1.msra.mxu0 0.0
    %3264 = vmatprep.subr.mxu0 0.0
    %3265 = vmatpush1.msra.mxu0 0.0
    %3266 = vmatprep.subr.mxu0 0.0
    %3267 = vmatpush1.msra.mxu0 0.0
    %3268 = vmatprep.subr.mxu0 0.0
    %3269 = vmatpush1.msra.mxu0 0.0
    %3270 = vmatprep.subr.mxu0 0.0
    %3271 = vmatpush1.msra.mxu0 0.0
    %3272 = vmatprep.subr.mxu0 0.0
    %3273 = vmatpush1.msra.mxu0 0.0
    %3274 = vmatprep.subr.mxu0 0.0
    %3275 = vmatpush1.msra.mxu0 0.0
    %3276 = vmatprep.subr.mxu0 0.0
    %3277 = vmatpush1.msra.mxu0 0.0
    %3278 = vmatprep.subr.mxu0 0.0
    %3279 = vmatpush1.msra.mxu0 0.0
    %3280 = vmatprep.subr.mxu0 0.0
    %3281 = vmatpush1.msra.mxu0 0.0
    %3282 = vmatprep.subr.mxu0 0.0
    %3283 = vmatpush1.msra.mxu0 0.0
    %3284 = vmatprep.subr.mxu0 0.0
    %3285 = vmatpush1.msra.mxu0 0.0
    %3286 = vmatprep.subr.mxu0 0.0
    %3287 = vmatpush1.msra.mxu0 0.0
    %3288 = vmatprep.subr.mxu0 0.0
    %3289 = vmatpush1.msra.mxu0 0.0
    %3290 = vmatprep.subr.mxu0 0.0
    %3291 = vmatpush1.msra.mxu0 0.0
    %3292 = vmatprep.subr.mxu0 0.0
    %3293 = vmatpush1.msra.mxu0 0.0
    %3294 = vmatprep.subr.mxu0 0.0
    %3295 = vmatpush1.msra.mxu0 0.0
    %3296 = vmatprep.subr.mxu0 0.0
    %3297 = vmatpush1.msra.mxu0 0.0
    %3298 = vmatprep.subr.mxu0 0.0
    %3299 = vmatpush1.msra.mxu0 0.0
    %3300 = vmatprep.subr.mxu0 0.0
    %3301 = vmatpush1.msra.mxu0 0.0
    %3302 = vmatprep.subr.mxu0 0.0
    %3303 = vmatpush1.msra.mxu0 0.0
    %3304 = vmatprep.mubr.f32.mxu0 0.0
    %3305 = vmatmul.mubr.f32.gmra.mrb[0].mxu0 %v3238
    %v3306 = vpop.f32.mrb[0].mxu0
    %v3307 = vadd.f32 %v3235, %v3306
    %v3308 = vpop.f32.mrb[0].mxu0
    %3309 = vdwg.mxu0
    %3310 = vst.msk [vmem:[#allocation27] sm:$0xff] %vm215, %v3307
    // Predicated region
    $region98: #{tpu_custom_call.1} parent=1 // pred_check
      _
    $region99: #{tpu_custom_call.1} parent=1 // pred_check_branch
      %3312 = sbr.rel (0) target = $region101
    $region100: #{tpu_custom_call.1} parent=1 // pred_region
      %s3314 = ssub.s32 128, 128
      %3315 = vsyncadd [#allocation9], %s3314
      %s3317 = sshll.u32 [#allocation27], 4
      %s3318 = int_to_ptr.vmem [resolvable:$true] %s3317
      %3320 = dma.vmem_to_hbm [thread:$0]  %s3318, 128, %s12, [#allocation9]
    $region101: #{tpu_custom_call.1} parent=1 // pred_fallthru
      _
    // Predicated region
    $region102: #{tpu_custom_call.1} parent=1 // pred_check
      _
    $region103: #{tpu_custom_call.1} parent=1 // pred_check_branch
      %3322 = sbr.rel (0) target = $region105
    $region104: #{tpu_custom_call.1} parent=1 // pred_region
      %s3324 = ssub.s32 256, 256
      %3325 = vsyncadd [#allocation29], %s3324
      %s3326 = sshll.u32 [#allocation28], 4
      %s3327 = int_to_ptr.vmem [resolvable:$true] %s3326
      %3332 = dma.vmem_to_hbm [thread:$0]  %s3327, 256, %s13, [#allocation29], 128, 128, 8
    $region105: #{tpu_custom_call.1} parent=1 // pred_fallthru
      _
    // Predicated region
    $region106: #{tpu_custom_call.1} parent=1 // pred_check
      _
    $region107: #{tpu_custom_call.1} parent=1 // pred_check_branch
      %3334 = sbr.rel (0) target = $region109
    $region108: #{tpu_custom_call.1} parent=1 // pred_region
      %3335 = dma.done [#allocation9], 128
    $region109: #{tpu_custom_call.1} parent=1 // pred_fallthru
      _
    // Predicated region
    $region110: #{tpu_custom_call.1} parent=1 // pred_check
      _
    $region111: #{tpu_custom_call.1} parent=1 // pred_check_branch
      %3337 = sbr.rel (0) target = $region113
    $region112: #{tpu_custom_call.1} parent=1 // pred_region
      %3338 = dma.done [#allocation29], 256
    $region113: #{tpu_custom_call.1} parent=1 // pred_fallthru
      _
    %3339 = vsyncpa [#allocation8], 1
    %3340 = vsyncpa [#allocation11], 1
    %3341 = vsyncpa [#allocation14], 1
    %3342 = vsyncpa [#allocation17], 1
    %3343 = vsyncpa [#allocation20], 1
    %3344 = vsyncpa [#allocation23], 1
    %3345 = vsyncpa [#allocation26], 1
    %3346 = vsyncpa [#allocation9], 1
    %3347 = vsyncpa [#allocation29], 1

</llo_original>
